<compile_context>
chip_gen: v5e
topology: v5e:2x2
jax: 0.10.0
libtpu: 0.0.40
codegen_flags: <defaults>
</compile_context>

<pallas_src>
import functools

import jax
import jax.numpy as jnp
import numpy as np
from jax.experimental import pallas as pl
from jax.experimental.pallas import tpu as pltpu

NEG_SLOPE = 0.1
BN_EPS = 1e-5
TM = 512                        # rows of (N*H*W) per grid step for M-tiled kernels
VMEM_LIMIT = 48 * 1024 * 1024   # safe on v5e/v6e (128 MiB) and v7x (64 MiB) VMEM


def _leaky(v):
    return jnp.where(v >= 0, v, NEG_SLOPE * v)


# ----------------------------- Pallas kernels ------------------------------

def _conv1x1_kernel(x_ref, w_ref, b_ref, o_ref, *, act):
    # y = [leaky](x @ w + b); BN scale already folded into w host-side.
    v = jnp.dot(x_ref[...], w_ref[...], preferred_element_type=jnp.float32)
    v = v + b_ref[...]
    if act:
        v = _leaky(v)
    o_ref[...] = v


def fused_conv1x1(x, w, b, *, act=True):
    """x: (M, K) f32, w: (K, N) BN-folded f32, b: (N,) f32."""
    M, K = x.shape
    N = w.shape[1]
    tm = min(TM, M)
    kern = functools.partial(_conv1x1_kernel, act=act)
    return pl.pallas_call(
        kern,
        out_shape=jax.ShapeDtypeStruct((M, N), jnp.float32),
        grid_spec=pltpu.PrefetchScalarGridSpec(
            num_scalar_prefetch=0,
            grid=(pl.cdiv(M, tm),),
            in_specs=[
                pl.BlockSpec((tm, K), lambda i: (i, 0)),
                pl.BlockSpec((K, N), lambda i: (0, 0)),
                pl.BlockSpec((1, N), lambda i: (0, 0)),
            ],
            out_specs=pl.BlockSpec((tm, N), lambda i: (i, 0)),
        ),
        compiler_params=pltpu.CompilerParams(
            dimension_semantics=("parallel",), vmem_limit_bytes=VMEM_LIMIT),
    )(x, w, b.reshape(1, N))


def _bottleneck_kernel(*refs, H, W, shortcut, with_head):
    """[optional outer cv1] -> bottleneck cv1 (1x1) -> cv2 (3x3) -> residual.

    The 3x3 conv is computed as 9 shifted MXU matmuls over a zero-padded
    (HW + 2*pad, Cmid) slab held entirely in VMEM (no HBM im2col). Horizontal
    out-of-range taps are masked per image column; vertical ones hit the zero
    pad rows.
    """
    if with_head:
        x_ref, wh_ref, bh_ref, w1_ref, b1_ref, w2_ref, b2_ref, o_ref = refs
        y = _leaky(jnp.dot(x_ref[...], wh_ref[...],
                           preferred_element_type=jnp.float32) + bh_ref[...])
    else:
        y_ref, w1_ref, b1_ref, w2_ref, b2_ref, o_ref = refs
        y = y_ref[...]

    HW = H * W
    Cout = w2_ref.shape[2]

    # Bottleneck cv1 (1x1 conv + folded BN + leaky).
    t = _leaky(jnp.dot(y, w1_ref[...], preferred_element_type=jnp.float32)
               + b1_ref[...])                                    # (HW, Cmid)

    # Flattened row-major zero padding above/below (pad is 8-aligned when W is).
    pad = W + 8
    zeros = jnp.zeros((pad, t.shape[1]), jnp.float32)
    tpad = jnp.concatenate([zeros, t, zeros], axis=0)            # (HW + 2*pad, Cmid)

    col = jax.lax.broadcasted_iota(jnp.int32, (HW, 1), 0) % W
    not_left = col != 0            # rows whose (w-1) tap is out of the image
    not_right = col != (W - 1)     # rows whose (w+1) tap is out of the image

    acc = jnp.zeros((HW, Cout), jnp.float32)
    for kh in range(3):
        for kw in range(3):
            dh, dw = kh - 1, kw - 1
            start = pad + dh * W + dw
            win = tpad[start:start + HW, :]
            if dw == -1:
                win = jnp.where(not_left, win, 0.0)
            elif dw == 1:
                win = jnp.where(not_right, win, 0.0)
            acc = acc + jnp.dot(win, w2_ref[kh * 3 + kw],
                                preferred_element_type=jnp.float32)

    out = _leaky(acc + b2_ref[...])
    if shortcut:
        out = out + y
    o_ref[...] = out


def bottleneck_fused(inp, w1, b1, w2taps, b2, *, Nb, H, W, shortcut, head=None):
    """inp: (Nb*H*W, Cin). w1: (*, c_) cv1 weights (BN folded),
    w2taps: (9, c_, c_) 3x3 weights (BN folded), biases 1-D.
    head = (wh, bh) fuses the outer CSP cv1 in front (first block only)."""
    M, Cin = inp.shape
    HW = H * W
    Cmid = w1.shape[1]
    Cout = w2taps.shape[2]
    with_head = head is not None

    operands = [inp]
    in_specs = [pl.BlockSpec((HW, Cin), lambda b: (b, 0))]
    if with_head:
        wh, bh = head
        operands += [wh, bh.reshape(1, -1)]
        in_specs += [pl.BlockSpec(wh.shape, lambda b: (0, 0)),
                     pl.BlockSpec((1, bh.shape[0]), lambda b: (0, 0))]
    operands += [w1, b1.reshape(1, -1), w2taps, b2.reshape(1, -1)]
    in_specs += [pl.BlockSpec(w1.shape, lambda b: (0, 0)),
                 pl.BlockSpec((1, Cmid), lambda b: (0, 0)),
                 pl.BlockSpec(w2taps.shape, lambda b: (0, 0, 0)),
                 pl.BlockSpec((1, Cout), lambda b: (0, 0))]

    kern = functools.partial(_bottleneck_kernel, H=H, W=W,
                             shortcut=shortcut, with_head=with_head)
    return pl.pallas_call(
        kern,
        out_shape=jax.ShapeDtypeStruct((M, Cout), jnp.float32),
        grid_spec=pltpu.PrefetchScalarGridSpec(
            num_scalar_prefetch=0,
            grid=(Nb,),
            in_specs=in_specs,
            out_specs=pl.BlockSpec((HW, Cout), lambda b: (b, 0)),
        ),
        compiler_params=pltpu.CompilerParams(
            dimension_semantics=("parallel",), vmem_limit_bytes=VMEM_LIMIT),
    )(*operands)


def _tail_kernel(y_ref, x_ref, w3_ref, b3_ref, w2_ref, b2_ref,
                 w4a_ref, w4b_ref, b4_ref, o_ref):
    # u1 = leaky(BN_top(cv3(y))), u2 = leaky(BN_bot(cv2(x)))  (BN folded in w/b)
    # out = leaky(cv4(concat(u1, u2))) computed without a concat:
    #       z @ W4 == u1 @ W4[:c_] + u2 @ W4[c_:]
    u1 = _leaky(jnp.dot(y_ref[...], w3_ref[...],
                        preferred_element_type=jnp.float32) + b3_ref[...])
    u2 = _leaky(jnp.dot(x_ref[...], w2_ref[...],
                        preferred_element_type=jnp.float32) + b2_ref[...])
    v = (jnp.dot(u1, w4a_ref[...], preferred_element_type=jnp.float32)
         + jnp.dot(u2, w4b_ref[...], preferred_element_type=jnp.float32)
         + b4_ref[...])
    o_ref[...] = _leaky(v)


def tail_fused(y, x, w3, b3, w2o, b2o, w4a, w4b, b4):
    M, c_ = y.shape
    c1 = x.shape[1]
    c2 = w4a.shape[1]
    tm = min(TM, M)
    return pl.pallas_call(
        _tail_kernel,
        out_shape=jax.ShapeDtypeStruct((M, c2), jnp.float32),
        grid_spec=pltpu.PrefetchScalarGridSpec(
            num_scalar_prefetch=0,
            grid=(pl.cdiv(M, tm),),
            in_specs=[
                pl.BlockSpec((tm, c_), lambda i: (i, 0)),
                pl.BlockSpec((tm, c1), lambda i: (i, 0)),
                pl.BlockSpec((c_, c_), lambda i: (0, 0)),
                pl.BlockSpec((1, c_), lambda i: (0, 0)),
                pl.BlockSpec((c1, c_), lambda i: (0, 0)),
                pl.BlockSpec((1, c_), lambda i: (0, 0)),
                pl.BlockSpec((c_, c2), lambda i: (0, 0)),
                pl.BlockSpec((c_, c2), lambda i: (0, 0)),
                pl.BlockSpec((1, c2), lambda i: (0, 0)),
            ],
            out_specs=pl.BlockSpec((tm, c2), lambda i: (i, 0)),
        ),
        compiler_params=pltpu.CompilerParams(
            dimension_semantics=("parallel",), vmem_limit_bytes=VMEM_LIMIT),
    )(y, x, w3, b3.reshape(1, -1), w2o, b2o.reshape(1, -1),
      w4a, w4b, b4.reshape(1, -1))


# ------------------------------ JAX-side glue -------------------------------

def w1x1_to_2d(w):
    """PyTorch 1x1 conv weight (Cout, Cin, 1, 1) -> (Cin, Cout)."""
    return jnp.transpose(w[:, :, 0, 0], (1, 0))


def w3x3_to_taps(w):
    """PyTorch 3x3 conv weight (Cout, Cin, 3, 3) -> (9, Cin, Cout), tap = kh*3+kw."""
    return jnp.transpose(w, (2, 3, 1, 0)).reshape(9, w.shape[1], w.shape[0])


def fold_conv_bn(conv, bn):
    """Fold Conv2d bias + eval-mode BatchNorm into (per-Cout scale, bias)."""
    s = bn['gamma'] / jnp.sqrt(bn['var'] + BN_EPS)
    b = conv['b'] if conv['b'] is not None else 0.0
    return s, s * (b - bn['mean']) + bn['beta']


def bottleneck_csp_pallas(x_nchw, P):
    Nb, c1, H, W = x_nchw.shape
    M = Nb * H * W
    x = jnp.transpose(x_nchw, (0, 2, 3, 1)).reshape(M, c1).astype(jnp.float32)

    # Outer cv1 = Conv(c1, c_, 1) + BN + LeakyReLU (BN scale folded into weights).
    s_h, b_h = fold_conv_bn(P['cv1']['conv'], P['cv1']['bn'])
    w_h = w1x1_to_2d(P['cv1']['conv']['w']) * s_h[None, :]
    c_ = w_h.shape[1]

    # m = Sequential(Bottleneck(c_, c_, shortcut, e=1.0) x n). The outer cv1 is
    # fused into the first bottleneck kernel, so its activation never hits HBM.
    if len(P['m']) == 0:
        y = fused_conv1x1(x, w_h, b_h, act=True)
    else:
        cur = x
        for idx, bp in enumerate(P['m']):
            s1, b1 = fold_conv_bn(bp['cv1']['conv'], bp['cv1']['bn'])
            w1 = w1x1_to_2d(bp['cv1']['conv']['w']) * s1[None, :]
            s2, b2 = fold_conv_bn(bp['cv2']['conv'], bp['cv2']['bn'])
            w2 = w3x3_to_taps(bp['cv2']['conv']['w']) * s2[None, None, :]
            head = (w_h, b_h) if idx == 0 else None
            cur = bottleneck_fused(cur, w1, b1, w2, b2, Nb=Nb, H=H, W=W,
                                   shortcut=P['shortcut'], head=head)
        y = cur

    # Tail: cv3(y), cv2(x), concat, BN(2c_), LeakyReLU, cv4 -- all in one kernel.
    s_bn = P['bn']['gamma'] / jnp.sqrt(P['bn']['var'] + BN_EPS)
    b_bn = P['bn']['beta'] - P['bn']['mean'] * s_bn
    w3 = w1x1_to_2d(P['cv3']['w']) * s_bn[None, :c_]
    w2o = w1x1_to_2d(P['cv2']['w']) * s_bn[None, c_:]
    s4, b4 = fold_conv_bn(P['cv4']['conv'], P['cv4']['bn'])
    w4 = w1x1_to_2d(P['cv4']['conv']['w']) * s4[None, :]
    out = tail_fused(y, x, w3, b_bn[:c_], w2o, b_bn[c_:], w4[:c_], w4[c_:], b4)

    c2 = out.shape[1]
    return jnp.transpose(out.reshape(Nb, H, W, c2), (0, 3, 1, 2))


# --------------------------- Pure-JAX reference ------------------------------

def conv2d_ref(x, w, b=None, pad=0):
    out = jax.lax.conv_general_dilated(
        x, w, window_strides=(1, 1), padding=[(pad, pad), (pad, pad)],
        dimension_numbers=('NCHW', 'OIHW', 'NCHW'))
    if b is not None:
        out = out + b[None, :, None, None]
    return out


def bn_ref(x, bn):
    s = bn['gamma'] / jnp.sqrt(bn['var'] + BN_EPS)
    return (x - bn['mean'][None, :, None, None]) * s[None, :, None, None] \
        + bn['beta'][None, :, None, None]


def leaky_ref(x):
    return jnp.where(x >= 0, x, NEG_SLOPE * x)


def conv_block_ref(x, blk, pad=0):
    return leaky_ref(bn_ref(conv2d_ref(x, blk['conv']['w'], blk['conv']['b'], pad),
                            blk['bn']))


def bottleneck_csp_ref(x, P):
    y = conv_block_ref(x, P['cv1'], 0)
    for bp in P['m']:
        t = conv_block_ref(y, bp['cv1'], 0)
        t = conv_block_ref(t, bp['cv2'], 1)
        y = y + t if P['shortcut'] else t
    y1 = conv2d_ref(y, P['cv3']['w'])
    y2 = conv2d_ref(x, P['cv2']['w'])
    cat = jnp.concatenate([y1, y2], axis=1)
    z = leaky_ref(bn_ref(cat, P['bn']))
    return conv_block_ref(z, P['cv4'], 0)


# ----------------------- Deterministic parameter init ------------------------

def init_conv(key, c_in, c_out, k, bias=True):
    kw, kb = jax.random.split(key)
    bound = 1.0 / np.sqrt(c_in * k * k)
    w = jax.random.uniform(kw, (c_out, c_in, k, k), minval=-bound, maxval=bound)
    b = (jax.random.uniform(kb, (c_out,), minval=-bound, maxval=bound)
         if bias else None)
    return {'w': w.astype(jnp.float32),
            'b': None if b is None else b.astype(jnp.float32)}


def init_bn(key, c):
    k1, k2, k3, k4 = jax.random.split(key, 4)
    return {
        'gamma': jax.random.uniform(k1, (c,), minval=0.5, maxval=1.5).astype(jnp.float32),
        'beta': (0.1 * jax.random.normal(k2, (c,))).astype(jnp.float32),
        'mean': (0.1 * jax.random.normal(k3, (c,))).astype(jnp.float32),
        'var': jax.random.uniform(k4, (c,), minval=0.5, maxval=1.5).astype(jnp.float32),
    }


def make_params(key, c1, c2, n, shortcut, e=0.5):
    c_ = int(c2 * e)
    keys = jax.random.split(key, 8 + 4 * max(n, 1))
    P = {
        'shortcut': shortcut,
        'cv1': {'conv': init_conv(keys[0], c1, c_, 1), 'bn': init_bn(keys[1], c_)},
        'cv2': init_conv(keys[2], c1, c_, 1, bias=False),
        'cv3': init_conv(keys[3], c_, c_, 1, bias=False),
        'cv4': {'conv': init_conv(keys[4], 2 * c_, c2, 1), 'bn': init_bn(keys[5], c2)},
        'bn': init_bn(keys[6], 2 * c_),
        'm': [],
    }
    kidx = 7
    for _ in range(n):
        P['m'].append({
            'cv1': {'conv': init_conv(keys[kidx], c_, c_, 1),
                    'bn': init_bn(keys[kidx + 1], c_)},
            'cv2': {'conv': init_conv(keys[kidx + 2], c_, c_, 3),
                    'bn': init_bn(keys[kidx + 3], c_)},
        })
        kidx += 4
    return P


if __name__ == "__main__":
    key = jax.random.PRNGKey(0)
    configs = [
        dict(c1=8, c2=8, n=1, shortcut=True),     # reference config
        dict(c1=16, c2=16, n=2, shortcut=False),  # multiple bottlenecks, no residual
        dict(c1=8, c2=8, n=0, shortcut=True),     # no bottlenecks -> standalone cv1
    ]
    for cfg in configs:
        key, kp, kx = jax.random.split(key, 3)
        P = make_params(kp, cfg['c1'], cfg['c2'], cfg['n'], cfg['shortcut'])
        x = jax.random.normal(kx, (2, cfg['c1'], 16, 16), dtype=jnp.float32)

        out = jax.block_until_ready(bottleneck_csp_pallas(x, P))
        ref = jax.block_until_ready(bottleneck_csp_ref(x, P))

        assert out.shape == (2, cfg['c2'], 16, 16)
        np.testing.assert_allclose(np.asarray(out), np.asarray(ref),
                                   atol=3e-4, rtol=3e-4)
    print("KERNEL_OK")
</pallas_src>

<mosaic_0001>
module attributes {stable_mosaic.version = 11 : i64} {
  func.func @_bottleneck_kernel(%arg0: i32, %arg1: memref<256x8xf32, #tpu.memory_space<vmem>>, %arg2: memref<8x4xf32, #tpu.memory_space<vmem>>, %arg3: memref<1x4xf32, #tpu.memory_space<vmem>>, %arg4: memref<4x4xf32, #tpu.memory_space<vmem>>, %arg5: memref<1x4xf32, #tpu.memory_space<vmem>>, %arg6: memref<9x4x4xf32, #tpu.memory_space<vmem>>, %arg7: memref<1x4xf32, #tpu.memory_space<vmem>>, %arg8: memref<256x4xf32, #tpu.memory_space<vmem>>) attributes {dimension_semantics = [#tpu.dimension_semantics<parallel>], iteration_bounds = array<i64: 2>, scalar_prefetch = 0 : i64, scratch_operands = 0 : i64, tpu.core_type = #tpu.core_type<tc>, window_params = [{transform_indices = @transform_0, window_bounds = array<i64: 256, 8>}, {pipeline_mode = #tpu.pipeline_mode<synchronous>, transform_indices = @transform_1, window_bounds = array<i64: 8, 4>}, {pipeline_mode = #tpu.pipeline_mode<synchronous>, transform_indices = @transform_2, window_bounds = array<i64: 1, 4>}, {pipeline_mode = #tpu.pipeline_mode<synchronous>, transform_indices = @transform_3, window_bounds = array<i64: 4, 4>}, {pipeline_mode = #tpu.pipeline_mode<synchronous>, transform_indices = @transform_4, window_bounds = array<i64: 1, 4>}, {pipeline_mode = #tpu.pipeline_mode<synchronous>, transform_indices = @transform_5, window_bounds = array<i64: 9, 4, 4>}, {pipeline_mode = #tpu.pipeline_mode<synchronous>, transform_indices = @transform_6, window_bounds = array<i64: 1, 4>}, {transform_indices = @transform_7, window_bounds = array<i64: 256, 4>}]} {
    %c0 = arith.constant 0 : index
    %c0_0 = arith.constant 0 : index
    %0 = vector.load %arg1[%c0, %c0_0] : memref<256x8xf32, #tpu.memory_space<vmem>>, vector<256x8xf32>
    %c0_1 = arith.constant 0 : index
    %c0_2 = arith.constant 0 : index
    %1 = vector.load %arg2[%c0_1, %c0_2] : memref<8x4xf32, #tpu.memory_space<vmem>>, vector<8x4xf32>
    %cst = arith.constant dense<0.000000e+00> : vector<256x4xf32>
    %2 = tpu.matmul %0, %1, %cst {dimension_numbers = #tpu.dot_dimension_numbers<[1], [0], [0], [1], [0, 0, 1, 1], [], []>} : vector<256x8xf32>, vector<8x4xf32>, vector<256x4xf32> -> vector<256x4xf32>
    %c0_3 = arith.constant 0 : index
    %c0_4 = arith.constant 0 : index
    %3 = vector.load %arg3[%c0_3, %c0_4] : memref<1x4xf32, #tpu.memory_space<vmem>>, vector<1x4xf32>
    %4 = vector.broadcast %3 : vector<1x4xf32> to vector<256x4xf32>
    %5 = arith.addf %2, %4 : vector<256x4xf32>
    %cst_5 = arith.constant 0.000000e+00 : f32
    %6 = vector.broadcast %cst_5 : f32 to vector<256x4xf32>
    %7 = arith.cmpf oge, %5, %6 : vector<256x4xf32>
    %cst_6 = arith.constant 1.000000e-01 : f32
    %8 = vector.broadcast %cst_6 : f32 to vector<256x4xf32>
    %9 = arith.mulf %8, %5 : vector<256x4xf32>
    %10 = arith.select %7, %5, %9 : vector<256x4xi1>, vector<256x4xf32>
    %c0_7 = arith.constant 0 : index
    %c0_8 = arith.constant 0 : index
    %11 = vector.load %arg4[%c0_7, %c0_8] : memref<4x4xf32, #tpu.memory_space<vmem>>, vector<4x4xf32>
    %cst_9 = arith.constant dense<0.000000e+00> : vector<256x4xf32>
    %12 = tpu.matmul %10, %11, %cst_9 {dimension_numbers = #tpu.dot_dimension_numbers<[1], [0], [0], [1], [0, 0, 1, 1], [], []>} : vector<256x4xf32>, vector<4x4xf32>, vector<256x4xf32> -> vector<256x4xf32>
    %c0_10 = arith.constant 0 : index
    %c0_11 = arith.constant 0 : index
    %13 = vector.load %arg5[%c0_10, %c0_11] : memref<1x4xf32, #tpu.memory_space<vmem>>, vector<1x4xf32>
    %14 = vector.broadcast %13 : vector<1x4xf32> to vector<256x4xf32>
    %15 = arith.addf %12, %14 : vector<256x4xf32>
    %cst_12 = arith.constant 0.000000e+00 : f32
    %16 = vector.broadcast %cst_12 : f32 to vector<256x4xf32>
    %17 = arith.cmpf oge, %15, %16 : vector<256x4xf32>
    %cst_13 = arith.constant 1.000000e-01 : f32
    %18 = vector.broadcast %cst_13 : f32 to vector<256x4xf32>
    %19 = arith.mulf %18, %15 : vector<256x4xf32>
    %20 = arith.select %17, %15, %19 : vector<256x4xi1>, vector<256x4xf32>
    %cst_14 = arith.constant 0.000000e+00 : f32
    %21 = vector.broadcast %cst_14 : f32 to vector<24x4xf32>
    %22 = tpu.concatenate %21, %20, %21 in 0 : vector<24x4xf32>, vector<256x4xf32>, vector<24x4xf32> -> vector<304x4xf32>
    %23 = tpu.iota {dimensions = array<i32: 0>} : vector<256x1xi32>
    %c16_i32 = arith.constant 16 : i32
    %c0_i32 = arith.constant 0 : i32
    %24 = arith.cmpi eq, %c16_i32, %c0_i32 : i32
    %c1_i32 = arith.constant 1 : i32
    %25 = arith.select %24, %c1_i32, %c16_i32 : i32
    %26 = vector.broadcast %25 : i32 to vector<256x1xi32>
    %27 = arith.remsi %23, %26 : vector<256x1xi32>
    %c0_i32_15 = arith.constant 0 : i32
    %28 = vector.broadcast %c0_i32_15 : i32 to vector<256x1xi32>
    %29 = arith.cmpi ne, %27, %28 : vector<256x1xi32>
    %c0_i32_16 = arith.constant 0 : i32
    %30 = vector.broadcast %c0_i32_16 : i32 to vector<256x1xi32>
    %31 = arith.cmpi slt, %27, %30 : vector<256x1xi32>
    %c0_i32_17 = arith.constant 0 : i32
    %32 = arith.cmpi slt, %25, %c0_i32_17 : i32
    %33 = vector.broadcast %32 : i1 to vector<256x1xi1>
    %34 = vector.broadcast %33 : vector<256x1xi1> to vector<256x1xi1>
    %35 = arith.xori %31, %34 : vector<256x1xi1>
    %36 = arith.andi %35, %29 : vector<256x1xi1>
    %37 = vector.broadcast %25 : i32 to vector<256x1xi32>
    %38 = arith.addi %27, %37 : vector<256x1xi32>
    %39 = arith.select %36, %38, %27 : vector<256x1xi1>, vector<256x1xi32>
    %c0_i32_18 = arith.constant 0 : i32
    %40 = vector.broadcast %c0_i32_18 : i32 to vector<256x1xi32>
    %41 = arith.cmpi ne, %39, %40 : vector<256x1xi32>
    %c15_i32 = arith.constant 15 : i32
    %42 = vector.broadcast %c15_i32 : i32 to vector<256x1xi32>
    %43 = arith.cmpi ne, %39, %42 : vector<256x1xi32>
    %cst_19 = arith.constant 0.000000e+00 : f32
    %44 = vector.broadcast %cst_19 : f32 to vector<256x4xf32>
    %45 = vector.extract_strided_slice %22 {offsets = [7, 0], sizes = [256, 4], strides = [1, 1]} : vector<304x4xf32> to vector<256x4xf32>
    %cst_20 = arith.constant 0.000000e+00 : f32
    %46 = vector.shape_cast %41 : vector<256x1xi1> to vector<256x1xi1>
    %47 = vector.broadcast %46 : vector<256x1xi1> to vector<256x4xi1>
    %48 = vector.broadcast %cst_20 : f32 to vector<256x4xf32>
    %49 = arith.select %47, %45, %48 : vector<256x4xi1>, vector<256x4xf32>
    %c0_21 = arith.constant 0 : index
    %c0_22 = arith.constant 0 : index
    %c0_23 = arith.constant 0 : index
    %50 = vector.load %arg6[%c0_21, %c0_22, %c0_23] : memref<9x4x4xf32, #tpu.memory_space<vmem>>, vector<1x4x4xf32>
    %51 = vector.shape_cast %50 : vector<1x4x4xf32> to vector<4x4xf32>
    %cst_24 = arith.constant dense<0.000000e+00> : vector<256x4xf32>
    %52 = tpu.matmul %49, %51, %cst_24 {dimension_numbers = #tpu.dot_dimension_numbers<[1], [0], [0], [1], [0, 0, 1, 1], [], []>} : vector<256x4xf32>, vector<4x4xf32>, vector<256x4xf32> -> vector<256x4xf32>
    %53 = arith.addf %44, %52 : vector<256x4xf32>
    %54 = vector.extract_strided_slice %22 {offsets = [8, 0], sizes = [256, 4], strides = [1, 1]} : vector<304x4xf32> to vector<256x4xf32>
    %c1 = arith.constant 1 : index
    %c0_25 = arith.constant 0 : index
    %c0_26 = arith.constant 0 : index
    %55 = vector.load %arg6[%c1, %c0_25, %c0_26] : memref<9x4x4xf32, #tpu.memory_space<vmem>>, vector<1x4x4xf32>
    %56 = vector.shape_cast %55 : vector<1x4x4xf32> to vector<4x4xf32>
    %cst_27 = arith.constant dense<0.000000e+00> : vector<256x4xf32>
    %57 = tpu.matmul %54, %56, %cst_27 {dimension_numbers = #tpu.dot_dimension_numbers<[1], [0], [0], [1], [0, 0, 1, 1], [], []>} : vector<256x4xf32>, vector<4x4xf32>, vector<256x4xf32> -> vector<256x4xf32>
    %58 = arith.addf %53, %57 : vector<256x4xf32>
    %59 = vector.extract_strided_slice %22 {offsets = [9, 0], sizes = [256, 4], strides = [1, 1]} : vector<304x4xf32> to vector<256x4xf32>
    %cst_28 = arith.constant 0.000000e+00 : f32
    %60 = vector.shape_cast %43 : vector<256x1xi1> to vector<256x1xi1>
    %61 = vector.broadcast %60 : vector<256x1xi1> to vector<256x4xi1>
    %62 = vector.broadcast %cst_28 : f32 to vector<256x4xf32>
    %63 = arith.select %61, %59, %62 : vector<256x4xi1>, vector<256x4xf32>
    %c2 = arith.constant 2 : index
    %c0_29 = arith.constant 0 : index
    %c0_30 = arith.constant 0 : index
    %64 = vector.load %arg6[%c2, %c0_29, %c0_30] : memref<9x4x4xf32, #tpu.memory_space<vmem>>, vector<1x4x4xf32>
    %65 = vector.shape_cast %64 : vector<1x4x4xf32> to vector<4x4xf32>
    %cst_31 = arith.constant dense<0.000000e+00> : vector<256x4xf32>
    %66 = tpu.matmul %63, %65, %cst_31 {dimension_numbers = #tpu.dot_dimension_numbers<[1], [0], [0], [1], [0, 0, 1, 1], [], []>} : vector<256x4xf32>, vector<4x4xf32>, vector<256x4xf32> -> vector<256x4xf32>
    %67 = arith.addf %58, %66 : vector<256x4xf32>
    %68 = vector.extract_strided_slice %22 {offsets = [23, 0], sizes = [256, 4], strides = [1, 1]} : vector<304x4xf32> to vector<256x4xf32>
    %cst_32 = arith.constant 0.000000e+00 : f32
    %69 = vector.shape_cast %41 : vector<256x1xi1> to vector<256x1xi1>
    %70 = vector.broadcast %69 : vector<256x1xi1> to vector<256x4xi1>
    %71 = vector.broadcast %cst_32 : f32 to vector<256x4xf32>
    %72 = arith.select %70, %68, %71 : vector<256x4xi1>, vector<256x4xf32>
    %c3 = arith.constant 3 : index
    %c0_33 = arith.constant 0 : index
    %c0_34 = arith.constant 0 : index
    %73 = vector.load %arg6[%c3, %c0_33, %c0_34] : memref<9x4x4xf32, #tpu.memory_space<vmem>>, vector<1x4x4xf32>
    %74 = vector.shape_cast %73 : vector<1x4x4xf32> to vector<4x4xf32>
    %cst_35 = arith.constant dense<0.000000e+00> : vector<256x4xf32>
    %75 = tpu.matmul %72, %74, %cst_35 {dimension_numbers = #tpu.dot_dimension_numbers<[1], [0], [0], [1], [0, 0, 1, 1], [], []>} : vector<256x4xf32>, vector<4x4xf32>, vector<256x4xf32> -> vector<256x4xf32>
    %76 = arith.addf %67, %75 : vector<256x4xf32>
    %77 = vector.extract_strided_slice %22 {offsets = [24, 0], sizes = [256, 4], strides = [1, 1]} : vector<304x4xf32> to vector<256x4xf32>
    %c4 = arith.constant 4 : index
    %c0_36 = arith.constant 0 : index
    %c0_37 = arith.constant 0 : index
    %78 = vector.load %arg6[%c4, %c0_36, %c0_37] : memref<9x4x4xf32, #tpu.memory_space<vmem>>, vector<1x4x4xf32>
    %79 = vector.shape_cast %78 : vector<1x4x4xf32> to vector<4x4xf32>
    %cst_38 = arith.constant dense<0.000000e+00> : vector<256x4xf32>
    %80 = tpu.matmul %77, %79, %cst_38 {dimension_numbers = #tpu.dot_dimension_numbers<[1], [0], [0], [1], [0, 0, 1, 1], [], []>} : vector<256x4xf32>, vector<4x4xf32>, vector<256x4xf32> -> vector<256x4xf32>
    %81 = arith.addf %76, %80 : vector<256x4xf32>
    %82 = vector.extract_strided_slice %22 {offsets = [25, 0], sizes = [256, 4], strides = [1, 1]} : vector<304x4xf32> to vector<256x4xf32>
    %cst_39 = arith.constant 0.000000e+00 : f32
    %83 = vector.shape_cast %43 : vector<256x1xi1> to vector<256x1xi1>
    %84 = vector.broadcast %83 : vector<256x1xi1> to vector<256x4xi1>
    %85 = vector.broadcast %cst_39 : f32 to vector<256x4xf32>
    %86 = arith.select %84, %82, %85 : vector<256x4xi1>, vector<256x4xf32>
    %c5 = arith.constant 5 : index
    %c0_40 = arith.constant 0 : index
    %c0_41 = arith.constant 0 : index
    %87 = vector.load %arg6[%c5, %c0_40, %c0_41] : memref<9x4x4xf32, #tpu.memory_space<vmem>>, vector<1x4x4xf32>
    %88 = vector.shape_cast %87 : vector<1x4x4xf32> to vector<4x4xf32>
    %cst_42 = arith.constant dense<0.000000e+00> : vector<256x4xf32>
    %89 = tpu.matmul %86, %88, %cst_42 {dimension_numbers = #tpu.dot_dimension_numbers<[1], [0], [0], [1], [0, 0, 1, 1], [], []>} : vector<256x4xf32>, vector<4x4xf32>, vector<256x4xf32> -> vector<256x4xf32>
    %90 = arith.addf %81, %89 : vector<256x4xf32>
    %91 = vector.extract_strided_slice %22 {offsets = [39, 0], sizes = [256, 4], strides = [1, 1]} : vector<304x4xf32> to vector<256x4xf32>
    %cst_43 = arith.constant 0.000000e+00 : f32
    %92 = vector.shape_cast %41 : vector<256x1xi1> to vector<256x1xi1>
    %93 = vector.broadcast %92 : vector<256x1xi1> to vector<256x4xi1>
    %94 = vector.broadcast %cst_43 : f32 to vector<256x4xf32>
    %95 = arith.select %93, %91, %94 : vector<256x4xi1>, vector<256x4xf32>
    %c6 = arith.constant 6 : index
    %c0_44 = arith.constant 0 : index
    %c0_45 = arith.constant 0 : index
    %96 = vector.load %arg6[%c6, %c0_44, %c0_45] : memref<9x4x4xf32, #tpu.memory_space<vmem>>, vector<1x4x4xf32>
    %97 = vector.shape_cast %96 : vector<1x4x4xf32> to vector<4x4xf32>
    %cst_46 = arith.constant dense<0.000000e+00> : vector<256x4xf32>
    %98 = tpu.matmul %95, %97, %cst_46 {dimension_numbers = #tpu.dot_dimension_numbers<[1], [0], [0], [1], [0, 0, 1, 1], [], []>} : vector<256x4xf32>, vector<4x4xf32>, vector<256x4xf32> -> vector<256x4xf32>
    %99 = arith.addf %90, %98 : vector<256x4xf32>
    %100 = vector.extract_strided_slice %22 {offsets = [40, 0], sizes = [256, 4], strides = [1, 1]} : vector<304x4xf32> to vector<256x4xf32>
    %c7 = arith.constant 7 : index
    %c0_47 = arith.constant 0 : index
    %c0_48 = arith.constant 0 : index
    %101 = vector.load %arg6[%c7, %c0_47, %c0_48] : memref<9x4x4xf32, #tpu.memory_space<vmem>>, vector<1x4x4xf32>
    %102 = vector.shape_cast %101 : vector<1x4x4xf32> to vector<4x4xf32>
    %cst_49 = arith.constant dense<0.000000e+00> : vector<256x4xf32>
    %103 = tpu.matmul %100, %102, %cst_49 {dimension_numbers = #tpu.dot_dimension_numbers<[1], [0], [0], [1], [0, 0, 1, 1], [], []>} : vector<256x4xf32>, vector<4x4xf32>, vector<256x4xf32> -> vector<256x4xf32>
    %104 = arith.addf %99, %103 : vector<256x4xf32>
    %105 = vector.extract_strided_slice %22 {offsets = [41, 0], sizes = [256, 4], strides = [1, 1]} : vector<304x4xf32> to vector<256x4xf32>
    %cst_50 = arith.constant 0.000000e+00 : f32
    %106 = vector.shape_cast %43 : vector<256x1xi1> to vector<256x1xi1>
    %107 = vector.broadcast %106 : vector<256x1xi1> to vector<256x4xi1>
    %108 = vector.broadcast %cst_50 : f32 to vector<256x4xf32>
    %109 = arith.select %107, %105, %108 : vector<256x4xi1>, vector<256x4xf32>
    %c8 = arith.constant 8 : index
    %c0_51 = arith.constant 0 : index
    %c0_52 = arith.constant 0 : index
    %110 = vector.load %arg6[%c8, %c0_51, %c0_52] : memref<9x4x4xf32, #tpu.memory_space<vmem>>, vector<1x4x4xf32>
    %111 = vector.shape_cast %110 : vector<1x4x4xf32> to vector<4x4xf32>
    %cst_53 = arith.constant dense<0.000000e+00> : vector<256x4xf32>
    %112 = tpu.matmul %109, %111, %cst_53 {dimension_numbers = #tpu.dot_dimension_numbers<[1], [0], [0], [1], [0, 0, 1, 1], [], []>} : vector<256x4xf32>, vector<4x4xf32>, vector<256x4xf32> -> vector<256x4xf32>
    %113 = arith.addf %104, %112 : vector<256x4xf32>
    %c0_54 = arith.constant 0 : index
    %c0_55 = arith.constant 0 : index
    %114 = vector.load %arg7[%c0_54, %c0_55] : memref<1x4xf32, #tpu.memory_space<vmem>>, vector<1x4xf32>
    %115 = vector.broadcast %114 : vector<1x4xf32> to vector<256x4xf32>
    %116 = arith.addf %113, %115 : vector<256x4xf32>
    %cst_56 = arith.constant 0.000000e+00 : f32
    %117 = vector.broadcast %cst_56 : f32 to vector<256x4xf32>
    %118 = arith.cmpf oge, %116, %117 : vector<256x4xf32>
    %cst_57 = arith.constant 1.000000e-01 : f32
    %119 = vector.broadcast %cst_57 : f32 to vector<256x4xf32>
    %120 = arith.mulf %119, %116 : vector<256x4xf32>
    %121 = arith.select %118, %116, %120 : vector<256x4xi1>, vector<256x4xf32>
    %122 = arith.addf %121, %10 : vector<256x4xf32>
    %c0_58 = arith.constant 0 : index
    %c0_59 = arith.constant 0 : index
    %123 = vector.load %arg8[%c0_58, %c0_59] : memref<256x4xf32, #tpu.memory_space<vmem>>, vector<256x4xf32>
    tpu.vector_store %arg8[%c0_58, %c0_59], %122 {strides = array<i32>} : memref<256x4xf32, #tpu.memory_space<vmem>>, vector<256x4xf32>,
    return
  }
  func.func @transform_0(%arg0: i32) -> (i32, i32) {
    %c0_i32 = arith.constant 0 : i32
    %c0_i32_0 = arith.constant 0 : i32
    return %arg0, %c0_i32 : i32, i32
  }
  func.func @transform_1(%arg0: i32) -> (i32, i32) {
    %c0_i32 = arith.constant 0 : i32
    %c0_i32_0 = arith.constant 0 : i32
    %c0_i32_1 = arith.constant 0 : i32
    return %c0_i32, %c0_i32_0 : i32, i32
  }
  func.func @transform_2(%arg0: i32) -> (i32, i32) {
    %c0_i32 = arith.constant 0 : i32
    %c0_i32_0 = arith.constant 0 : i32
    %c0_i32_1 = arith.constant 0 : i32
    return %c0_i32, %c0_i32_0 : i32, i32
  }
  func.func @transform_3(%arg0: i32) -> (i32, i32) {
    %c0_i32 = arith.constant 0 : i32
    %c0_i32_0 = arith.constant 0 : i32
    %c0_i32_1 = arith.constant 0 : i32
    return %c0_i32, %c0_i32_0 : i32, i32
  }
  func.func @transform_4(%arg0: i32) -> (i32, i32) {
    %c0_i32 = arith.constant 0 : i32
    %c0_i32_0 = arith.constant 0 : i32
    %c0_i32_1 = arith.constant 0 : i32
    return %c0_i32, %c0_i32_0 : i32, i32
  }
  func.func @transform_5(%arg0: i32) -> (i32, i32, i32) {
    %c0_i32 = arith.constant 0 : i32
    %c0_i32_0 = arith.constant 0 : i32
    %c0_i32_1 = arith.constant 0 : i32
    %c0_i32_2 = arith.constant 0 : i32
    return %c0_i32, %c0_i32_0, %c0_i32_1 : i32, i32, i32
  }
  func.func @transform_6(%arg0: i32) -> (i32, i32) {
    %c0_i32 = arith.constant 0 : i32
    %c0_i32_0 = arith.constant 0 : i32
    %c0_i32_1 = arith.constant 0 : i32
    return %c0_i32, %c0_i32_0 : i32, i32
  }
  func.func @transform_7(%arg0: i32) -> (i32, i32) {
    %c0_i32 = arith.constant 0 : i32
    %c0_i32_0 = arith.constant 0 : i32
    return %arg0, %c0_i32 : i32, i32
  }
}

</mosaic_0001>

<llo_original>
// kernel: tpu_custom_call.1
$region0: #{tpu_custom_call.1}
  #allocation0 [shape = 'u32[]', space=smem, size = 0x4, offset = 0x4, fixed_abs, tag = 'smem constant byte address 0x4 - core index']
  #allocation1 [shape = 'u32[72,128]{1,0:T(1,128)}', space=vmem, size = 0x9000, scoped, tag = 'internal scratch']
  %s0 = inlined_call_operand.vmem [shape: f32[512,8], index: 0, kind: input, shape index: {}]
  %s1 = inlined_call_operand.vmem [shape: f32[8,4], index: 1, kind: input, shape index: {}]
  %s2 = inlined_call_operand.vmem [shape: f32[1,4], index: 2, kind: input, shape index: {}]
  %s3 = inlined_call_operand.vmem [shape: f32[4,4], index: 3, kind: input, shape index: {}]
  %s4 = inlined_call_operand.vmem [shape: f32[1,4], index: 4, kind: input, shape index: {}]
  %s5 = inlined_call_operand.vmem [shape: f32[9,4,4], index: 5, kind: input, shape index: {}]
  %s6 = inlined_call_operand.vmem [shape: f32[1,4], index: 6, kind: input, shape index: {}]
  %s7 = inlined_call_operand.vmem [shape: f32[512,4], index: 7, kind: output, shape index: {}]
  %s8 = sld [smem:[#allocation0]]
  $region61: #{tpu_custom_call.1} parent=0
    _
  %s10 = ssub.s32 1, %s8
  %s11 = scalar_select 0, %s10, %s8
  loop: start=0, step=1, limit=4
  $region2: #{tpu_custom_call.1} parent=0 // loop_pre_header
    _
  $region3: #{tpu_custom_call.1} parent=0 // loop_header
    %s13 = sphi 0, %s17
    %p14 = scmp.ge.s32.totalorder %s13, 4
    %s23 = sphi 0, %s25
    %s26 = sphi 0, %s23
    %s27 = sphi 0, %s26
    %s43 = sphi 0, %s27
    %s47 = sphi 0, %s47
    %s49 = sphi 0, %s47
    %s50 = sphi 0, %s49
    %s64 = sphi 0, %s50
    %s68 = sphi 0, %s68
    %s70 = sphi 0, %s68
    %s71 = sphi 0, %s70
    %s85 = sphi 0, %s71
    %s89 = sphi 0, %s89
    %s91 = sphi 0, %s89
    %s92 = sphi 0, %s91
    %s106 = sphi 0, %s92
    %s110 = sphi 0, %s110
    %s112 = sphi 0, %s110
    %s113 = sphi 0, %s112
    %s127 = sphi 0, %s113
    %s131 = sphi 0, %s131
    %s133 = sphi 0, %s131
    %s134 = sphi 0, %s133
    %s148 = sphi 0, %s134
    %s152 = sphi 0, %s152
    %s154 = sphi 0, %s152
    %s155 = sphi 0, %s154
    %s169 = sphi 0, %s155
    %s175 = sphi 0, %s177
    %s178 = sphi 0, %s175
    %s179 = sphi 0, %s178
    %s195 = sphi 0, %s179
  $region4: #{tpu_custom_call.1} parent=0 // loop_header_branch
    %16 = sbr.rel (%p14) target = $region8
  $region5: #{tpu_custom_call.1} parent=0 // loop_body
    %s18 = ssub.s32 %s13, 1
    %s19 = ssub.s32 %s13, 2
    %s20 = sadd.s32 %s13, 1
    %s21 = ssub.s32 %s13, %s20
    %p22 = scmp.eq.s32.totalorder %s21, 0
    %s24 = sadd.s32 %s23, 1
    %s25 = scalar_select %p22, %s23, %s24
    %p28 = pneg %p22
    %p29 = scmp.eq.s32.totalorder %s13, 1
    %p30 = por %p28, %p29
    %p31 = scmp.ne.s32.totalorder %s23, %s26
    %p32 = scmp.eq.s32.totalorder %s13, 0
    %p33 = por %p31, %p32
    %p34 = scmp.ne.s32.totalorder %s23, %s26
    %p35 = scmp.eq.s32.totalorder %s18, 1
    %p36 = por %p34, %p35
    %p37 = scmp.ne.s32.totalorder %s26, %s27
    %p38 = scmp.eq.s32.totalorder %s18, 0
    %p39 = por %p37, %p38
    %p40 = scmp.ne.s32.totalorder %s26, %s27
    %p41 = scmp.eq.s32.totalorder %s19, 1
    %p42 = por %p40, %p41
    %p44 = scmp.ne.s32.totalorder %s27, %s43
    %p45 = scmp.eq.s32.totalorder %s19, 0
    %p46 = por %p44, %p45
    %s48 = sadd.s32 %s47, 1
    %p51 = scmp.eq.s32.totalorder %s13, 1
    %p52 = scmp.ne.s32.totalorder %s47, %s49
    %p53 = scmp.eq.s32.totalorder %s13, 0
    %p54 = por %p52, %p53
    %p55 = scmp.ne.s32.totalorder %s47, %s49
    %p56 = scmp.eq.s32.totalorder %s18, 1
    %p57 = por %p55, %p56
    %p58 = scmp.ne.s32.totalorder %s49, %s50
    %p59 = scmp.eq.s32.totalorder %s18, 0
    %p60 = por %p58, %p59
    %p61 = scmp.ne.s32.totalorder %s49, %s50
    %p62 = scmp.eq.s32.totalorder %s19, 1
    %p63 = por %p61, %p62
    %p65 = scmp.ne.s32.totalorder %s50, %s64
    %p66 = scmp.eq.s32.totalorder %s19, 0
    %p67 = por %p65, %p66
    %s69 = sadd.s32 %s68, 1
    %p72 = scmp.eq.s32.totalorder %s13, 1
    %p73 = scmp.ne.s32.totalorder %s68, %s70
    %p74 = scmp.eq.s32.totalorder %s13, 0
    %p75 = por %p73, %p74
    %p76 = scmp.ne.s32.totalorder %s68, %s70
    %p77 = scmp.eq.s32.totalorder %s18, 1
    %p78 = por %p76, %p77
    %p79 = scmp.ne.s32.totalorder %s70, %s71
    %p80 = scmp.eq.s32.totalorder %s18, 0
    %p81 = por %p79, %p80
    %p82 = scmp.ne.s32.totalorder %s70, %s71
    %p83 = scmp.eq.s32.totalorder %s19, 1
    %p84 = por %p82, %p83
    %p86 = scmp.ne.s32.totalorder %s71, %s85
    %p87 = scmp.eq.s32.totalorder %s19, 0
    %p88 = por %p86, %p87
    %s90 = sadd.s32 %s89, 1
    %p93 = scmp.eq.s32.totalorder %s13, 1
    %p94 = scmp.ne.s32.totalorder %s89, %s91
    %p95 = scmp.eq.s32.totalorder %s13, 0
    %p96 = por %p94, %p95
    %p97 = scmp.ne.s32.totalorder %s89, %s91
    %p98 = scmp.eq.s32.totalorder %s18, 1
    %p99 = por %p97, %p98
    %p100 = scmp.ne.s32.totalorder %s91, %s92
    %p101 = scmp.eq.s32.totalorder %s18, 0
    %p102 = por %p100, %p101
    %p103 = scmp.ne.s32.totalorder %s91, %s92
    %p104 = scmp.eq.s32.totalorder %s19, 1
    %p105 = por %p103, %p104
    %p107 = scmp.ne.s32.totalorder %s92, %s106
    %p108 = scmp.eq.s32.totalorder %s19, 0
    %p109 = por %p107, %p108
    %s111 = sadd.s32 %s110, 1
    %p114 = scmp.eq.s32.totalorder %s13, 1
    %p115 = scmp.ne.s32.totalorder %s110, %s112
    %p116 = scmp.eq.s32.totalorder %s13, 0
    %p117 = por %p115, %p116
    %p118 = scmp.ne.s32.totalorder %s110, %s112
    %p119 = scmp.eq.s32.totalorder %s18, 1
    %p120 = por %p118, %p119
    %p121 = scmp.ne.s32.totalorder %s112, %s113
    %p122 = scmp.eq.s32.totalorder %s18, 0
    %p123 = por %p121, %p122
    %p124 = scmp.ne.s32.totalorder %s112, %s113
    %p125 = scmp.eq.s32.totalorder %s19, 1
    %p126 = por %p124, %p125
    %p128 = scmp.ne.s32.totalorder %s113, %s127
    %p129 = scmp.eq.s32.totalorder %s19, 0
    %p130 = por %p128, %p129
    %s132 = sadd.s32 %s131, 1
    %p135 = scmp.eq.s32.totalorder %s13, 1
    %p136 = scmp.ne.s32.totalorder %s131, %s133
    %p137 = scmp.eq.s32.totalorder %s13, 0
    %p138 = por %p136, %p137
    %p139 = scmp.ne.s32.totalorder %s131, %s133
    %p140 = scmp.eq.s32.totalorder %s18, 1
    %p141 = por %p139, %p140
    %p142 = scmp.ne.s32.totalorder %s133, %s134
    %p143 = scmp.eq.s32.totalorder %s18, 0
    %p144 = por %p142, %p143
    %p145 = scmp.ne.s32.totalorder %s133, %s134
    %p146 = scmp.eq.s32.totalorder %s19, 1
    %p147 = por %p145, %p146
    %p149 = scmp.ne.s32.totalorder %s134, %s148
    %p150 = scmp.eq.s32.totalorder %s19, 0
    %p151 = por %p149, %p150
    %s153 = sadd.s32 %s152, 1
    %p156 = scmp.eq.s32.totalorder %s13, 1
    %p157 = scmp.ne.s32.totalorder %s152, %s154
    %p158 = scmp.eq.s32.totalorder %s13, 0
    %p159 = por %p157, %p158
    %p160 = scmp.ne.s32.totalorder %s152, %s154
    %p161 = scmp.eq.s32.totalorder %s18, 1
    %p162 = por %p160, %p161
    %p163 = scmp.ne.s32.totalorder %s154, %s155
    %p164 = scmp.eq.s32.totalorder %s18, 0
    %p165 = por %p163, %p164
    %p166 = scmp.ne.s32.totalorder %s154, %s155
    %p167 = scmp.eq.s32.totalorder %s19, 1
    %p168 = por %p166, %p167
    %p170 = scmp.ne.s32.totalorder %s155, %s169
    %p171 = scmp.eq.s32.totalorder %s19, 0
    %p172 = por %p170, %p171
    %s173 = ssub.s32 %s13, %s20
    %p174 = scmp.eq.s32.totalorder %s173, 0
    %s176 = sadd.s32 %s175, 1
    %s177 = scalar_select %p174, %s175, %s176
    %p180 = pneg %p174
    %p181 = scmp.eq.s32.totalorder %s13, 1
    %p182 = por %p180, %p181
    %p183 = scmp.ne.s32.totalorder %s175, %s178
    %p184 = scmp.eq.s32.totalorder %s13, 0
    %p185 = por %p183, %p184
    %p186 = scmp.ne.s32.totalorder %s175, %s178
    %p187 = scmp.eq.s32.totalorder %s18, 1
    %p188 = por %p186, %p187
    %p189 = scmp.ne.s32.totalorder %s178, %s179
    %p190 = scmp.eq.s32.totalorder %s18, 0
    %p191 = por %p189, %p190
    %p192 = scmp.ne.s32.totalorder %s178, %s179
    %p193 = scmp.eq.s32.totalorder %s19, 1
    %p194 = por %p192, %p193
    %p196 = scmp.ne.s32.totalorder %s179, %s195
    %p197 = scmp.eq.s32.totalorder %s19, 0
    %p198 = por %p196, %p197
    %p199 = scmp.le.s32.totalorder 1, %s13
    %p200 = scmp.lt.s32.totalorder %s13, 3
    %p201 = pnand %p199, %p200
    %p202 = pneg %p201
    // Predicated region
    $region9: #{tpu_custom_call.1} parent=5 // pred_check
      _
    $region10: #{tpu_custom_call.1} parent=5 // pred_check_branch
      %204 = sbr.rel (%p201) target = $region12
    $region11: #{tpu_custom_call.1} parent=5 // pred_region
      %s205 = ssub.s32 %s13, 1
      // Predicated region
      $region13: #{tpu_custom_call.1} parent=11 // pred_check
        %p206 = pneg %p60
      $region14: #{tpu_custom_call.1} parent=11 // pred_check_branch
        %208 = sbr.rel (%p206) target = $region16
      $region15: #{tpu_custom_call.1} parent=11 // pred_region
        _
      $region16: #{tpu_custom_call.1} parent=11 // pred_fallthru
        _
      // Predicated region
      $region17: #{tpu_custom_call.1} parent=11 // pred_check
        %p209 = pneg %p81
      $region18: #{tpu_custom_call.1} parent=11 // pred_check_branch
        %211 = sbr.rel (%p209) target = $region20
      $region19: #{tpu_custom_call.1} parent=11 // pred_region
        _
      $region20: #{tpu_custom_call.1} parent=11 // pred_fallthru
        _
      // Predicated region
      $region21: #{tpu_custom_call.1} parent=11 // pred_check
        %p212 = pneg %p102
      $region22: #{tpu_custom_call.1} parent=11 // pred_check_branch
        %214 = sbr.rel (%p212) target = $region24
      $region23: #{tpu_custom_call.1} parent=11 // pred_region
        _
      $region24: #{tpu_custom_call.1} parent=11 // pred_fallthru
        _
      // Predicated region
      $region25: #{tpu_custom_call.1} parent=11 // pred_check
        %p215 = pneg %p123
      $region26: #{tpu_custom_call.1} parent=11 // pred_check_branch
        %217 = sbr.rel (%p215) target = $region28
      $region27: #{tpu_custom_call.1} parent=11 // pred_region
        _
      $region28: #{tpu_custom_call.1} parent=11 // pred_fallthru
        _
      // Predicated region
      $region29: #{tpu_custom_call.1} parent=11 // pred_check
        %p218 = pneg %p144
      $region30: #{tpu_custom_call.1} parent=11 // pred_check_branch
        %220 = sbr.rel (%p218) target = $region32
      $region31: #{tpu_custom_call.1} parent=11 // pred_region
        _
      $region32: #{tpu_custom_call.1} parent=11 // pred_fallthru
        _
      // Predicated region
      $region33: #{tpu_custom_call.1} parent=11 // pred_check
        %p221 = pneg %p165
      $region34: #{tpu_custom_call.1} parent=11 // pred_check_branch
        %223 = sbr.rel (%p221) target = $region36
      $region35: #{tpu_custom_call.1} parent=11 // pred_region
        _
      $region36: #{tpu_custom_call.1} parent=11 // pred_fallthru
        _
    $region12: #{tpu_custom_call.1} parent=5 // pred_fallthru
      _
    %p224 = scmp.lt.s32.totalorder %s13, 2
    // Predicated region
    $region37: #{tpu_custom_call.1} parent=5 // pred_check
      %p225 = pneg %p224
    $region38: #{tpu_custom_call.1} parent=5 // pred_check_branch
      %227 = sbr.rel (%p225) target = $region40
    $region39: #{tpu_custom_call.1} parent=5 // pred_region
      // Predicated region
      $region41: #{tpu_custom_call.1} parent=39 // pred_check
        %p228 = pneg %p33
      $region42: #{tpu_custom_call.1} parent=39 // pred_check_branch
        %230 = sbr.rel (%p228) target = $region44
      $region43: #{tpu_custom_call.1} parent=39 // pred_region
        %s231 = smul.u32 32, %s13
        %p232 = scmp.lt.s32.totalorder %s231, 63
        %s233 = scalar_select %p232, %s231, 63
        %s234 = smul.addr %s233, 8
        %s235 = scalar_lea.vmem %s0, %s234
        %s236 = smul.u32 32, %s13
      $region44: #{tpu_custom_call.1} parent=39 // pred_fallthru
        _
    $region40: #{tpu_custom_call.1} parent=5 // pred_fallthru
      _
    %p237 = scmp.le.s32.totalorder 1, %s13
    %p238 = scmp.lt.s32.totalorder %s13, 3
    %p239 = pnand %p237, %p238
    %p240 = pneg %p239
    // Predicated region
    $region45: #{tpu_custom_call.1} parent=5 // pred_check
      _
    $region46: #{tpu_custom_call.1} parent=5 // pred_check_branch
      %242 = sbr.rel (%p239) target = $region48
    $region47: #{tpu_custom_call.1} parent=5 // pred_region
      %s243 = ssub.s32 %s13, 1
      %s244 = smul.u32 32, %s18
      %p245 = scmp.lt.s32.totalorder %s244, 63
      %s246 = scalar_select %p245, %s244, 63
      %s247 = smul.addr %s246, 8
      %s248 = scalar_lea.vmem %s0, %s247
      %p249 = pneg %p39
      %p250 = pneg %p36
      %p251 = pneg %p60
      %p252 = pneg %p57
      %p253 = pneg %p81
      %p254 = pneg %p78
      %p255 = pneg %p102
      %p256 = pneg %p99
      %p257 = pneg %p123
      %p258 = pneg %p120
      %p259 = pneg %p144
      %p260 = pneg %p141
      %p261 = pneg %p165
      %p262 = pneg %p162
      %p263 = pneg %p191
      %p264 = pneg %p188
      %s265 = smul.u32 32, %s18
      %p266 = scmp.lt.s32.totalorder %s265, 63
      %s267 = scalar_select %p266, %s265, 63
      %s268 = smul.addr %s267, 8
      %s269 = scalar_lea.vmem %s7, %s268
      %s270 = smul.u32 32, %s18
      %p271 = scmp.lt.s32.totalorder %s270, 63
      %s272 = scalar_select %p271, %s270, 63
      %s273 = smul.addr %s272, 8
      %s274 = scalar_lea.vmem %s0, %s273
      %s275 = smul.u32 32, %s18
      %s276 = smul.u32 32, %s18
      %p277 = scmp.lt.s32.totalorder %s276, 63
      %s278 = scalar_select %p277, %s276, 63
      %s279 = smul.addr %s278, 8
      %s280 = scalar_lea.vmem %s7, %s279
      %s281 = smul.u32 32, %s18
      %v282 = vld [vmem:[%s274] sm:$0xff]
      %v283 = vld [vmem:[%s274 + $0x8] sm:$0xff]
      %v284 = vld [vmem:[%s274 + $0x10] sm:$0xff]
      %v285 = vld [vmem:[%s274 + $0x18] sm:$0xff]
      %v286 = vld [vmem:[%s274 + $0x20] sm:$0xff]
      %v287 = vld [vmem:[%s274 + $0x28] sm:$0xff]
      %v288 = vld [vmem:[%s274 + $0x30] sm:$0xff]
      %v289 = vld [vmem:[%s274 + $0x38] sm:$0xff]
      %v290 = vld [vmem:[%s274 + $0x40] sm:$0xff]
      %v291 = vld [vmem:[%s274 + $0x48] sm:$0xff]
      %v292 = vld [vmem:[%s274 + $0x50] sm:$0xff]
      %v293 = vld [vmem:[%s274 + $0x58] sm:$0xff]
      %v294 = vld [vmem:[%s274 + $0x60] sm:$0xff]
      %v295 = vld [vmem:[%s274 + $0x68] sm:$0xff]
      %v296 = vld [vmem:[%s274 + $0x70] sm:$0xff]
      %v297 = vld [vmem:[%s274 + $0x78] sm:$0xff]
      %v298 = vld [vmem:[%s274 + $0x80] sm:$0xff]
      %v299 = vld [vmem:[%s274 + $0x88] sm:$0xff]
      %v300 = vld [vmem:[%s274 + $0x90] sm:$0xff]
      %v301 = vld [vmem:[%s274 + $0x98] sm:$0xff]
      %v302 = vld [vmem:[%s274 + $0xa0] sm:$0xff]
      %v303 = vld [vmem:[%s274 + $0xa8] sm:$0xff]
      %v304 = vld [vmem:[%s274 + $0xb0] sm:$0xff]
      %v305 = vld [vmem:[%s274 + $0xb8] sm:$0xff]
      %v306 = vld [vmem:[%s274 + $0xc0] sm:$0xff]
      %v307 = vld [vmem:[%s274 + $0xc8] sm:$0xff]
      %v308 = vld [vmem:[%s274 + $0xd0] sm:$0xff]
      %v309 = vld [vmem:[%s274 + $0xd8] sm:$0xff]
      %v310 = vld [vmem:[%s274 + $0xe0] sm:$0xff]
      %v311 = vld [vmem:[%s274 + $0xe8] sm:$0xff]
      %v312 = vld [vmem:[%s274 + $0xf0] sm:$0xff]
      %v313 = vld [vmem:[%s274 + $0xf8] sm:$0xff]
      %v314 = vld [vmem:[%s1] sm:$0xff]
      %v315 = vld [vmem:[%s2] sm:$0x1]
      %v317 = vperm.slane %v315, 0
      %vm319 = vcmask 64512
      %v321 = vsel %vm319, %v282, 0
      %v324 = vsel %vm319, %v283, 0
      %v327 = vsel %vm319, %v284, 0
      %v330 = vsel %vm319, %v285, 0
      %v333 = vsel %vm319, %v286, 0
      %v336 = vsel %vm319, %v287, 0
      %v339 = vsel %vm319, %v288, 0
      %v342 = vsel %vm319, %v289, 0
      %v345 = vsel %vm319, %v290, 0
      %v348 = vsel %vm319, %v291, 0
      %v351 = vsel %vm319, %v292, 0
      %v354 = vsel %vm319, %v293, 0
      %v357 = vsel %vm319, %v294, 0
      %v360 = vsel %vm319, %v295, 0
      %v363 = vsel %vm319, %v296, 0
      %v366 = vsel %vm319, %v297, 0
      %v369 = vsel %vm319, %v298, 0
      %v372 = vsel %vm319, %v299, 0
      %v375 = vsel %vm319, %v300, 0
      %v378 = vsel %vm319, %v301, 0
      %v381 = vsel %vm319, %v302, 0
      %v384 = vsel %vm319, %v303, 0
      %v387 = vsel %vm319, %v304, 0
      %v390 = vsel %vm319, %v305, 0
      %v393 = vsel %vm319, %v306, 0
      %v396 = vsel %vm319, %v307, 0
      %v399 = vsel %vm319, %v308, 0
      %v402 = vsel %vm319, %v309, 0
      %v405 = vsel %vm319, %v310, 0
      %v408 = vsel %vm319, %v311, 0
      %v411 = vsel %vm319, %v312, 0
      %v414 = vsel %vm319, %v313, 0
      %416 = vmatpush.msra.mxu0 0.0
      %417 = vmatpush.msra.mxu0 0.0
      %418 = vmatpush.msra.mxu0 0.0
      %419 = vmatpush.msra.mxu0 0.0
      %420 = vmatpush.msra.mxu0 0.0
      %421 = vmatpush.msra.mxu0 0.0
      %422 = vmatpush.msra.mxu0 0.0
      %423 = vmatpush.msra.mxu0 0.0
      %424 = vmatpush.msra.mxu0 0.0
      %425 = vmatpush.msra.mxu0 0.0
      %426 = vmatpush.msra.mxu0 0.0
      %427 = vmatpush.msra.mxu0 0.0
      %428 = vmatpush.msra.mxu0 0.0
      %429 = vmatpush.msra.mxu0 0.0
      %430 = vmatpush.msra.mxu0 0.0
      %431 = vmatpush.msra.mxu0 %v314
      %432 = vmatmul.f32.gmra.mxu0 %v321
      %v433 = vpop.f32.mrf.mxu0
      %v434 = vadd.f32 %v317, %v433
      %435 = vmatmul.f32.gmra.mxu0 %v324
      %v436 = vpop.f32.mrf.mxu0
      %v437 = vadd.f32 %v317, %v436
      %438 = vmatmul.f32.gmra.mxu0 %v327
      %v439 = vpop.f32.mrf.mxu0
      %v440 = vadd.f32 %v317, %v439
      %441 = vmatmul.f32.gmra.mxu0 %v330
      %v442 = vpop.f32.mrf.mxu0
      %v443 = vadd.f32 %v317, %v442
      %444 = vmatmul.f32.gmra.mxu0 %v333
      %v445 = vpop.f32.mrf.mxu0
      %v446 = vadd.f32 %v317, %v445
      %447 = vmatmul.f32.gmra.mxu0 %v336
      %v448 = vpop.f32.mrf.mxu0
      %v449 = vadd.f32 %v317, %v448
      %450 = vmatmul.f32.gmra.mxu0 %v339
      %v451 = vpop.f32.mrf.mxu0
      %v452 = vadd.f32 %v317, %v451
      %453 = vmatmul.f32.gmra.mxu0 %v342
      %v454 = vpop.f32.mrf.mxu0
      %v455 = vadd.f32 %v317, %v454
      %456 = vmatmul.f32.gmra.mxu0 %v345
      %v457 = vpop.f32.mrf.mxu0
      %v458 = vadd.f32 %v317, %v457
      %459 = vmatmul.f32.gmra.mxu0 %v348
      %v460 = vpop.f32.mrf.mxu0
      %v461 = vadd.f32 %v317, %v460
      %462 = vmatmul.f32.gmra.mxu0 %v351
      %v463 = vpop.f32.mrf.mxu0
      %v464 = vadd.f32 %v317, %v463
      %465 = vmatmul.f32.gmra.mxu0 %v354
      %v466 = vpop.f32.mrf.mxu0
      %v467 = vadd.f32 %v317, %v466
      %468 = vmatmul.f32.gmra.mxu0 %v357
      %v469 = vpop.f32.mrf.mxu0
      %v470 = vadd.f32 %v317, %v469
      %471 = vmatmul.f32.gmra.mxu0 %v360
      %v472 = vpop.f32.mrf.mxu0
      %v473 = vadd.f32 %v317, %v472
      %474 = vmatmul.f32.gmra.mxu0 %v363
      %v475 = vpop.f32.mrf.mxu0
      %v476 = vadd.f32 %v317, %v475
      %477 = vmatmul.f32.gmra.mxu0 %v366
      %v478 = vpop.f32.mrf.mxu0
      %v479 = vadd.f32 %v317, %v478
      %480 = vmatmul.f32.gmra.mxu0 %v369
      %v481 = vpop.f32.mrf.mxu0
      %v482 = vadd.f32 %v317, %v481
      %483 = vmatmul.f32.gmra.mxu0 %v372
      %v484 = vpop.f32.mrf.mxu0
      %v485 = vadd.f32 %v317, %v484
      %486 = vmatmul.f32.gmra.mxu0 %v375
      %v487 = vpop.f32.mrf.mxu0
      %v488 = vadd.f32 %v317, %v487
      %489 = vmatmul.f32.gmra.mxu0 %v378
      %v490 = vpop.f32.mrf.mxu0
      %v491 = vadd.f32 %v317, %v490
      %492 = vmatmul.f32.gmra.mxu0 %v381
      %v493 = vpop.f32.mrf.mxu0
      %v494 = vadd.f32 %v317, %v493
      %495 = vmatmul.f32.gmra.mxu0 %v384
      %v496 = vpop.f32.mrf.mxu0
      %v497 = vadd.f32 %v317, %v496
      %498 = vmatmul.f32.gmra.mxu0 %v387
      %v499 = vpop.f32.mrf.mxu0
      %v500 = vadd.f32 %v317, %v499
      %501 = vmatmul.f32.gmra.mxu0 %v390
      %v502 = vpop.f32.mrf.mxu0
      %v503 = vadd.f32 %v317, %v502
      %504 = vmatmul.f32.gmra.mxu0 %v393
      %v505 = vpop.f32.mrf.mxu0
      %v506 = vadd.f32 %v317, %v505
      %507 = vmatmul.f32.gmra.mxu0 %v396
      %v508 = vpop.f32.mrf.mxu0
      %v509 = vadd.f32 %v317, %v508
      %510 = vmatmul.f32.gmra.mxu0 %v399
      %v511 = vpop.f32.mrf.mxu0
      %v512 = vadd.f32 %v317, %v511
      %513 = vmatmul.f32.gmra.mxu0 %v402
      %v514 = vpop.f32.mrf.mxu0
      %v515 = vadd.f32 %v317, %v514
      %516 = vmatmul.f32.gmra.mxu0 %v405
      %v517 = vpop.f32.mrf.mxu0
      %v518 = vadd.f32 %v317, %v517
      %519 = vmatmul.f32.gmra.mxu0 %v408
      %v520 = vpop.f32.mrf.mxu0
      %v521 = vadd.f32 %v317, %v520
      %522 = vmatmul.f32.gmra.mxu0 %v411
      %v523 = vpop.f32.mrf.mxu0
      %v524 = vadd.f32 %v317, %v523
      %525 = vmatmul.f32.gmra.mxu0 %v414
      %v526 = vpop.f32.mrf.mxu0
      %v527 = vadd.f32 %v317, %v526
      %528 = vdwg.mxu0
      %vm529 = vcmp.ge.f32.partialorder %v434, 0.0
      %vm530 = vcmp.ge.f32.partialorder %v437, 0.0
      %vm531 = vcmp.ge.f32.partialorder %v440, 0.0
      %vm532 = vcmp.ge.f32.partialorder %v443, 0.0
      %vm533 = vcmp.ge.f32.partialorder %v446, 0.0
      %vm534 = vcmp.ge.f32.partialorder %v449, 0.0
      %vm535 = vcmp.ge.f32.partialorder %v452, 0.0
      %vm536 = vcmp.ge.f32.partialorder %v455, 0.0
      %vm537 = vcmp.ge.f32.partialorder %v458, 0.0
      %vm538 = vcmp.ge.f32.partialorder %v461, 0.0
      %vm539 = vcmp.ge.f32.partialorder %v464, 0.0
      %vm540 = vcmp.ge.f32.partialorder %v467, 0.0
      %vm541 = vcmp.ge.f32.partialorder %v470, 0.0
      %vm542 = vcmp.ge.f32.partialorder %v473, 0.0
      %vm543 = vcmp.ge.f32.partialorder %v476, 0.0
      %vm544 = vcmp.ge.f32.partialorder %v479, 0.0
      %vm545 = vcmp.ge.f32.partialorder %v482, 0.0
      %vm546 = vcmp.ge.f32.partialorder %v485, 0.0
      %vm547 = vcmp.ge.f32.partialorder %v488, 0.0
      %vm548 = vcmp.ge.f32.partialorder %v491, 0.0
      %vm549 = vcmp.ge.f32.partialorder %v494, 0.0
      %vm550 = vcmp.ge.f32.partialorder %v497, 0.0
      %vm551 = vcmp.ge.f32.partialorder %v500, 0.0
      %vm552 = vcmp.ge.f32.partialorder %v503, 0.0
      %vm553 = vcmp.ge.f32.partialorder %v506, 0.0
      %vm554 = vcmp.ge.f32.partialorder %v509, 0.0
      %vm555 = vcmp.ge.f32.partialorder %v512, 0.0
      %vm556 = vcmp.ge.f32.partialorder %v515, 0.0
      %vm557 = vcmp.ge.f32.partialorder %v518, 0.0
      %vm558 = vcmp.ge.f32.partialorder %v521, 0.0
      %vm559 = vcmp.ge.f32.partialorder %v524, 0.0
      %vm560 = vcmp.ge.f32.partialorder %v527, 0.0
      %v561 = vmul.f32 %v434, 0.1
      %v562 = vmul.f32 %v437, 0.1
      %v563 = vmul.f32 %v440, 0.1
      %v564 = vmul.f32 %v443, 0.1
      %v565 = vmul.f32 %v446, 0.1
      %v566 = vmul.f32 %v449, 0.1
      %v567 = vmul.f32 %v452, 0.1
      %v568 = vmul.f32 %v455, 0.1
      %v569 = vmul.f32 %v458, 0.1
      %v570 = vmul.f32 %v461, 0.1
      %v571 = vmul.f32 %v464, 0.1
      %v572 = vmul.f32 %v467, 0.1
      %v573 = vmul.f32 %v470, 0.1
      %v574 = vmul.f32 %v473, 0.1
      %v575 = vmul.f32 %v476, 0.1
      %v576 = vmul.f32 %v479, 0.1
      %v577 = vmul.f32 %v482, 0.1
      %v578 = vmul.f32 %v485, 0.1
      %v579 = vmul.f32 %v488, 0.1
      %v580 = vmul.f32 %v491, 0.1
      %v581 = vmul.f32 %v494, 0.1
      %v582 = vmul.f32 %v497, 0.1
      %v583 = vmul.f32 %v500, 0.1
      %v584 = vmul.f32 %v503, 0.1
      %v585 = vmul.f32 %v506, 0.1
      %v586 = vmul.f32 %v509, 0.1
      %v587 = vmul.f32 %v512, 0.1
      %v588 = vmul.f32 %v515, 0.1
      %v589 = vmul.f32 %v518, 0.1
      %v590 = vmul.f32 %v521, 0.1
      %v591 = vmul.f32 %v524, 0.1
      %v592 = vmul.f32 %v527, 0.1
      %v593 = vsel %vm529, %v434, %v561
      %v594 = vsel %vm530, %v437, %v562
      %v595 = vsel %vm531, %v440, %v563
      %v596 = vsel %vm532, %v443, %v564
      %v597 = vsel %vm533, %v446, %v565
      %v598 = vsel %vm534, %v449, %v566
      %v599 = vsel %vm535, %v452, %v567
      %v600 = vsel %vm536, %v455, %v568
      %v601 = vsel %vm537, %v458, %v569
      %v602 = vsel %vm538, %v461, %v570
      %v603 = vsel %vm539, %v464, %v571
      %v604 = vsel %vm540, %v467, %v572
      %v605 = vsel %vm541, %v470, %v573
      %v606 = vsel %vm542, %v473, %v574
      %v607 = vsel %vm543, %v476, %v575
      %v608 = vsel %vm544, %v479, %v576
      %v609 = vsel %vm545, %v482, %v577
      %v610 = vsel %vm546, %v485, %v578
      %v611 = vsel %vm547, %v488, %v579
      %v612 = vsel %vm548, %v491, %v580
      %v613 = vsel %vm549, %v494, %v581
      %v614 = vsel %vm550, %v497, %v582
      %v615 = vsel %vm551, %v500, %v583
      %v616 = vsel %vm552, %v503, %v584
      %v617 = vsel %vm553, %v506, %v585
      %v618 = vsel %vm554, %v509, %v586
      %v619 = vsel %vm555, %v512, %v587
      %v620 = vsel %vm556, %v515, %v588
      %v621 = vsel %vm557, %v518, %v589
      %v622 = vsel %vm558, %v521, %v590
      %v623 = vsel %vm559, %v524, %v591
      %v624 = vsel %vm560, %v527, %v592
      %v625 = vld [vmem:[%s3] sm:$0xf]
      %v626 = vld [vmem:[%s4] sm:$0x1]
      %v628 = vperm.slane %v626, 0
      %vm630 = vcmask 31744
      %v632 = vsel %vm630, %v593, 0
      %v635 = vsel %vm630, %v594, 0
      %v638 = vsel %vm630, %v595, 0
      %v641 = vsel %vm630, %v596, 0
      %v644 = vsel %vm630, %v597, 0
      %v647 = vsel %vm630, %v598, 0
      %v650 = vsel %vm630, %v599, 0
      %v653 = vsel %vm630, %v600, 0
      %v656 = vsel %vm630, %v601, 0
      %v659 = vsel %vm630, %v602, 0
      %v662 = vsel %vm630, %v603, 0
      %v665 = vsel %vm630, %v604, 0
      %v668 = vsel %vm630, %v605, 0
      %v671 = vsel %vm630, %v606, 0
      %v674 = vsel %vm630, %v607, 0
      %v677 = vsel %vm630, %v608, 0
      %v680 = vsel %vm630, %v609, 0
      %v683 = vsel %vm630, %v610, 0
      %v686 = vsel %vm630, %v611, 0
      %v689 = vsel %vm630, %v612, 0
      %v692 = vsel %vm630, %v613, 0
      %v695 = vsel %vm630, %v614, 0
      %v698 = vsel %vm630, %v615, 0
      %v701 = vsel %vm630, %v616, 0
      %v704 = vsel %vm630, %v617, 0
      %v707 = vsel %vm630, %v618, 0
      %v710 = vsel %vm630, %v619, 0
      %v713 = vsel %vm630, %v620, 0
      %v716 = vsel %vm630, %v621, 0
      %v719 = vsel %vm630, %v622, 0
      %v722 = vsel %vm630, %v623, 0
      %v725 = vsel %vm630, %v624, 0
      %vm727 = vcmask 1043456
      %v729 = vsel %vm727, %v625, 0
      %731 = vmatpush.msra.mxu0 0.0
      %732 = vmatpush.msra.mxu0 0.0
      %733 = vmatpush.msra.mxu0 0.0
      %734 = vmatpush.msra.mxu0 0.0
      %735 = vmatpush.msra.mxu0 0.0
      %736 = vmatpush.msra.mxu0 0.0
      %737 = vmatpush.msra.mxu0 0.0
      %738 = vmatpush.msra.mxu0 0.0
      %739 = vmatpush.msra.mxu0 0.0
      %740 = vmatpush.msra.mxu0 0.0
      %741 = vmatpush.msra.mxu0 0.0
      %742 = vmatpush.msra.mxu0 0.0
      %743 = vmatpush.msra.mxu0 0.0
      %744 = vmatpush.msra.mxu0 0.0
      %745 = vmatpush.msra.mxu0 0.0
      %746 = vmatpush.msra.mxu0 %v729
      %747 = vmatmul.f32.gmra.mxu0 %v632
      %v748 = vpop.f32.mrf.mxu0
      %v749 = vadd.f32 %v628, %v748
      %750 = vmatmul.f32.gmra.mxu0 %v635
      %v751 = vpop.f32.mrf.mxu0
      %v752 = vadd.f32 %v628, %v751
      %753 = vmatmul.f32.gmra.mxu0 %v638
      %v754 = vpop.f32.mrf.mxu0
      %v755 = vadd.f32 %v628, %v754
      %756 = vmatmul.f32.gmra.mxu0 %v641
      %v757 = vpop.f32.mrf.mxu0
      %v758 = vadd.f32 %v628, %v757
      %759 = vmatmul.f32.gmra.mxu0 %v644
      %v760 = vpop.f32.mrf.mxu0
      %v761 = vadd.f32 %v628, %v760
      %762 = vmatmul.f32.gmra.mxu0 %v647
      %v763 = vpop.f32.mrf.mxu0
      %v764 = vadd.f32 %v628, %v763
      %765 = vmatmul.f32.gmra.mxu0 %v650
      %v766 = vpop.f32.mrf.mxu0
      %v767 = vadd.f32 %v628, %v766
      %768 = vmatmul.f32.gmra.mxu0 %v653
      %v769 = vpop.f32.mrf.mxu0
      %v770 = vadd.f32 %v628, %v769
      %771 = vmatmul.f32.gmra.mxu0 %v656
      %v772 = vpop.f32.mrf.mxu0
      %v773 = vadd.f32 %v628, %v772
      %774 = vmatmul.f32.gmra.mxu0 %v659
      %v775 = vpop.f32.mrf.mxu0
      %v776 = vadd.f32 %v628, %v775
      %777 = vmatmul.f32.gmra.mxu0 %v662
      %v778 = vpop.f32.mrf.mxu0
      %v779 = vadd.f32 %v628, %v778
      %780 = vmatmul.f32.gmra.mxu0 %v665
      %v781 = vpop.f32.mrf.mxu0
      %v782 = vadd.f32 %v628, %v781
      %783 = vmatmul.f32.gmra.mxu0 %v668
      %v784 = vpop.f32.mrf.mxu0
      %v785 = vadd.f32 %v628, %v784
      %786 = vmatmul.f32.gmra.mxu0 %v671
      %v787 = vpop.f32.mrf.mxu0
      %v788 = vadd.f32 %v628, %v787
      %789 = vmatmul.f32.gmra.mxu0 %v674
      %v790 = vpop.f32.mrf.mxu0
      %v791 = vadd.f32 %v628, %v790
      %792 = vmatmul.f32.gmra.mxu0 %v677
      %v793 = vpop.f32.mrf.mxu0
      %v794 = vadd.f32 %v628, %v793
      %795 = vmatmul.f32.gmra.mxu0 %v680
      %v796 = vpop.f32.mrf.mxu0
      %v797 = vadd.f32 %v628, %v796
      %798 = vmatmul.f32.gmra.mxu0 %v683
      %v799 = vpop.f32.mrf.mxu0
      %v800 = vadd.f32 %v628, %v799
      %801 = vmatmul.f32.gmra.mxu0 %v686
      %v802 = vpop.f32.mrf.mxu0
      %v803 = vadd.f32 %v628, %v802
      %804 = vmatmul.f32.gmra.mxu0 %v689
      %v805 = vpop.f32.mrf.mxu0
      %v806 = vadd.f32 %v628, %v805
      %807 = vmatmul.f32.gmra.mxu0 %v692
      %v808 = vpop.f32.mrf.mxu0
      %v809 = vadd.f32 %v628, %v808
      %810 = vmatmul.f32.gmra.mxu0 %v695
      %v811 = vpop.f32.mrf.mxu0
      %v812 = vadd.f32 %v628, %v811
      %813 = vmatmul.f32.gmra.mxu0 %v698
      %v814 = vpop.f32.mrf.mxu0
      %v815 = vadd.f32 %v628, %v814
      %816 = vmatmul.f32.gmra.mxu0 %v701
      %v817 = vpop.f32.mrf.mxu0
      %v818 = vadd.f32 %v628, %v817
      %819 = vmatmul.f32.gmra.mxu0 %v704
      %v820 = vpop.f32.mrf.mxu0
      %v821 = vadd.f32 %v628, %v820
      %822 = vmatmul.f32.gmra.mxu0 %v707
      %v823 = vpop.f32.mrf.mxu0
      %v824 = vadd.f32 %v628, %v823
      %825 = vmatmul.f32.gmra.mxu0 %v710
      %v826 = vpop.f32.mrf.mxu0
      %v827 = vadd.f32 %v628, %v826
      %828 = vmatmul.f32.gmra.mxu0 %v713
      %v829 = vpop.f32.mrf.mxu0
      %v830 = vadd.f32 %v628, %v829
      %831 = vmatmul.f32.gmra.mxu0 %v716
      %v832 = vpop.f32.mrf.mxu0
      %v833 = vadd.f32 %v628, %v832
      %834 = vmatmul.f32.gmra.mxu0 %v719
      %v835 = vpop.f32.mrf.mxu0
      %v836 = vadd.f32 %v628, %v835
      %837 = vmatmul.f32.gmra.mxu0 %v722
      %v838 = vpop.f32.mrf.mxu0
      %v839 = vadd.f32 %v628, %v838
      %840 = vmatmul.f32.gmra.mxu0 %v725
      %v841 = vpop.f32.mrf.mxu0
      %v842 = vadd.f32 %v628, %v841
      %843 = vdwg.mxu0
      %vm844 = vcmp.ge.f32.partialorder %v749, 0.0
      %vm845 = vcmp.ge.f32.partialorder %v752, 0.0
      %vm846 = vcmp.ge.f32.partialorder %v755, 0.0
      %vm847 = vcmp.ge.f32.partialorder %v758, 0.0
      %vm848 = vcmp.ge.f32.partialorder %v761, 0.0
      %vm849 = vcmp.ge.f32.partialorder %v764, 0.0
      %vm850 = vcmp.ge.f32.partialorder %v767, 0.0
      %vm851 = vcmp.ge.f32.partialorder %v770, 0.0
      %vm852 = vcmp.ge.f32.partialorder %v773, 0.0
      %vm853 = vcmp.ge.f32.partialorder %v776, 0.0
      %vm854 = vcmp.ge.f32.partialorder %v779, 0.0
      %vm855 = vcmp.ge.f32.partialorder %v782, 0.0
      %vm856 = vcmp.ge.f32.partialorder %v785, 0.0
      %vm857 = vcmp.ge.f32.partialorder %v788, 0.0
      %vm858 = vcmp.ge.f32.partialorder %v791, 0.0
      %vm859 = vcmp.ge.f32.partialorder %v794, 0.0
      %vm860 = vcmp.ge.f32.partialorder %v797, 0.0
      %vm861 = vcmp.ge.f32.partialorder %v800, 0.0
      %vm862 = vcmp.ge.f32.partialorder %v803, 0.0
      %vm863 = vcmp.ge.f32.partialorder %v806, 0.0
      %vm864 = vcmp.ge.f32.partialorder %v809, 0.0
      %vm865 = vcmp.ge.f32.partialorder %v812, 0.0
      %vm866 = vcmp.ge.f32.partialorder %v815, 0.0
      %vm867 = vcmp.ge.f32.partialorder %v818, 0.0
      %vm868 = vcmp.ge.f32.partialorder %v821, 0.0
      %vm869 = vcmp.ge.f32.partialorder %v824, 0.0
      %vm870 = vcmp.ge.f32.partialorder %v827, 0.0
      %vm871 = vcmp.ge.f32.partialorder %v830, 0.0
      %vm872 = vcmp.ge.f32.partialorder %v833, 0.0
      %vm873 = vcmp.ge.f32.partialorder %v836, 0.0
      %vm874 = vcmp.ge.f32.partialorder %v839, 0.0
      %vm875 = vcmp.ge.f32.partialorder %v842, 0.0
      %v876 = vmul.f32 %v749, 0.1
      %v877 = vmul.f32 %v752, 0.1
      %v878 = vmul.f32 %v755, 0.1
      %v879 = vmul.f32 %v758, 0.1
      %v880 = vmul.f32 %v761, 0.1
      %v881 = vmul.f32 %v764, 0.1
      %v882 = vmul.f32 %v767, 0.1
      %v883 = vmul.f32 %v770, 0.1
      %v884 = vmul.f32 %v773, 0.1
      %v885 = vmul.f32 %v776, 0.1
      %v886 = vmul.f32 %v779, 0.1
      %v887 = vmul.f32 %v782, 0.1
      %v888 = vmul.f32 %v785, 0.1
      %v889 = vmul.f32 %v788, 0.1
      %v890 = vmul.f32 %v791, 0.1
      %v891 = vmul.f32 %v794, 0.1
      %v892 = vmul.f32 %v797, 0.1
      %v893 = vmul.f32 %v800, 0.1
      %v894 = vmul.f32 %v803, 0.1
      %v895 = vmul.f32 %v806, 0.1
      %v896 = vmul.f32 %v809, 0.1
      %v897 = vmul.f32 %v812, 0.1
      %v898 = vmul.f32 %v815, 0.1
      %v899 = vmul.f32 %v818, 0.1
      %v900 = vmul.f32 %v821, 0.1
      %v901 = vmul.f32 %v824, 0.1
      %v902 = vmul.f32 %v827, 0.1
      %v903 = vmul.f32 %v830, 0.1
      %v904 = vmul.f32 %v833, 0.1
      %v905 = vmul.f32 %v836, 0.1
      %v906 = vmul.f32 %v839, 0.1
      %v907 = vmul.f32 %v842, 0.1
      %v908 = vsel %vm844, %v749, %v876
      %v909 = vsel %vm845, %v752, %v877
      %v910 = vsel %vm846, %v755, %v878
      %v911 = vsel %vm847, %v758, %v879
      %v912 = vsel %vm848, %v761, %v880
      %v913 = vsel %vm849, %v764, %v881
      %v914 = vsel %vm850, %v767, %v882
      %v915 = vsel %vm851, %v770, %v883
      %v916 = vsel %vm852, %v773, %v884
      %v917 = vsel %vm853, %v776, %v885
      %v918 = vsel %vm854, %v779, %v886
      %v919 = vsel %vm855, %v782, %v887
      %v920 = vsel %vm856, %v785, %v888
      %v921 = vsel %vm857, %v788, %v889
      %v922 = vsel %vm858, %v791, %v890
      %v923 = vsel %vm859, %v794, %v891
      %v924 = vsel %vm860, %v797, %v892
      %v925 = vsel %vm861, %v800, %v893
      %v926 = vsel %vm862, %v803, %v894
      %v927 = vsel %vm863, %v806, %v895
      %v928 = vsel %vm864, %v809, %v896
      %v929 = vsel %vm865, %v812, %v897
      %v930 = vsel %vm866, %v815, %v898
      %v931 = vsel %vm867, %v818, %v899
      %v932 = vsel %vm868, %v821, %v900
      %v933 = vsel %vm869, %v824, %v901
      %v934 = vsel %vm870, %v827, %v902
      %v935 = vsel %vm871, %v830, %v903
      %v936 = vsel %vm872, %v833, %v904
      %v937 = vsel %vm873, %v836, %v905
      %v938 = vsel %vm874, %v839, %v906
      %v939 = vsel %vm875, %v842, %v907
      %v940 = vlaneseq
      %v941 = vshrl.u32 %v940, 7
      %v942 = vadd.s32 %v941, 8
      %v943 = vadd.s32 %v941, 16
      %v944 = vadd.s32 %v941, 24
      %v945 = vadd.s32 %v941, 32
      %v946 = vadd.s32 %v941, 40
      %v947 = vadd.s32 %v941, 48
      %v948 = vadd.s32 %v941, 56
      %v949 = vadd.s32 %v941, 64
      %v950 = vadd.s32 %v941, 72
      %v951 = vadd.s32 %v941, 80
      %v952 = vadd.s32 %v941, 88
      %v953 = vadd.s32 %v941, 96
      %v954 = vadd.s32 %v941, 104
      %v955 = vadd.s32 %v941, 112
      %v956 = vadd.s32 %v941, 120
      %v957 = vadd.s32 %v941, 128
      %v958 = vadd.s32 %v941, 136
      %v959 = vadd.s32 %v941, 144
      %v960 = vadd.s32 %v941, 152
      %v961 = vadd.s32 %v941, 160
      %v962 = vadd.s32 %v941, 168
      %v963 = vadd.s32 %v941, 176
      %v964 = vadd.s32 %v941, 184
      %v965 = vadd.s32 %v941, 192
      %v966 = vadd.s32 %v941, 200
      %v967 = vadd.s32 %v941, 208
      %v968 = vadd.s32 %v941, 216
      %v969 = vadd.s32 %v941, 224
      %v970 = vadd.s32 %v941, 232
      %v971 = vadd.s32 %v941, 240
      %v972 = vadd.s32 %v941, 248
      %vm973 = vcmp.lt.s32.totalorder %v941, 0
      %v974 = vsub.s32 0, %v941
      %v975 = vsel %vm973, %v974, %v941
      %v976 = vshrl.u32 %v975, 4
      %v977 = vand.u32 %v975, 15
      %v978 = vsub.s32 0, %v977
      %v979 = vsel %vm973, %v978, %v977
      %vm980 = vcmp.lt.s32.totalorder %v942, 0
      %v981 = vsub.s32 0, %v942
      %v982 = vsel %vm980, %v981, %v942
      %v983 = vshrl.u32 %v982, 4
      %v984 = vand.u32 %v982, 15
      %v985 = vsub.s32 0, %v984
      %v986 = vsel %vm980, %v985, %v984
      %vm987 = vcmp.lt.s32.totalorder %v943, 0
      %v988 = vsub.s32 0, %v943
      %v989 = vsel %vm987, %v988, %v943
      %v990 = vshrl.u32 %v989, 4
      %v991 = vand.u32 %v989, 15
      %v992 = vsub.s32 0, %v991
      %v993 = vsel %vm987, %v992, %v991
      %vm994 = vcmp.lt.s32.totalorder %v944, 0
      %v995 = vsub.s32 0, %v944
      %v996 = vsel %vm994, %v995, %v944
      %v997 = vshrl.u32 %v996, 4
      %v998 = vand.u32 %v996, 15
      %v999 = vsub.s32 0, %v998
      %v1000 = vsel %vm994, %v999, %v998
      %vm1001 = vcmp.lt.s32.totalorder %v945, 0
      %v1002 = vsub.s32 0, %v945
      %v1003 = vsel %vm1001, %v1002, %v945
      %v1004 = vshrl.u32 %v1003, 4
      %v1005 = vand.u32 %v1003, 15
      %v1006 = vsub.s32 0, %v1005
      %v1007 = vsel %vm1001, %v1006, %v1005
      %vm1008 = vcmp.lt.s32.totalorder %v946, 0
      %v1009 = vsub.s32 0, %v946
      %v1010 = vsel %vm1008, %v1009, %v946
      %v1011 = vshrl.u32 %v1010, 4
      %v1012 = vand.u32 %v1010, 15
      %v1013 = vsub.s32 0, %v1012
      %v1014 = vsel %vm1008, %v1013, %v1012
      %vm1015 = vcmp.lt.s32.totalorder %v947, 0
      %v1016 = vsub.s32 0, %v947
      %v1017 = vsel %vm1015, %v1016, %v947
      %v1018 = vshrl.u32 %v1017, 4
      %v1019 = vand.u32 %v1017, 15
      %v1020 = vsub.s32 0, %v1019
      %v1021 = vsel %vm1015, %v1020, %v1019
      %vm1022 = vcmp.lt.s32.totalorder %v948, 0
      %v1023 = vsub.s32 0, %v948
      %v1024 = vsel %vm1022, %v1023, %v948
      %v1025 = vshrl.u32 %v1024, 4
      %v1026 = vand.u32 %v1024, 15
      %v1027 = vsub.s32 0, %v1026
      %v1028 = vsel %vm1022, %v1027, %v1026
      %vm1029 = vcmp.lt.s32.totalorder %v949, 0
      %v1030 = vsub.s32 0, %v949
      %v1031 = vsel %vm1029, %v1030, %v949
      %v1032 = vshrl.u32 %v1031, 4
      %v1033 = vand.u32 %v1031, 15
      %v1034 = vsub.s32 0, %v1033
      %v1035 = vsel %vm1029, %v1034, %v1033
      %vm1036 = vcmp.lt.s32.totalorder %v950, 0
      %v1037 = vsub.s32 0, %v950
      %v1038 = vsel %vm1036, %v1037, %v950
      %v1039 = vshrl.u32 %v1038, 4
      %v1040 = vand.u32 %v1038, 15
      %v1041 = vsub.s32 0, %v1040
      %v1042 = vsel %vm1036, %v1041, %v1040
      %vm1043 = vcmp.lt.s32.totalorder %v951, 0
      %v1044 = vsub.s32 0, %v951
      %v1045 = vsel %vm1043, %v1044, %v951
      %v1046 = vshrl.u32 %v1045, 4
      %v1047 = vand.u32 %v1045, 15
      %v1048 = vsub.s32 0, %v1047
      %v1049 = vsel %vm1043, %v1048, %v1047
      %vm1050 = vcmp.lt.s32.totalorder %v952, 0
      %v1051 = vsub.s32 0, %v952
      %v1052 = vsel %vm1050, %v1051, %v952
      %v1053 = vshrl.u32 %v1052, 4
      %v1054 = vand.u32 %v1052, 15
      %v1055 = vsub.s32 0, %v1054
      %v1056 = vsel %vm1050, %v1055, %v1054
      %vm1057 = vcmp.lt.s32.totalorder %v953, 0
      %v1058 = vsub.s32 0, %v953
      %v1059 = vsel %vm1057, %v1058, %v953
      %v1060 = vshrl.u32 %v1059, 4
      %v1061 = vand.u32 %v1059, 15
      %v1062 = vsub.s32 0, %v1061
      %v1063 = vsel %vm1057, %v1062, %v1061
      %vm1064 = vcmp.lt.s32.totalorder %v954, 0
      %v1065 = vsub.s32 0, %v954
      %v1066 = vsel %vm1064, %v1065, %v954
      %v1067 = vshrl.u32 %v1066, 4
      %v1068 = vand.u32 %v1066, 15
      %v1069 = vsub.s32 0, %v1068
      %v1070 = vsel %vm1064, %v1069, %v1068
      %vm1071 = vcmp.lt.s32.totalorder %v955, 0
      %v1072 = vsub.s32 0, %v955
      %v1073 = vsel %vm1071, %v1072, %v955
      %v1074 = vshrl.u32 %v1073, 4
      %v1075 = vand.u32 %v1073, 15
      %v1076 = vsub.s32 0, %v1075
      %v1077 = vsel %vm1071, %v1076, %v1075
      %vm1078 = vcmp.lt.s32.totalorder %v956, 0
      %v1079 = vsub.s32 0, %v956
      %v1080 = vsel %vm1078, %v1079, %v956
      %v1081 = vshrl.u32 %v1080, 4
      %v1082 = vand.u32 %v1080, 15
      %v1083 = vsub.s32 0, %v1082
      %v1084 = vsel %vm1078, %v1083, %v1082
      %vm1085 = vcmp.lt.s32.totalorder %v957, 0
      %v1086 = vsub.s32 0, %v957
      %v1087 = vsel %vm1085, %v1086, %v957
      %v1088 = vshrl.u32 %v1087, 4
      %v1089 = vand.u32 %v1087, 15
      %v1090 = vsub.s32 0, %v1089
      %v1091 = vsel %vm1085, %v1090, %v1089
      %vm1092 = vcmp.lt.s32.totalorder %v958, 0
      %v1093 = vsub.s32 0, %v958
      %v1094 = vsel %vm1092, %v1093, %v958
      %v1095 = vshrl.u32 %v1094, 4
      %v1096 = vand.u32 %v1094, 15
      %v1097 = vsub.s32 0, %v1096
      %v1098 = vsel %vm1092, %v1097, %v1096
      %vm1099 = vcmp.lt.s32.totalorder %v959, 0
      %v1100 = vsub.s32 0, %v959
      %v1101 = vsel %vm1099, %v1100, %v959
      %v1102 = vshrl.u32 %v1101, 4
      %v1103 = vand.u32 %v1101, 15
      %v1104 = vsub.s32 0, %v1103
      %v1105 = vsel %vm1099, %v1104, %v1103
      %vm1106 = vcmp.lt.s32.totalorder %v960, 0
      %v1107 = vsub.s32 0, %v960
      %v1108 = vsel %vm1106, %v1107, %v960
      %v1109 = vshrl.u32 %v1108, 4
      %v1110 = vand.u32 %v1108, 15
      %v1111 = vsub.s32 0, %v1110
      %v1112 = vsel %vm1106, %v1111, %v1110
      %vm1113 = vcmp.lt.s32.totalorder %v961, 0
      %v1114 = vsub.s32 0, %v961
      %v1115 = vsel %vm1113, %v1114, %v961
      %v1116 = vshrl.u32 %v1115, 4
      %v1117 = vand.u32 %v1115, 15
      %v1118 = vsub.s32 0, %v1117
      %v1119 = vsel %vm1113, %v1118, %v1117
      %vm1120 = vcmp.lt.s32.totalorder %v962, 0
      %v1121 = vsub.s32 0, %v962
      %v1122 = vsel %vm1120, %v1121, %v962
      %v1123 = vshrl.u32 %v1122, 4
      %v1124 = vand.u32 %v1122, 15
      %v1125 = vsub.s32 0, %v1124
      %v1126 = vsel %vm1120, %v1125, %v1124
      %vm1127 = vcmp.lt.s32.totalorder %v963, 0
      %v1128 = vsub.s32 0, %v963
      %v1129 = vsel %vm1127, %v1128, %v963
      %v1130 = vshrl.u32 %v1129, 4
      %v1131 = vand.u32 %v1129, 15
      %v1132 = vsub.s32 0, %v1131
      %v1133 = vsel %vm1127, %v1132, %v1131
      %vm1134 = vcmp.lt.s32.totalorder %v964, 0
      %v1135 = vsub.s32 0, %v964
      %v1136 = vsel %vm1134, %v1135, %v964
      %v1137 = vshrl.u32 %v1136, 4
      %v1138 = vand.u32 %v1136, 15
      %v1139 = vsub.s32 0, %v1138
      %v1140 = vsel %vm1134, %v1139, %v1138
      %vm1141 = vcmp.lt.s32.totalorder %v965, 0
      %v1142 = vsub.s32 0, %v965
      %v1143 = vsel %vm1141, %v1142, %v965
      %v1144 = vshrl.u32 %v1143, 4
      %v1145 = vand.u32 %v1143, 15
      %v1146 = vsub.s32 0, %v1145
      %v1147 = vsel %vm1141, %v1146, %v1145
      %vm1148 = vcmp.lt.s32.totalorder %v966, 0
      %v1149 = vsub.s32 0, %v966
      %v1150 = vsel %vm1148, %v1149, %v966
      %v1151 = vshrl.u32 %v1150, 4
      %v1152 = vand.u32 %v1150, 15
      %v1153 = vsub.s32 0, %v1152
      %v1154 = vsel %vm1148, %v1153, %v1152
      %vm1155 = vcmp.lt.s32.totalorder %v967, 0
      %v1156 = vsub.s32 0, %v967
      %v1157 = vsel %vm1155, %v1156, %v967
      %v1158 = vshrl.u32 %v1157, 4
      %v1159 = vand.u32 %v1157, 15
      %v1160 = vsub.s32 0, %v1159
      %v1161 = vsel %vm1155, %v1160, %v1159
      %vm1162 = vcmp.lt.s32.totalorder %v968, 0
      %v1163 = vsub.s32 0, %v968
      %v1164 = vsel %vm1162, %v1163, %v968
      %v1165 = vshrl.u32 %v1164, 4
      %v1166 = vand.u32 %v1164, 15
      %v1167 = vsub.s32 0, %v1166
      %v1168 = vsel %vm1162, %v1167, %v1166
      %vm1169 = vcmp.lt.s32.totalorder %v969, 0
      %v1170 = vsub.s32 0, %v969
      %v1171 = vsel %vm1169, %v1170, %v969
      %v1172 = vshrl.u32 %v1171, 4
      %v1173 = vand.u32 %v1171, 15
      %v1174 = vsub.s32 0, %v1173
      %v1175 = vsel %vm1169, %v1174, %v1173
      %vm1176 = vcmp.lt.s32.totalorder %v970, 0
      %v1177 = vsub.s32 0, %v970
      %v1178 = vsel %vm1176, %v1177, %v970
      %v1179 = vshrl.u32 %v1178, 4
      %v1180 = vand.u32 %v1178, 15
      %v1181 = vsub.s32 0, %v1180
      %v1182 = vsel %vm1176, %v1181, %v1180
      %vm1183 = vcmp.lt.s32.totalorder %v971, 0
      %v1184 = vsub.s32 0, %v971
      %v1185 = vsel %vm1183, %v1184, %v971
      %v1186 = vshrl.u32 %v1185, 4
      %v1187 = vand.u32 %v1185, 15
      %v1188 = vsub.s32 0, %v1187
      %v1189 = vsel %vm1183, %v1188, %v1187
      %vm1190 = vcmp.lt.s32.totalorder %v972, 0
      %v1191 = vsub.s32 0, %v972
      %v1192 = vsel %vm1190, %v1191, %v972
      %v1193 = vshrl.u32 %v1192, 4
      %v1194 = vand.u32 %v1192, 15
      %v1195 = vsub.s32 0, %v1194
      %v1196 = vsel %vm1190, %v1195, %v1194
      %vm1197 = vcmp.ne.s32.totalorder %v979, 0
      %vm1198 = vcmp.ne.s32.totalorder %v986, 0
      %vm1199 = vcmp.ne.s32.totalorder %v993, 0
      %vm1200 = vcmp.ne.s32.totalorder %v1000, 0
      %vm1201 = vcmp.ne.s32.totalorder %v1007, 0
      %vm1202 = vcmp.ne.s32.totalorder %v1014, 0
      %vm1203 = vcmp.ne.s32.totalorder %v1021, 0
      %vm1204 = vcmp.ne.s32.totalorder %v1028, 0
      %vm1205 = vcmp.ne.s32.totalorder %v1035, 0
      %vm1206 = vcmp.ne.s32.totalorder %v1042, 0
      %vm1207 = vcmp.ne.s32.totalorder %v1049, 0
      %vm1208 = vcmp.ne.s32.totalorder %v1056, 0
      %vm1209 = vcmp.ne.s32.totalorder %v1063, 0
      %vm1210 = vcmp.ne.s32.totalorder %v1070, 0
      %vm1211 = vcmp.ne.s32.totalorder %v1077, 0
      %vm1212 = vcmp.ne.s32.totalorder %v1084, 0
      %vm1213 = vcmp.ne.s32.totalorder %v1091, 0
      %vm1214 = vcmp.ne.s32.totalorder %v1098, 0
      %vm1215 = vcmp.ne.s32.totalorder %v1105, 0
      %vm1216 = vcmp.ne.s32.totalorder %v1112, 0
      %vm1217 = vcmp.ne.s32.totalorder %v1119, 0
      %vm1218 = vcmp.ne.s32.totalorder %v1126, 0
      %vm1219 = vcmp.ne.s32.totalorder %v1133, 0
      %vm1220 = vcmp.ne.s32.totalorder %v1140, 0
      %vm1221 = vcmp.ne.s32.totalorder %v1147, 0
      %vm1222 = vcmp.ne.s32.totalorder %v1154, 0
      %vm1223 = vcmp.ne.s32.totalorder %v1161, 0
      %vm1224 = vcmp.ne.s32.totalorder %v1168, 0
      %vm1225 = vcmp.ne.s32.totalorder %v1175, 0
      %vm1226 = vcmp.ne.s32.totalorder %v1182, 0
      %vm1227 = vcmp.ne.s32.totalorder %v1189, 0
      %vm1228 = vcmp.ne.s32.totalorder %v1196, 0
      %vm1229 = vcmp.lt.s32.totalorder %v979, 0
      %vm1230 = vcmp.lt.s32.totalorder %v986, 0
      %vm1231 = vcmp.lt.s32.totalorder %v993, 0
      %vm1232 = vcmp.lt.s32.totalorder %v1000, 0
      %vm1233 = vcmp.lt.s32.totalorder %v1007, 0
      %vm1234 = vcmp.lt.s32.totalorder %v1014, 0
      %vm1235 = vcmp.lt.s32.totalorder %v1021, 0
      %vm1236 = vcmp.lt.s32.totalorder %v1028, 0
      %vm1237 = vcmp.lt.s32.totalorder %v1035, 0
      %vm1238 = vcmp.lt.s32.totalorder %v1042, 0
      %vm1239 = vcmp.lt.s32.totalorder %v1049, 0
      %vm1240 = vcmp.lt.s32.totalorder %v1056, 0
      %vm1241 = vcmp.lt.s32.totalorder %v1063, 0
      %vm1242 = vcmp.lt.s32.totalorder %v1070, 0
      %vm1243 = vcmp.lt.s32.totalorder %v1077, 0
      %vm1244 = vcmp.lt.s32.totalorder %v1084, 0
      %vm1245 = vcmp.lt.s32.totalorder %v1091, 0
      %vm1246 = vcmp.lt.s32.totalorder %v1098, 0
      %vm1247 = vcmp.lt.s32.totalorder %v1105, 0
      %vm1248 = vcmp.lt.s32.totalorder %v1112, 0
      %vm1249 = vcmp.lt.s32.totalorder %v1119, 0
      %vm1250 = vcmp.lt.s32.totalorder %v1126, 0
      %vm1251 = vcmp.lt.s32.totalorder %v1133, 0
      %vm1252 = vcmp.lt.s32.totalorder %v1140, 0
      %vm1253 = vcmp.lt.s32.totalorder %v1147, 0
      %vm1254 = vcmp.lt.s32.totalorder %v1154, 0
      %vm1255 = vcmp.lt.s32.totalorder %v1161, 0
      %vm1256 = vcmp.lt.s32.totalorder %v1168, 0
      %vm1257 = vcmp.lt.s32.totalorder %v1175, 0
      %vm1258 = vcmp.lt.s32.totalorder %v1182, 0
      %vm1259 = vcmp.lt.s32.totalorder %v1189, 0
      %vm1260 = vcmp.lt.s32.totalorder %v1196, 0
      %vm1261 = vmand %vm1229, %vm1197
      %vm1262 = vmand %vm1230, %vm1198
      %vm1263 = vmand %vm1231, %vm1199
      %vm1264 = vmand %vm1232, %vm1200
      %vm1265 = vmand %vm1233, %vm1201
      %vm1266 = vmand %vm1234, %vm1202
      %vm1267 = vmand %vm1235, %vm1203
      %vm1268 = vmand %vm1236, %vm1204
      %vm1269 = vmand %vm1237, %vm1205
      %vm1270 = vmand %vm1238, %vm1206
      %vm1271 = vmand %vm1239, %vm1207
      %vm1272 = vmand %vm1240, %vm1208
      %vm1273 = vmand %vm1241, %vm1209
      %vm1274 = vmand %vm1242, %vm1210
      %vm1275 = vmand %vm1243, %vm1211
      %vm1276 = vmand %vm1244, %vm1212
      %vm1277 = vmand %vm1245, %vm1213
      %vm1278 = vmand %vm1246, %vm1214
      %vm1279 = vmand %vm1247, %vm1215
      %vm1280 = vmand %vm1248, %vm1216
      %vm1281 = vmand %vm1249, %vm1217
      %vm1282 = vmand %vm1250, %vm1218
      %vm1283 = vmand %vm1251, %vm1219
      %vm1284 = vmand %vm1252, %vm1220
      %vm1285 = vmand %vm1253, %vm1221
      %vm1286 = vmand %vm1254, %vm1222
      %vm1287 = vmand %vm1255, %vm1223
      %vm1288 = vmand %vm1256, %vm1224
      %vm1289 = vmand %vm1257, %vm1225
      %vm1290 = vmand %vm1258, %vm1226
      %vm1291 = vmand %vm1259, %vm1227
      %vm1292 = vmand %vm1260, %vm1228
      %v1293 = vadd.s32 %v979, 16
      %v1294 = vadd.s32 %v986, 16
      %v1295 = vadd.s32 %v993, 16
      %v1296 = vadd.s32 %v1000, 16
      %v1297 = vadd.s32 %v1007, 16
      %v1298 = vadd.s32 %v1014, 16
      %v1299 = vadd.s32 %v1021, 16
      %v1300 = vadd.s32 %v1028, 16
      %v1301 = vadd.s32 %v1035, 16
      %v1302 = vadd.s32 %v1042, 16
      %v1303 = vadd.s32 %v1049, 16
      %v1304 = vadd.s32 %v1056, 16
      %v1305 = vadd.s32 %v1063, 16
      %v1306 = vadd.s32 %v1070, 16
      %v1307 = vadd.s32 %v1077, 16
      %v1308 = vadd.s32 %v1084, 16
      %v1309 = vadd.s32 %v1091, 16
      %v1310 = vadd.s32 %v1098, 16
      %v1311 = vadd.s32 %v1105, 16
      %v1312 = vadd.s32 %v1112, 16
      %v1313 = vadd.s32 %v1119, 16
      %v1314 = vadd.s32 %v1126, 16
      %v1315 = vadd.s32 %v1133, 16
      %v1316 = vadd.s32 %v1140, 16
      %v1317 = vadd.s32 %v1147, 16
      %v1318 = vadd.s32 %v1154, 16
      %v1319 = vadd.s32 %v1161, 16
      %v1320 = vadd.s32 %v1168, 16
      %v1321 = vadd.s32 %v1175, 16
      %v1322 = vadd.s32 %v1182, 16
      %v1323 = vadd.s32 %v1189, 16
      %v1324 = vadd.s32 %v1196, 16
      %v1325 = vsel %vm1261, %v1293, %v979
      %v1326 = vsel %vm1262, %v1294, %v986
      %v1327 = vsel %vm1263, %v1295, %v993
      %v1328 = vsel %vm1264, %v1296, %v1000
      %v1329 = vsel %vm1265, %v1297, %v1007
      %v1330 = vsel %vm1266, %v1298, %v1014
      %v1331 = vsel %vm1267, %v1299, %v1021
      %v1332 = vsel %vm1268, %v1300, %v1028
      %v1333 = vsel %vm1269, %v1301, %v1035
      %v1334 = vsel %vm1270, %v1302, %v1042
      %v1335 = vsel %vm1271, %v1303, %v1049
      %v1336 = vsel %vm1272, %v1304, %v1056
      %v1337 = vsel %vm1273, %v1305, %v1063
      %v1338 = vsel %vm1274, %v1306, %v1070
      %v1339 = vsel %vm1275, %v1307, %v1077
      %v1340 = vsel %vm1276, %v1308, %v1084
      %v1341 = vsel %vm1277, %v1309, %v1091
      %v1342 = vsel %vm1278, %v1310, %v1098
      %v1343 = vsel %vm1279, %v1311, %v1105
      %v1344 = vsel %vm1280, %v1312, %v1112
      %v1345 = vsel %vm1281, %v1313, %v1119
      %v1346 = vsel %vm1282, %v1314, %v1126
      %v1347 = vsel %vm1283, %v1315, %v1133
      %v1348 = vsel %vm1284, %v1316, %v1140
      %v1349 = vsel %vm1285, %v1317, %v1147
      %v1350 = vsel %vm1286, %v1318, %v1154
      %v1351 = vsel %vm1287, %v1319, %v1161
      %v1352 = vsel %vm1288, %v1320, %v1168
      %v1353 = vsel %vm1289, %v1321, %v1175
      %v1354 = vsel %vm1290, %v1322, %v1182
      %v1355 = vsel %vm1291, %v1323, %v1189
      %v1356 = vsel %vm1292, %v1324, %v1196
      %vm1357 = vcmp.ne.s32.totalorder %v1325, 0
      %vm1358 = vcmp.ne.s32.totalorder %v1326, 0
      %vm1359 = vcmp.ne.s32.totalorder %v1327, 0
      %vm1360 = vcmp.ne.s32.totalorder %v1328, 0
      %vm1361 = vcmp.ne.s32.totalorder %v1329, 0
      %vm1362 = vcmp.ne.s32.totalorder %v1330, 0
      %vm1363 = vcmp.ne.s32.totalorder %v1331, 0
      %vm1364 = vcmp.ne.s32.totalorder %v1332, 0
      %vm1365 = vcmp.ne.s32.totalorder %v1333, 0
      %vm1366 = vcmp.ne.s32.totalorder %v1334, 0
      %vm1367 = vcmp.ne.s32.totalorder %v1335, 0
      %vm1368 = vcmp.ne.s32.totalorder %v1336, 0
      %vm1369 = vcmp.ne.s32.totalorder %v1337, 0
      %vm1370 = vcmp.ne.s32.totalorder %v1338, 0
      %vm1371 = vcmp.ne.s32.totalorder %v1339, 0
      %vm1372 = vcmp.ne.s32.totalorder %v1340, 0
      %vm1373 = vcmp.ne.s32.totalorder %v1341, 0
      %vm1374 = vcmp.ne.s32.totalorder %v1342, 0
      %vm1375 = vcmp.ne.s32.totalorder %v1343, 0
      %vm1376 = vcmp.ne.s32.totalorder %v1344, 0
      %vm1377 = vcmp.ne.s32.totalorder %v1345, 0
      %vm1378 = vcmp.ne.s32.totalorder %v1346, 0
      %vm1379 = vcmp.ne.s32.totalorder %v1347, 0
      %vm1380 = vcmp.ne.s32.totalorder %v1348, 0
      %vm1381 = vcmp.ne.s32.totalorder %v1349, 0
      %vm1382 = vcmp.ne.s32.totalorder %v1350, 0
      %vm1383 = vcmp.ne.s32.totalorder %v1351, 0
      %vm1384 = vcmp.ne.s32.totalorder %v1352, 0
      %vm1385 = vcmp.ne.s32.totalorder %v1353, 0
      %vm1386 = vcmp.ne.s32.totalorder %v1354, 0
      %vm1387 = vcmp.ne.s32.totalorder %v1355, 0
      %vm1388 = vcmp.ne.s32.totalorder %v1356, 0
      %vm1389 = vcmp.ne.s32.totalorder %v1325, 15
      %vm1390 = vcmp.ne.s32.totalorder %v1326, 15
      %vm1391 = vcmp.ne.s32.totalorder %v1327, 15
      %vm1392 = vcmp.ne.s32.totalorder %v1328, 15
      %vm1393 = vcmp.ne.s32.totalorder %v1329, 15
      %vm1394 = vcmp.ne.s32.totalorder %v1330, 15
      %vm1395 = vcmp.ne.s32.totalorder %v1331, 15
      %vm1396 = vcmp.ne.s32.totalorder %v1332, 15
      %vm1397 = vcmp.ne.s32.totalorder %v1333, 15
      %vm1398 = vcmp.ne.s32.totalorder %v1334, 15
      %vm1399 = vcmp.ne.s32.totalorder %v1335, 15
      %vm1400 = vcmp.ne.s32.totalorder %v1336, 15
      %vm1401 = vcmp.ne.s32.totalorder %v1337, 15
      %vm1402 = vcmp.ne.s32.totalorder %v1338, 15
      %vm1403 = vcmp.ne.s32.totalorder %v1339, 15
      %vm1404 = vcmp.ne.s32.totalorder %v1340, 15
      %vm1405 = vcmp.ne.s32.totalorder %v1341, 15
      %vm1406 = vcmp.ne.s32.totalorder %v1342, 15
      %vm1407 = vcmp.ne.s32.totalorder %v1343, 15
      %vm1408 = vcmp.ne.s32.totalorder %v1344, 15
      %vm1409 = vcmp.ne.s32.totalorder %v1345, 15
      %vm1410 = vcmp.ne.s32.totalorder %v1346, 15
      %vm1411 = vcmp.ne.s32.totalorder %v1347, 15
      %vm1412 = vcmp.ne.s32.totalorder %v1348, 15
      %vm1413 = vcmp.ne.s32.totalorder %v1349, 15
      %vm1414 = vcmp.ne.s32.totalorder %v1350, 15
      %vm1415 = vcmp.ne.s32.totalorder %v1351, 15
      %vm1416 = vcmp.ne.s32.totalorder %v1352, 15
      %vm1417 = vcmp.ne.s32.totalorder %v1353, 15
      %vm1418 = vcmp.ne.s32.totalorder %v1354, 15
      %vm1419 = vcmp.ne.s32.totalorder %v1355, 15
      %vm1420 = vcmp.ne.s32.totalorder %v1356, 15
      %v1421 = vsel %vm1357, 1, 0
      %v1422 = vsel %vm1358, 1, 0
      %v1423 = vsel %vm1359, 1, 0
      %v1424 = vsel %vm1360, 1, 0
      %v1425 = vsel %vm1361, 1, 0
      %v1426 = vsel %vm1362, 1, 0
      %v1427 = vsel %vm1363, 1, 0
      %v1428 = vsel %vm1364, 1, 0
      %v1429 = vsel %vm1365, 1, 0
      %v1430 = vsel %vm1366, 1, 0
      %v1431 = vsel %vm1367, 1, 0
      %v1432 = vsel %vm1368, 1, 0
      %v1433 = vsel %vm1369, 1, 0
      %v1434 = vsel %vm1370, 1, 0
      %v1435 = vsel %vm1371, 1, 0
      %v1436 = vsel %vm1372, 1, 0
      %v1437 = vsel %vm1373, 1, 0
      %v1438 = vsel %vm1374, 1, 0
      %v1439 = vsel %vm1375, 1, 0
      %v1440 = vsel %vm1376, 1, 0
      %v1441 = vsel %vm1377, 1, 0
      %v1442 = vsel %vm1378, 1, 0
      %v1443 = vsel %vm1379, 1, 0
      %v1444 = vsel %vm1380, 1, 0
      %v1445 = vsel %vm1381, 1, 0
      %v1446 = vsel %vm1382, 1, 0
      %v1447 = vsel %vm1383, 1, 0
      %v1448 = vsel %vm1384, 1, 0
      %v1449 = vsel %vm1385, 1, 0
      %v1450 = vsel %vm1386, 1, 0
      %v1451 = vsel %vm1387, 1, 0
      %v1452 = vsel %vm1388, 1, 0
      %vm1453 = vcmp.eq.s32.totalorder %v1421, 1
      %vm1454 = vcmp.eq.s32.totalorder %v1422, 1
      %vm1455 = vcmp.eq.s32.totalorder %v1423, 1
      %vm1456 = vcmp.eq.s32.totalorder %v1424, 1
      %vm1457 = vcmp.eq.s32.totalorder %v1425, 1
      %vm1458 = vcmp.eq.s32.totalorder %v1426, 1
      %vm1459 = vcmp.eq.s32.totalorder %v1427, 1
      %vm1460 = vcmp.eq.s32.totalorder %v1428, 1
      %vm1461 = vcmp.eq.s32.totalorder %v1429, 1
      %vm1462 = vcmp.eq.s32.totalorder %v1430, 1
      %vm1463 = vcmp.eq.s32.totalorder %v1431, 1
      %vm1464 = vcmp.eq.s32.totalorder %v1432, 1
      %vm1465 = vcmp.eq.s32.totalorder %v1433, 1
      %vm1466 = vcmp.eq.s32.totalorder %v1434, 1
      %vm1467 = vcmp.eq.s32.totalorder %v1435, 1
      %vm1468 = vcmp.eq.s32.totalorder %v1436, 1
      %vm1469 = vcmp.eq.s32.totalorder %v1437, 1
      %vm1470 = vcmp.eq.s32.totalorder %v1438, 1
      %vm1471 = vcmp.eq.s32.totalorder %v1439, 1
      %vm1472 = vcmp.eq.s32.totalorder %v1440, 1
      %vm1473 = vcmp.eq.s32.totalorder %v1441, 1
      %vm1474 = vcmp.eq.s32.totalorder %v1442, 1
      %vm1475 = vcmp.eq.s32.totalorder %v1443, 1
      %vm1476 = vcmp.eq.s32.totalorder %v1444, 1
      %vm1477 = vcmp.eq.s32.totalorder %v1445, 1
      %vm1478 = vcmp.eq.s32.totalorder %v1446, 1
      %vm1479 = vcmp.eq.s32.totalorder %v1447, 1
      %vm1480 = vcmp.eq.s32.totalorder %v1448, 1
      %vm1481 = vcmp.eq.s32.totalorder %v1449, 1
      %vm1482 = vcmp.eq.s32.totalorder %v1450, 1
      %vm1483 = vcmp.eq.s32.totalorder %v1451, 1
      %vm1484 = vcmp.eq.s32.totalorder %v1452, 1
      %vm1516 = vcmask 1040384
      %v1517 = vrot.slane 0.0, 7
      %v1518 = vsel %vm1516, %v1517, %v1517
      %v1519 = vrot.slane %v908, 7
      %v1520 = vsel %vm1516, %v1517, %v1519
      %v1521 = vrot.slane %v909, 7
      %v1522 = vsel %vm1516, %v1519, %v1521
      %v1523 = vrot.slane %v910, 7
      %v1524 = vsel %vm1516, %v1521, %v1523
      %v1525 = vrot.slane %v911, 7
      %v1526 = vsel %vm1516, %v1523, %v1525
      %v1527 = vrot.slane %v912, 7
      %v1528 = vsel %vm1516, %v1525, %v1527
      %v1529 = vrot.slane %v913, 7
      %v1530 = vsel %vm1516, %v1527, %v1529
      %v1531 = vrot.slane %v914, 7
      %v1532 = vsel %vm1516, %v1529, %v1531
      %v1533 = vrot.slane %v915, 7
      %v1534 = vsel %vm1516, %v1531, %v1533
      %v1535 = vrot.slane %v916, 7
      %v1536 = vsel %vm1516, %v1533, %v1535
      %v1537 = vrot.slane %v917, 7
      %v1538 = vsel %vm1516, %v1535, %v1537
      %v1539 = vrot.slane %v918, 7
      %v1540 = vsel %vm1516, %v1537, %v1539
      %v1541 = vrot.slane %v919, 7
      %v1542 = vsel %vm1516, %v1539, %v1541
      %v1543 = vrot.slane %v920, 7
      %v1544 = vsel %vm1516, %v1541, %v1543
      %v1545 = vrot.slane %v921, 7
      %v1546 = vsel %vm1516, %v1543, %v1545
      %v1547 = vrot.slane %v922, 7
      %v1548 = vsel %vm1516, %v1545, %v1547
      %v1549 = vrot.slane %v923, 7
      %v1550 = vsel %vm1516, %v1547, %v1549
      %v1551 = vrot.slane %v924, 7
      %v1552 = vsel %vm1516, %v1549, %v1551
      %v1553 = vrot.slane %v925, 7
      %v1554 = vsel %vm1516, %v1551, %v1553
      %v1555 = vrot.slane %v926, 7
      %v1556 = vsel %vm1516, %v1553, %v1555
      %v1557 = vrot.slane %v927, 7
      %v1558 = vsel %vm1516, %v1555, %v1557
      %v1559 = vrot.slane %v928, 7
      %v1560 = vsel %vm1516, %v1557, %v1559
      %v1561 = vrot.slane %v929, 7
      %v1562 = vsel %vm1516, %v1559, %v1561
      %v1563 = vrot.slane %v930, 7
      %v1564 = vsel %vm1516, %v1561, %v1563
      %v1565 = vrot.slane %v931, 7
      %v1566 = vsel %vm1516, %v1563, %v1565
      %v1567 = vrot.slane %v932, 7
      %v1568 = vsel %vm1516, %v1565, %v1567
      %v1569 = vrot.slane %v933, 7
      %v1570 = vsel %vm1516, %v1567, %v1569
      %v1571 = vrot.slane %v934, 7
      %v1572 = vsel %vm1516, %v1569, %v1571
      %v1573 = vrot.slane %v935, 7
      %v1574 = vsel %vm1516, %v1571, %v1573
      %v1575 = vrot.slane %v936, 7
      %v1576 = vsel %vm1516, %v1573, %v1575
      %v1577 = vrot.slane %v937, 7
      %v1578 = vsel %vm1516, %v1575, %v1577
      %v1610 = vsel %vm1453, %v1518, 0.0
      %v1611 = vsel %vm1454, %v1518, 0.0
      %v1612 = vsel %vm1455, %v1520, 0.0
      %v1613 = vsel %vm1456, %v1522, 0.0
      %v1614 = vsel %vm1457, %v1524, 0.0
      %v1615 = vsel %vm1458, %v1526, 0.0
      %v1616 = vsel %vm1459, %v1528, 0.0
      %v1617 = vsel %vm1460, %v1530, 0.0
      %v1618 = vsel %vm1461, %v1532, 0.0
      %v1619 = vsel %vm1462, %v1534, 0.0
      %v1620 = vsel %vm1463, %v1536, 0.0
      %v1621 = vsel %vm1464, %v1538, 0.0
      %v1622 = vsel %vm1465, %v1540, 0.0
      %v1623 = vsel %vm1466, %v1542, 0.0
      %v1624 = vsel %vm1467, %v1544, 0.0
      %v1625 = vsel %vm1468, %v1546, 0.0
      %v1626 = vsel %vm1469, %v1548, 0.0
      %v1627 = vsel %vm1470, %v1550, 0.0
      %v1628 = vsel %vm1471, %v1552, 0.0
      %v1629 = vsel %vm1472, %v1554, 0.0
      %v1630 = vsel %vm1473, %v1556, 0.0
      %v1631 = vsel %vm1474, %v1558, 0.0
      %v1632 = vsel %vm1475, %v1560, 0.0
      %v1633 = vsel %vm1476, %v1562, 0.0
      %v1634 = vsel %vm1477, %v1564, 0.0
      %v1635 = vsel %vm1478, %v1566, 0.0
      %v1636 = vsel %vm1479, %v1568, 0.0
      %v1637 = vsel %vm1480, %v1570, 0.0
      %v1638 = vsel %vm1481, %v1572, 0.0
      %v1639 = vsel %vm1482, %v1574, 0.0
      %v1640 = vsel %vm1483, %v1576, 0.0
      %v1641 = vsel %vm1484, %v1578, 0.0
      %v1642 = vld [vmem:[%s5] sm:$0xf]
      %s1643 = scalar_lea.vmem %s5, 4
      %v1644 = vld [vmem:[%s1643] sm:$0xf]
      %v1645 = vsel %vm630, 0.0, 0
      %v1647 = vsel %vm630, %v908, 0
      %v1649 = vsel %vm630, %v909, 0
      %v1651 = vsel %vm630, %v910, 0
      %v1653 = vsel %vm630, %v911, 0
      %v1655 = vsel %vm630, %v912, 0
      %v1657 = vsel %vm630, %v913, 0
      %v1659 = vsel %vm630, %v914, 0
      %v1661 = vsel %vm630, %v915, 0
      %v1663 = vsel %vm630, %v916, 0
      %v1665 = vsel %vm630, %v917, 0
      %v1667 = vsel %vm630, %v918, 0
      %v1669 = vsel %vm630, %v919, 0
      %v1671 = vsel %vm630, %v920, 0
      %v1673 = vsel %vm630, %v921, 0
      %v1675 = vsel %vm630, %v922, 0
      %v1677 = vsel %vm630, %v923, 0
      %v1679 = vsel %vm630, %v924, 0
      %v1681 = vsel %vm630, %v925, 0
      %v1683 = vsel %vm630, %v926, 0
      %v1685 = vsel %vm630, %v927, 0
      %v1687 = vsel %vm630, %v928, 0
      %v1689 = vsel %vm630, %v929, 0
      %v1691 = vsel %vm630, %v930, 0
      %v1693 = vsel %vm630, %v931, 0
      %v1695 = vsel %vm630, %v932, 0
      %v1697 = vsel %vm630, %v933, 0
      %v1699 = vsel %vm630, %v934, 0
      %v1701 = vsel %vm630, %v935, 0
      %v1703 = vsel %vm630, %v936, 0
      %v1705 = vsel %vm630, %v937, 0
      %v1708 = vsel %vm727, %v1644, 0
      %1710 = vmatpush.msra.mxu0 0.0
      %1711 = vmatpush.msra.mxu0 0.0
      %1712 = vmatpush.msra.mxu0 0.0
      %1713 = vmatpush.msra.mxu0 0.0
      %1714 = vmatpush.msra.mxu0 0.0
      %1715 = vmatpush.msra.mxu0 0.0
      %1716 = vmatpush.msra.mxu0 0.0
      %1717 = vmatpush.msra.mxu0 0.0
      %1718 = vmatpush.msra.mxu0 0.0
      %1719 = vmatpush.msra.mxu0 0.0
      %1720 = vmatpush.msra.mxu0 0.0
      %1721 = vmatpush.msra.mxu0 0.0
      %1722 = vmatpush.msra.mxu0 0.0
      %1723 = vmatpush.msra.mxu0 0.0
      %1724 = vmatpush.msra.mxu0 0.0
      %1725 = vmatpush.msra.mxu0 %v1708
      %1726 = vmatmul.f32.gmra.mxu0 %v1645
      %v1727 = vpop.f32.mrf.mxu0
      %v1728 = vadd.f32 0.0, %v1727
      %1729 = vmatmul.f32.gmra.mxu0 %v1645
      %v1730 = vpop.f32.mrf.mxu0
      %v1731 = vadd.f32 0.0, %v1730
      %1732 = vmatmul.f32.gmra.mxu0 %v1647
      %v1733 = vpop.f32.mrf.mxu0
      %v1734 = vadd.f32 0.0, %v1733
      %1735 = vmatmul.f32.gmra.mxu0 %v1649
      %v1736 = vpop.f32.mrf.mxu0
      %v1737 = vadd.f32 0.0, %v1736
      %1738 = vmatmul.f32.gmra.mxu0 %v1651
      %v1739 = vpop.f32.mrf.mxu0
      %v1740 = vadd.f32 0.0, %v1739
      %1741 = vmatmul.f32.gmra.mxu0 %v1653
      %v1742 = vpop.f32.mrf.mxu0
      %v1743 = vadd.f32 0.0, %v1742
      %1744 = vmatmul.f32.gmra.mxu0 %v1655
      %v1745 = vpop.f32.mrf.mxu0
      %v1746 = vadd.f32 0.0, %v1745
      %1747 = vmatmul.f32.gmra.mxu0 %v1657
      %v1748 = vpop.f32.mrf.mxu0
      %v1749 = vadd.f32 0.0, %v1748
      %1750 = vmatmul.f32.gmra.mxu0 %v1659
      %v1751 = vpop.f32.mrf.mxu0
      %v1752 = vadd.f32 0.0, %v1751
      %1753 = vmatmul.f32.gmra.mxu0 %v1661
      %v1754 = vpop.f32.mrf.mxu0
      %v1755 = vadd.f32 0.0, %v1754
      %1756 = vmatmul.f32.gmra.mxu0 %v1663
      %v1757 = vpop.f32.mrf.mxu0
      %v1758 = vadd.f32 0.0, %v1757
      %1759 = vmatmul.f32.gmra.mxu0 %v1665
      %v1760 = vpop.f32.mrf.mxu0
      %v1761 = vadd.f32 0.0, %v1760
      %1762 = vmatmul.f32.gmra.mxu0 %v1667
      %v1763 = vpop.f32.mrf.mxu0
      %v1764 = vadd.f32 0.0, %v1763
      %1765 = vmatmul.f32.gmra.mxu0 %v1669
      %v1766 = vpop.f32.mrf.mxu0
      %v1767 = vadd.f32 0.0, %v1766
      %1768 = vmatmul.f32.gmra.mxu0 %v1671
      %v1769 = vpop.f32.mrf.mxu0
      %v1770 = vadd.f32 0.0, %v1769
      %1771 = vmatmul.f32.gmra.mxu0 %v1673
      %v1772 = vpop.f32.mrf.mxu0
      %v1773 = vadd.f32 0.0, %v1772
      %1774 = vmatmul.f32.gmra.mxu0 %v1675
      %v1775 = vpop.f32.mrf.mxu0
      %v1776 = vadd.f32 0.0, %v1775
      %1777 = vmatmul.f32.gmra.mxu0 %v1677
      %v1778 = vpop.f32.mrf.mxu0
      %v1779 = vadd.f32 0.0, %v1778
      %1780 = vmatmul.f32.gmra.mxu0 %v1679
      %v1781 = vpop.f32.mrf.mxu0
      %v1782 = vadd.f32 0.0, %v1781
      %1783 = vmatmul.f32.gmra.mxu0 %v1681
      %v1784 = vpop.f32.mrf.mxu0
      %v1785 = vadd.f32 0.0, %v1784
      %1786 = vmatmul.f32.gmra.mxu0 %v1683
      %v1787 = vpop.f32.mrf.mxu0
      %v1788 = vadd.f32 0.0, %v1787
      %1789 = vmatmul.f32.gmra.mxu0 %v1685
      %v1790 = vpop.f32.mrf.mxu0
      %v1791 = vadd.f32 0.0, %v1790
      %1792 = vmatmul.f32.gmra.mxu0 %v1687
      %v1793 = vpop.f32.mrf.mxu0
      %v1794 = vadd.f32 0.0, %v1793
      %1795 = vmatmul.f32.gmra.mxu0 %v1689
      %v1796 = vpop.f32.mrf.mxu0
      %v1797 = vadd.f32 0.0, %v1796
      %1798 = vmatmul.f32.gmra.mxu0 %v1691
      %v1799 = vpop.f32.mrf.mxu0
      %v1800 = vadd.f32 0.0, %v1799
      %1801 = vmatmul.f32.gmra.mxu0 %v1693
      %v1802 = vpop.f32.mrf.mxu0
      %v1803 = vadd.f32 0.0, %v1802
      %1804 = vmatmul.f32.gmra.mxu0 %v1695
      %v1805 = vpop.f32.mrf.mxu0
      %v1806 = vadd.f32 0.0, %v1805
      %1807 = vmatmul.f32.gmra.mxu0 %v1697
      %v1808 = vpop.f32.mrf.mxu0
      %v1809 = vadd.f32 0.0, %v1808
      %1810 = vmatmul.f32.gmra.mxu0 %v1699
      %v1811 = vpop.f32.mrf.mxu0
      %v1812 = vadd.f32 0.0, %v1811
      %1813 = vmatmul.f32.gmra.mxu0 %v1701
      %v1814 = vpop.f32.mrf.mxu0
      %v1815 = vadd.f32 0.0, %v1814
      %1816 = vmatmul.f32.gmra.mxu0 %v1703
      %v1817 = vpop.f32.mrf.mxu0
      %v1818 = vadd.f32 0.0, %v1817
      %1819 = vmatmul.f32.gmra.mxu0 %v1705
      %v1820 = vpop.f32.mrf.mxu0
      %v1821 = vadd.f32 0.0, %v1820
      %1822 = vdwg.mxu0
      %v1824 = vsel %vm630, %v1610, 0
      %v1827 = vsel %vm630, %v1611, 0
      %v1830 = vsel %vm630, %v1612, 0
      %v1833 = vsel %vm630, %v1613, 0
      %v1836 = vsel %vm630, %v1614, 0
      %v1839 = vsel %vm630, %v1615, 0
      %v1842 = vsel %vm630, %v1616, 0
      %v1845 = vsel %vm630, %v1617, 0
      %v1848 = vsel %vm630, %v1618, 0
      %v1851 = vsel %vm630, %v1619, 0
      %v1854 = vsel %vm630, %v1620, 0
      %v1857 = vsel %vm630, %v1621, 0
      %v1860 = vsel %vm630, %v1622, 0
      %v1863 = vsel %vm630, %v1623, 0
      %v1866 = vsel %vm630, %v1624, 0
      %v1869 = vsel %vm630, %v1625, 0
      %v1872 = vsel %vm630, %v1626, 0
      %v1875 = vsel %vm630, %v1627, 0
      %v1878 = vsel %vm630, %v1628, 0
      %v1881 = vsel %vm630, %v1629, 0
      %v1884 = vsel %vm630, %v1630, 0
      %v1887 = vsel %vm630, %v1631, 0
      %v1890 = vsel %vm630, %v1632, 0
      %v1893 = vsel %vm630, %v1633, 0
      %v1896 = vsel %vm630, %v1634, 0
      %v1899 = vsel %vm630, %v1635, 0
      %v1902 = vsel %vm630, %v1636, 0
      %v1905 = vsel %vm630, %v1637, 0
      %v1908 = vsel %vm630, %v1638, 0
      %v1911 = vsel %vm630, %v1639, 0
      %v1914 = vsel %vm630, %v1640, 0
      %v1917 = vsel %vm630, %v1641, 0
      %v1920 = vsel %vm727, %v1642, 0
      %1922 = vmatpush.msra.mxu0 0.0
      %1923 = vmatpush.msra.mxu0 0.0
      %1924 = vmatpush.msra.mxu0 0.0
      %1925 = vmatpush.msra.mxu0 0.0
      %1926 = vmatpush.msra.mxu0 0.0
      %1927 = vmatpush.msra.mxu0 0.0
      %1928 = vmatpush.msra.mxu0 0.0
      %1929 = vmatpush.msra.mxu0 0.0
      %1930 = vmatpush.msra.mxu0 0.0
      %1931 = vmatpush.msra.mxu0 0.0
      %1932 = vmatpush.msra.mxu0 0.0
      %1933 = vmatpush.msra.mxu0 0.0
      %1934 = vmatpush.msra.mxu0 0.0
      %1935 = vmatpush.msra.mxu0 0.0
      %1936 = vmatpush.msra.mxu0 0.0
      %1937 = vmatpush.msra.mxu0 %v1920
      %1938 = vmatmul.f32.gmra.mxu0 %v1824
      %v1939 = vpop.f32.mrf.mxu0
      %v1940 = vadd.f32 %v1728, %v1939
      %1941 = vmatmul.f32.gmra.mxu0 %v1827
      %v1942 = vpop.f32.mrf.mxu0
      %v1943 = vadd.f32 %v1731, %v1942
      %1944 = vmatmul.f32.gmra.mxu0 %v1830
      %v1945 = vpop.f32.mrf.mxu0
      %v1946 = vadd.f32 %v1734, %v1945
      %1947 = vmatmul.f32.gmra.mxu0 %v1833
      %v1948 = vpop.f32.mrf.mxu0
      %v1949 = vadd.f32 %v1737, %v1948
      %1950 = vmatmul.f32.gmra.mxu0 %v1836
      %v1951 = vpop.f32.mrf.mxu0
      %v1952 = vadd.f32 %v1740, %v1951
      %1953 = vmatmul.f32.gmra.mxu0 %v1839
      %v1954 = vpop.f32.mrf.mxu0
      %v1955 = vadd.f32 %v1743, %v1954
      %1956 = vmatmul.f32.gmra.mxu0 %v1842
      %v1957 = vpop.f32.mrf.mxu0
      %v1958 = vadd.f32 %v1746, %v1957
      %1959 = vmatmul.f32.gmra.mxu0 %v1845
      %v1960 = vpop.f32.mrf.mxu0
      %v1961 = vadd.f32 %v1749, %v1960
      %1962 = vmatmul.f32.gmra.mxu0 %v1848
      %v1963 = vpop.f32.mrf.mxu0
      %v1964 = vadd.f32 %v1752, %v1963
      %1965 = vmatmul.f32.gmra.mxu0 %v1851
      %v1966 = vpop.f32.mrf.mxu0
      %v1967 = vadd.f32 %v1755, %v1966
      %1968 = vmatmul.f32.gmra.mxu0 %v1854
      %v1969 = vpop.f32.mrf.mxu0
      %v1970 = vadd.f32 %v1758, %v1969
      %1971 = vmatmul.f32.gmra.mxu0 %v1857
      %v1972 = vpop.f32.mrf.mxu0
      %v1973 = vadd.f32 %v1761, %v1972
      %1974 = vmatmul.f32.gmra.mxu0 %v1860
      %v1975 = vpop.f32.mrf.mxu0
      %v1976 = vadd.f32 %v1764, %v1975
      %1977 = vmatmul.f32.gmra.mxu0 %v1863
      %v1978 = vpop.f32.mrf.mxu0
      %v1979 = vadd.f32 %v1767, %v1978
      %1980 = vmatmul.f32.gmra.mxu0 %v1866
      %v1981 = vpop.f32.mrf.mxu0
      %v1982 = vadd.f32 %v1770, %v1981
      %1983 = vmatmul.f32.gmra.mxu0 %v1869
      %v1984 = vpop.f32.mrf.mxu0
      %v1985 = vadd.f32 %v1773, %v1984
      %1986 = vmatmul.f32.gmra.mxu0 %v1872
      %v1987 = vpop.f32.mrf.mxu0
      %v1988 = vadd.f32 %v1776, %v1987
      %1989 = vmatmul.f32.gmra.mxu0 %v1875
      %v1990 = vpop.f32.mrf.mxu0
      %v1991 = vadd.f32 %v1779, %v1990
      %1992 = vmatmul.f32.gmra.mxu0 %v1878
      %v1993 = vpop.f32.mrf.mxu0
      %v1994 = vadd.f32 %v1782, %v1993
      %1995 = vmatmul.f32.gmra.mxu0 %v1881
      %v1996 = vpop.f32.mrf.mxu0
      %v1997 = vadd.f32 %v1785, %v1996
      %1998 = vmatmul.f32.gmra.mxu0 %v1884
      %v1999 = vpop.f32.mrf.mxu0
      %v2000 = vadd.f32 %v1788, %v1999
      %2001 = vmatmul.f32.gmra.mxu0 %v1887
      %v2002 = vpop.f32.mrf.mxu0
      %v2003 = vadd.f32 %v1791, %v2002
      %2004 = vmatmul.f32.gmra.mxu0 %v1890
      %v2005 = vpop.f32.mrf.mxu0
      %v2006 = vadd.f32 %v1794, %v2005
      %2007 = vmatmul.f32.gmra.mxu0 %v1893
      %v2008 = vpop.f32.mrf.mxu0
      %v2009 = vadd.f32 %v1797, %v2008
      %2010 = vmatmul.f32.gmra.mxu0 %v1896
      %v2011 = vpop.f32.mrf.mxu0
      %v2012 = vadd.f32 %v1800, %v2011
      %2013 = vmatmul.f32.gmra.mxu0 %v1899
      %v2014 = vpop.f32.mrf.mxu0
      %v2015 = vadd.f32 %v1803, %v2014
      %2016 = vmatmul.f32.gmra.mxu0 %v1902
      %v2017 = vpop.f32.mrf.mxu0
      %v2018 = vadd.f32 %v1806, %v2017
      %2019 = vmatmul.f32.gmra.mxu0 %v1905
      %v2020 = vpop.f32.mrf.mxu0
      %v2021 = vadd.f32 %v1809, %v2020
      %2022 = vmatmul.f32.gmra.mxu0 %v1908
      %v2023 = vpop.f32.mrf.mxu0
      %v2024 = vadd.f32 %v1812, %v2023
      %2025 = vmatmul.f32.gmra.mxu0 %v1911
      %v2026 = vpop.f32.mrf.mxu0
      %v2027 = vadd.f32 %v1815, %v2026
      %2028 = vmatmul.f32.gmra.mxu0 %v1914
      %v2029 = vpop.f32.mrf.mxu0
      %v2030 = vadd.f32 %v1818, %v2029
      %2031 = vmatmul.f32.gmra.mxu0 %v1917
      %v2032 = vpop.f32.mrf.mxu0
      %v2033 = vadd.f32 %v1821, %v2032
      %2034 = vdwg.mxu0
      %v2035 = vsel %vm1389, 1, 0
      %v2036 = vsel %vm1390, 1, 0
      %v2037 = vsel %vm1391, 1, 0
      %v2038 = vsel %vm1392, 1, 0
      %v2039 = vsel %vm1393, 1, 0
      %v2040 = vsel %vm1394, 1, 0
      %v2041 = vsel %vm1395, 1, 0
      %v2042 = vsel %vm1396, 1, 0
      %v2043 = vsel %vm1397, 1, 0
      %v2044 = vsel %vm1398, 1, 0
      %v2045 = vsel %vm1399, 1, 0
      %v2046 = vsel %vm1400, 1, 0
      %v2047 = vsel %vm1401, 1, 0
      %v2048 = vsel %vm1402, 1, 0
      %v2049 = vsel %vm1403, 1, 0
      %v2050 = vsel %vm1404, 1, 0
      %v2051 = vsel %vm1405, 1, 0
      %v2052 = vsel %vm1406, 1, 0
      %v2053 = vsel %vm1407, 1, 0
      %v2054 = vsel %vm1408, 1, 0
      %v2055 = vsel %vm1409, 1, 0
      %v2056 = vsel %vm1410, 1, 0
      %v2057 = vsel %vm1411, 1, 0
      %v2058 = vsel %vm1412, 1, 0
      %v2059 = vsel %vm1413, 1, 0
      %v2060 = vsel %vm1414, 1, 0
      %v2061 = vsel %vm1415, 1, 0
      %v2062 = vsel %vm1416, 1, 0
      %v2063 = vsel %vm1417, 1, 0
      %v2064 = vsel %vm1418, 1, 0
      %v2065 = vsel %vm1419, 1, 0
      %v2066 = vsel %vm1420, 1, 0
      %vm2067 = vcmp.eq.s32.totalorder %v2035, 1
      %vm2068 = vcmp.eq.s32.totalorder %v2036, 1
      %vm2069 = vcmp.eq.s32.totalorder %v2037, 1
      %vm2070 = vcmp.eq.s32.totalorder %v2038, 1
      %vm2071 = vcmp.eq.s32.totalorder %v2039, 1
      %vm2072 = vcmp.eq.s32.totalorder %v2040, 1
      %vm2073 = vcmp.eq.s32.totalorder %v2041, 1
      %vm2074 = vcmp.eq.s32.totalorder %v2042, 1
      %vm2075 = vcmp.eq.s32.totalorder %v2043, 1
      %vm2076 = vcmp.eq.s32.totalorder %v2044, 1
      %vm2077 = vcmp.eq.s32.totalorder %v2045, 1
      %vm2078 = vcmp.eq.s32.totalorder %v2046, 1
      %vm2079 = vcmp.eq.s32.totalorder %v2047, 1
      %vm2080 = vcmp.eq.s32.totalorder %v2048, 1
      %vm2081 = vcmp.eq.s32.totalorder %v2049, 1
      %vm2082 = vcmp.eq.s32.totalorder %v2050, 1
      %vm2083 = vcmp.eq.s32.totalorder %v2051, 1
      %vm2084 = vcmp.eq.s32.totalorder %v2052, 1
      %vm2085 = vcmp.eq.s32.totalorder %v2053, 1
      %vm2086 = vcmp.eq.s32.totalorder %v2054, 1
      %vm2087 = vcmp.eq.s32.totalorder %v2055, 1
      %vm2088 = vcmp.eq.s32.totalorder %v2056, 1
      %vm2089 = vcmp.eq.s32.totalorder %v2057, 1
      %vm2090 = vcmp.eq.s32.totalorder %v2058, 1
      %vm2091 = vcmp.eq.s32.totalorder %v2059, 1
      %vm2092 = vcmp.eq.s32.totalorder %v2060, 1
      %vm2093 = vcmp.eq.s32.totalorder %v2061, 1
      %vm2094 = vcmp.eq.s32.totalorder %v2062, 1
      %vm2095 = vcmp.eq.s32.totalorder %v2063, 1
      %vm2096 = vcmp.eq.s32.totalorder %v2064, 1
      %vm2097 = vcmp.eq.s32.totalorder %v2065, 1
      %vm2098 = vcmp.eq.s32.totalorder %v2066, 1
      %vm2100 = vcmask 1046528
      %v2101 = vrot.slane 0.0, 1
      %v2102 = vsel %vm2100, %v2101, %v2101
      %v2103 = vrot.slane %v908, 1
      %v2104 = vsel %vm2100, %v2101, %v2103
      %v2105 = vrot.slane %v909, 1
      %v2106 = vsel %vm2100, %v2103, %v2105
      %v2107 = vrot.slane %v910, 1
      %v2108 = vsel %vm2100, %v2105, %v2107
      %v2109 = vrot.slane %v911, 1
      %v2110 = vsel %vm2100, %v2107, %v2109
      %v2111 = vrot.slane %v912, 1
      %v2112 = vsel %vm2100, %v2109, %v2111
      %v2113 = vrot.slane %v913, 1
      %v2114 = vsel %vm2100, %v2111, %v2113
      %v2115 = vrot.slane %v914, 1
      %v2116 = vsel %vm2100, %v2113, %v2115
      %v2117 = vrot.slane %v915, 1
      %v2118 = vsel %vm2100, %v2115, %v2117
      %v2119 = vrot.slane %v916, 1
      %v2120 = vsel %vm2100, %v2117, %v2119
      %v2121 = vrot.slane %v917, 1
      %v2122 = vsel %vm2100, %v2119, %v2121
      %v2123 = vrot.slane %v918, 1
      %v2124 = vsel %vm2100, %v2121, %v2123
      %v2125 = vrot.slane %v919, 1
      %v2126 = vsel %vm2100, %v2123, %v2125
      %v2127 = vrot.slane %v920, 1
      %v2128 = vsel %vm2100, %v2125, %v2127
      %v2129 = vrot.slane %v921, 1
      %v2130 = vsel %vm2100, %v2127, %v2129
      %v2131 = vrot.slane %v922, 1
      %v2132 = vsel %vm2100, %v2129, %v2131
      %v2133 = vrot.slane %v923, 1
      %v2134 = vsel %vm2100, %v2131, %v2133
      %v2135 = vrot.slane %v924, 1
      %v2136 = vsel %vm2100, %v2133, %v2135
      %v2137 = vrot.slane %v925, 1
      %v2138 = vsel %vm2100, %v2135, %v2137
      %v2139 = vrot.slane %v926, 1
      %v2140 = vsel %vm2100, %v2137, %v2139
      %v2141 = vrot.slane %v927, 1
      %v2142 = vsel %vm2100, %v2139, %v2141
      %v2143 = vrot.slane %v928, 1
      %v2144 = vsel %vm2100, %v2141, %v2143
      %v2145 = vrot.slane %v929, 1
      %v2146 = vsel %vm2100, %v2143, %v2145
      %v2147 = vrot.slane %v930, 1
      %v2148 = vsel %vm2100, %v2145, %v2147
      %v2149 = vrot.slane %v931, 1
      %v2150 = vsel %vm2100, %v2147, %v2149
      %v2151 = vrot.slane %v932, 1
      %v2152 = vsel %vm2100, %v2149, %v2151
      %v2153 = vrot.slane %v933, 1
      %v2154 = vsel %vm2100, %v2151, %v2153
      %v2155 = vrot.slane %v934, 1
      %v2156 = vsel %vm2100, %v2153, %v2155
      %v2157 = vrot.slane %v935, 1
      %v2158 = vsel %vm2100, %v2155, %v2157
      %v2159 = vrot.slane %v936, 1
      %v2160 = vsel %vm2100, %v2157, %v2159
      %v2161 = vrot.slane %v937, 1
      %v2162 = vsel %vm2100, %v2159, %v2161
      %v2163 = vrot.slane %v938, 1
      %v2164 = vsel %vm2100, %v2161, %v2163
      %v2197 = vsel %vm2067, %v2102, 0.0
      %v2198 = vsel %vm2068, %v2104, 0.0
      %v2199 = vsel %vm2069, %v2106, 0.0
      %v2200 = vsel %vm2070, %v2108, 0.0
      %v2201 = vsel %vm2071, %v2110, 0.0
      %v2202 = vsel %vm2072, %v2112, 0.0
      %v2203 = vsel %vm2073, %v2114, 0.0
      %v2204 = vsel %vm2074, %v2116, 0.0
      %v2205 = vsel %vm2075, %v2118, 0.0
      %v2206 = vsel %vm2076, %v2120, 0.0
      %v2207 = vsel %vm2077, %v2122, 0.0
      %v2208 = vsel %vm2078, %v2124, 0.0
      %v2209 = vsel %vm2079, %v2126, 0.0
      %v2210 = vsel %vm2080, %v2128, 0.0
      %v2211 = vsel %vm2081, %v2130, 0.0
      %v2212 = vsel %vm2082, %v2132, 0.0
      %v2213 = vsel %vm2083, %v2134, 0.0
      %v2214 = vsel %vm2084, %v2136, 0.0
      %v2215 = vsel %vm2085, %v2138, 0.0
      %v2216 = vsel %vm2086, %v2140, 0.0
      %v2217 = vsel %vm2087, %v2142, 0.0
      %v2218 = vsel %vm2088, %v2144, 0.0
      %v2219 = vsel %vm2089, %v2146, 0.0
      %v2220 = vsel %vm2090, %v2148, 0.0
      %v2221 = vsel %vm2091, %v2150, 0.0
      %v2222 = vsel %vm2092, %v2152, 0.0
      %v2223 = vsel %vm2093, %v2154, 0.0
      %v2224 = vsel %vm2094, %v2156, 0.0
      %v2225 = vsel %vm2095, %v2158, 0.0
      %v2226 = vsel %vm2096, %v2160, 0.0
      %v2227 = vsel %vm2097, %v2162, 0.0
      %v2228 = vsel %vm2098, %v2164, 0.0
      %s2229 = scalar_lea.vmem %s5, 8
      %v2230 = vld [vmem:[%s2229] sm:$0xf]
      %v2232 = vsel %vm630, %v2197, 0
      %v2235 = vsel %vm630, %v2198, 0
      %v2238 = vsel %vm630, %v2199, 0
      %v2241 = vsel %vm630, %v2200, 0
      %v2244 = vsel %vm630, %v2201, 0
      %v2247 = vsel %vm630, %v2202, 0
      %v2250 = vsel %vm630, %v2203, 0
      %v2253 = vsel %vm630, %v2204, 0
      %v2256 = vsel %vm630, %v2205, 0
      %v2259 = vsel %vm630, %v2206, 0
      %v2262 = vsel %vm630, %v2207, 0
      %v2265 = vsel %vm630, %v2208, 0
      %v2268 = vsel %vm630, %v2209, 0
      %v2271 = vsel %vm630, %v2210, 0
      %v2274 = vsel %vm630, %v2211, 0
      %v2277 = vsel %vm630, %v2212, 0
      %v2280 = vsel %vm630, %v2213, 0
      %v2283 = vsel %vm630, %v2214, 0
      %v2286 = vsel %vm630, %v2215, 0
      %v2289 = vsel %vm630, %v2216, 0
      %v2292 = vsel %vm630, %v2217, 0
      %v2295 = vsel %vm630, %v2218, 0
      %v2298 = vsel %vm630, %v2219, 0
      %v2301 = vsel %vm630, %v2220, 0
      %v2304 = vsel %vm630, %v2221, 0
      %v2307 = vsel %vm630, %v2222, 0
      %v2310 = vsel %vm630, %v2223, 0
      %v2313 = vsel %vm630, %v2224, 0
      %v2316 = vsel %vm630, %v2225, 0
      %v2319 = vsel %vm630, %v2226, 0
      %v2322 = vsel %vm630, %v2227, 0
      %v2325 = vsel %vm630, %v2228, 0
      %v2328 = vsel %vm727, %v2230, 0
      %2330 = vmatpush.msra.mxu0 0.0
      %2331 = vmatpush.msra.mxu0 0.0
      %2332 = vmatpush.msra.mxu0 0.0
      %2333 = vmatpush.msra.mxu0 0.0
      %2334 = vmatpush.msra.mxu0 0.0
      %2335 = vmatpush.msra.mxu0 0.0
      %2336 = vmatpush.msra.mxu0 0.0
      %2337 = vmatpush.msra.mxu0 0.0
      %2338 = vmatpush.msra.mxu0 0.0
      %2339 = vmatpush.msra.mxu0 0.0
      %2340 = vmatpush.msra.mxu0 0.0
      %2341 = vmatpush.msra.mxu0 0.0
      %2342 = vmatpush.msra.mxu0 0.0
      %2343 = vmatpush.msra.mxu0 0.0
      %2344 = vmatpush.msra.mxu0 0.0
      %2345 = vmatpush.msra.mxu0 %v2328
      %2346 = vmatmul.f32.gmra.mxu0 %v2232
      %v2347 = vpop.f32.mrf.mxu0
      %v2348 = vadd.f32 0.0, %v2347
      %2349 = vmatmul.f32.gmra.mxu0 %v2235
      %v2350 = vpop.f32.mrf.mxu0
      %v2351 = vadd.f32 0.0, %v2350
      %2352 = vmatmul.f32.gmra.mxu0 %v2238
      %v2353 = vpop.f32.mrf.mxu0
      %v2354 = vadd.f32 0.0, %v2353
      %2355 = vmatmul.f32.gmra.mxu0 %v2241
      %v2356 = vpop.f32.mrf.mxu0
      %v2357 = vadd.f32 0.0, %v2356
      %2358 = vmatmul.f32.gmra.mxu0 %v2244
      %v2359 = vpop.f32.mrf.mxu0
      %v2360 = vadd.f32 0.0, %v2359
      %2361 = vmatmul.f32.gmra.mxu0 %v2247
      %v2362 = vpop.f32.mrf.mxu0
      %v2363 = vadd.f32 0.0, %v2362
      %2364 = vmatmul.f32.gmra.mxu0 %v2250
      %v2365 = vpop.f32.mrf.mxu0
      %v2366 = vadd.f32 0.0, %v2365
      %2367 = vmatmul.f32.gmra.mxu0 %v2253
      %v2368 = vpop.f32.mrf.mxu0
      %v2369 = vadd.f32 0.0, %v2368
      %2370 = vmatmul.f32.gmra.mxu0 %v2256
      %v2371 = vpop.f32.mrf.mxu0
      %v2372 = vadd.f32 0.0, %v2371
      %2373 = vmatmul.f32.gmra.mxu0 %v2259
      %v2374 = vpop.f32.mrf.mxu0
      %v2375 = vadd.f32 0.0, %v2374
      %2376 = vmatmul.f32.gmra.mxu0 %v2262
      %v2377 = vpop.f32.mrf.mxu0
      %v2378 = vadd.f32 0.0, %v2377
      %2379 = vmatmul.f32.gmra.mxu0 %v2265
      %v2380 = vpop.f32.mrf.mxu0
      %v2381 = vadd.f32 0.0, %v2380
      %2382 = vmatmul.f32.gmra.mxu0 %v2268
      %v2383 = vpop.f32.mrf.mxu0
      %v2384 = vadd.f32 0.0, %v2383
      %2385 = vmatmul.f32.gmra.mxu0 %v2271
      %v2386 = vpop.f32.mrf.mxu0
      %v2387 = vadd.f32 0.0, %v2386
      %2388 = vmatmul.f32.gmra.mxu0 %v2274
      %v2389 = vpop.f32.mrf.mxu0
      %v2390 = vadd.f32 0.0, %v2389
      %2391 = vmatmul.f32.gmra.mxu0 %v2277
      %v2392 = vpop.f32.mrf.mxu0
      %v2393 = vadd.f32 0.0, %v2392
      %2394 = vmatmul.f32.gmra.mxu0 %v2280
      %v2395 = vpop.f32.mrf.mxu0
      %v2396 = vadd.f32 0.0, %v2395
      %2397 = vmatmul.f32.gmra.mxu0 %v2283
      %v2398 = vpop.f32.mrf.mxu0
      %v2399 = vadd.f32 0.0, %v2398
      %2400 = vmatmul.f32.gmra.mxu0 %v2286
      %v2401 = vpop.f32.mrf.mxu0
      %v2402 = vadd.f32 0.0, %v2401
      %2403 = vmatmul.f32.gmra.mxu0 %v2289
      %v2404 = vpop.f32.mrf.mxu0
      %v2405 = vadd.f32 0.0, %v2404
      %2406 = vmatmul.f32.gmra.mxu0 %v2292
      %v2407 = vpop.f32.mrf.mxu0
      %v2408 = vadd.f32 0.0, %v2407
      %2409 = vmatmul.f32.gmra.mxu0 %v2295
      %v2410 = vpop.f32.mrf.mxu0
      %v2411 = vadd.f32 0.0, %v2410
      %2412 = vmatmul.f32.gmra.mxu0 %v2298
      %v2413 = vpop.f32.mrf.mxu0
      %v2414 = vadd.f32 0.0, %v2413
      %2415 = vmatmul.f32.gmra.mxu0 %v2301
      %v2416 = vpop.f32.mrf.mxu0
      %v2417 = vadd.f32 0.0, %v2416
      %2418 = vmatmul.f32.gmra.mxu0 %v2304
      %v2419 = vpop.f32.mrf.mxu0
      %v2420 = vadd.f32 0.0, %v2419
      %2421 = vmatmul.f32.gmra.mxu0 %v2307
      %v2422 = vpop.f32.mrf.mxu0
      %v2423 = vadd.f32 0.0, %v2422
      %2424 = vmatmul.f32.gmra.mxu0 %v2310
      %v2425 = vpop.f32.mrf.mxu0
      %v2426 = vadd.f32 0.0, %v2425
      %2427 = vmatmul.f32.gmra.mxu0 %v2313
      %v2428 = vpop.f32.mrf.mxu0
      %v2429 = vadd.f32 0.0, %v2428
      %2430 = vmatmul.f32.gmra.mxu0 %v2316
      %v2431 = vpop.f32.mrf.mxu0
      %v2432 = vadd.f32 0.0, %v2431
      %2433 = vmatmul.f32.gmra.mxu0 %v2319
      %v2434 = vpop.f32.mrf.mxu0
      %v2435 = vadd.f32 0.0, %v2434
      %2436 = vmatmul.f32.gmra.mxu0 %v2322
      %v2437 = vpop.f32.mrf.mxu0
      %v2438 = vadd.f32 0.0, %v2437
      %2439 = vmatmul.f32.gmra.mxu0 %v2325
      %v2440 = vpop.f32.mrf.mxu0
      %v2441 = vadd.f32 0.0, %v2440
      %2442 = vdwg.mxu0
      %v2443 = vadd.f32 %v1940, %v2348
      %v2444 = vadd.f32 %v1943, %v2351
      %v2445 = vadd.f32 %v1946, %v2354
      %v2446 = vadd.f32 %v1949, %v2357
      %v2447 = vadd.f32 %v1952, %v2360
      %v2448 = vadd.f32 %v1955, %v2363
      %v2449 = vadd.f32 %v1958, %v2366
      %v2450 = vadd.f32 %v1961, %v2369
      %v2451 = vadd.f32 %v1964, %v2372
      %v2452 = vadd.f32 %v1967, %v2375
      %v2453 = vadd.f32 %v1970, %v2378
      %v2454 = vadd.f32 %v1973, %v2381
      %v2455 = vadd.f32 %v1976, %v2384
      %v2456 = vadd.f32 %v1979, %v2387
      %v2457 = vadd.f32 %v1982, %v2390
      %v2458 = vadd.f32 %v1985, %v2393
      %v2459 = vadd.f32 %v1988, %v2396
      %v2460 = vadd.f32 %v1991, %v2399
      %v2461 = vadd.f32 %v1994, %v2402
      %v2462 = vadd.f32 %v1997, %v2405
      %v2463 = vadd.f32 %v2000, %v2408
      %v2464 = vadd.f32 %v2003, %v2411
      %v2465 = vadd.f32 %v2006, %v2414
      %v2466 = vadd.f32 %v2009, %v2417
      %v2467 = vadd.f32 %v2012, %v2420
      %v2468 = vadd.f32 %v2015, %v2423
      %v2469 = vadd.f32 %v2018, %v2426
      %v2470 = vadd.f32 %v2021, %v2429
      %v2471 = vadd.f32 %v2024, %v2432
      %v2472 = vadd.f32 %v2027, %v2435
      %v2473 = vadd.f32 %v2030, %v2438
      %v2474 = vadd.f32 %v2033, %v2441
      %v2476 = vrot.slane %v938, 7
      %v2477 = vsel %vm1516, %v1577, %v2476
      %v2478 = vrot.slane %v939, 7
      %v2479 = vsel %vm1516, %v2476, %v2478
      %v2482 = vsel %vm1453, %v1520, 0.0
      %v2483 = vsel %vm1454, %v1522, 0.0
      %v2484 = vsel %vm1455, %v1524, 0.0
      %v2485 = vsel %vm1456, %v1526, 0.0
      %v2486 = vsel %vm1457, %v1528, 0.0
      %v2487 = vsel %vm1458, %v1530, 0.0
      %v2488 = vsel %vm1459, %v1532, 0.0
      %v2489 = vsel %vm1460, %v1534, 0.0
      %v2490 = vsel %vm1461, %v1536, 0.0
      %v2491 = vsel %vm1462, %v1538, 0.0
      %v2492 = vsel %vm1463, %v1540, 0.0
      %v2493 = vsel %vm1464, %v1542, 0.0
      %v2494 = vsel %vm1465, %v1544, 0.0
      %v2495 = vsel %vm1466, %v1546, 0.0
      %v2496 = vsel %vm1467, %v1548, 0.0
      %v2497 = vsel %vm1468, %v1550, 0.0
      %v2498 = vsel %vm1469, %v1552, 0.0
      %v2499 = vsel %vm1470, %v1554, 0.0
      %v2500 = vsel %vm1471, %v1556, 0.0
      %v2501 = vsel %vm1472, %v1558, 0.0
      %v2502 = vsel %vm1473, %v1560, 0.0
      %v2503 = vsel %vm1474, %v1562, 0.0
      %v2504 = vsel %vm1475, %v1564, 0.0
      %v2505 = vsel %vm1476, %v1566, 0.0
      %v2506 = vsel %vm1477, %v1568, 0.0
      %v2507 = vsel %vm1478, %v1570, 0.0
      %v2508 = vsel %vm1479, %v1572, 0.0
      %v2509 = vsel %vm1480, %v1574, 0.0
      %v2510 = vsel %vm1481, %v1576, 0.0
      %v2511 = vsel %vm1482, %v1578, 0.0
      %v2512 = vsel %vm1483, %v2477, 0.0
      %v2513 = vsel %vm1484, %v2479, 0.0
      %s2514 = scalar_lea.vmem %s5, 12
      %v2515 = vld [vmem:[%s2514] sm:$0xf]
      %v2517 = vsel %vm630, %v2482, 0
      %v2520 = vsel %vm630, %v2483, 0
      %v2523 = vsel %vm630, %v2484, 0
      %v2526 = vsel %vm630, %v2485, 0
      %v2529 = vsel %vm630, %v2486, 0
      %v2532 = vsel %vm630, %v2487, 0
      %v2535 = vsel %vm630, %v2488, 0
      %v2538 = vsel %vm630, %v2489, 0
      %v2541 = vsel %vm630, %v2490, 0
      %v2544 = vsel %vm630, %v2491, 0
      %v2547 = vsel %vm630, %v2492, 0
      %v2550 = vsel %vm630, %v2493, 0
      %v2553 = vsel %vm630, %v2494, 0
      %v2556 = vsel %vm630, %v2495, 0
      %v2559 = vsel %vm630, %v2496, 0
      %v2562 = vsel %vm630, %v2497, 0
      %v2565 = vsel %vm630, %v2498, 0
      %v2568 = vsel %vm630, %v2499, 0
      %v2571 = vsel %vm630, %v2500, 0
      %v2574 = vsel %vm630, %v2501, 0
      %v2577 = vsel %vm630, %v2502, 0
      %v2580 = vsel %vm630, %v2503, 0
      %v2583 = vsel %vm630, %v2504, 0
      %v2586 = vsel %vm630, %v2505, 0
      %v2589 = vsel %vm630, %v2506, 0
      %v2592 = vsel %vm630, %v2507, 0
      %v2595 = vsel %vm630, %v2508, 0
      %v2598 = vsel %vm630, %v2509, 0
      %v2601 = vsel %vm630, %v2510, 0
      %v2604 = vsel %vm630, %v2511, 0
      %v2607 = vsel %vm630, %v2512, 0
      %v2610 = vsel %vm630, %v2513, 0
      %v2613 = vsel %vm727, %v2515, 0
      %2615 = vmatpush.msra.mxu0 0.0
      %2616 = vmatpush.msra.mxu0 0.0
      %2617 = vmatpush.msra.mxu0 0.0
      %2618 = vmatpush.msra.mxu0 0.0
      %2619 = vmatpush.msra.mxu0 0.0
      %2620 = vmatpush.msra.mxu0 0.0
      %2621 = vmatpush.msra.mxu0 0.0
      %2622 = vmatpush.msra.mxu0 0.0
      %2623 = vmatpush.msra.mxu0 0.0
      %2624 = vmatpush.msra.mxu0 0.0
      %2625 = vmatpush.msra.mxu0 0.0
      %2626 = vmatpush.msra.mxu0 0.0
      %2627 = vmatpush.msra.mxu0 0.0
      %2628 = vmatpush.msra.mxu0 0.0
      %2629 = vmatpush.msra.mxu0 0.0
      %2630 = vmatpush.msra.mxu0 %v2613
      %2631 = vmatmul.f32.gmra.mxu0 %v2517
      %v2632 = vpop.f32.mrf.mxu0
      %v2633 = vadd.f32 0.0, %v2632
      %2634 = vmatmul.f32.gmra.mxu0 %v2520
      %v2635 = vpop.f32.mrf.mxu0
      %v2636 = vadd.f32 0.0, %v2635
      %2637 = vmatmul.f32.gmra.mxu0 %v2523
      %v2638 = vpop.f32.mrf.mxu0
      %v2639 = vadd.f32 0.0, %v2638
      %2640 = vmatmul.f32.gmra.mxu0 %v2526
      %v2641 = vpop.f32.mrf.mxu0
      %v2642 = vadd.f32 0.0, %v2641
      %2643 = vmatmul.f32.gmra.mxu0 %v2529
      %v2644 = vpop.f32.mrf.mxu0
      %v2645 = vadd.f32 0.0, %v2644
      %2646 = vmatmul.f32.gmra.mxu0 %v2532
      %v2647 = vpop.f32.mrf.mxu0
      %v2648 = vadd.f32 0.0, %v2647
      %2649 = vmatmul.f32.gmra.mxu0 %v2535
      %v2650 = vpop.f32.mrf.mxu0
      %v2651 = vadd.f32 0.0, %v2650
      %2652 = vmatmul.f32.gmra.mxu0 %v2538
      %v2653 = vpop.f32.mrf.mxu0
      %v2654 = vadd.f32 0.0, %v2653
      %2655 = vmatmul.f32.gmra.mxu0 %v2541
      %v2656 = vpop.f32.mrf.mxu0
      %v2657 = vadd.f32 0.0, %v2656
      %2658 = vmatmul.f32.gmra.mxu0 %v2544
      %v2659 = vpop.f32.mrf.mxu0
      %v2660 = vadd.f32 0.0, %v2659
      %2661 = vmatmul.f32.gmra.mxu0 %v2547
      %v2662 = vpop.f32.mrf.mxu0
      %v2663 = vadd.f32 0.0, %v2662
      %2664 = vmatmul.f32.gmra.mxu0 %v2550
      %v2665 = vpop.f32.mrf.mxu0
      %v2666 = vadd.f32 0.0, %v2665
      %2667 = vmatmul.f32.gmra.mxu0 %v2553
      %v2668 = vpop.f32.mrf.mxu0
      %v2669 = vadd.f32 0.0, %v2668
      %2670 = vmatmul.f32.gmra.mxu0 %v2556
      %v2671 = vpop.f32.mrf.mxu0
      %v2672 = vadd.f32 0.0, %v2671
      %2673 = vmatmul.f32.gmra.mxu0 %v2559
      %v2674 = vpop.f32.mrf.mxu0
      %v2675 = vadd.f32 0.0, %v2674
      %2676 = vmatmul.f32.gmra.mxu0 %v2562
      %v2677 = vpop.f32.mrf.mxu0
      %v2678 = vadd.f32 0.0, %v2677
      %2679 = vmatmul.f32.gmra.mxu0 %v2565
      %v2680 = vpop.f32.mrf.mxu0
      %v2681 = vadd.f32 0.0, %v2680
      %2682 = vmatmul.f32.gmra.mxu0 %v2568
      %v2683 = vpop.f32.mrf.mxu0
      %v2684 = vadd.f32 0.0, %v2683
      %2685 = vmatmul.f32.gmra.mxu0 %v2571
      %v2686 = vpop.f32.mrf.mxu0
      %v2687 = vadd.f32 0.0, %v2686
      %2688 = vmatmul.f32.gmra.mxu0 %v2574
      %v2689 = vpop.f32.mrf.mxu0
      %v2690 = vadd.f32 0.0, %v2689
      %2691 = vmatmul.f32.gmra.mxu0 %v2577
      %v2692 = vpop.f32.mrf.mxu0
      %v2693 = vadd.f32 0.0, %v2692
      %2694 = vmatmul.f32.gmra.mxu0 %v2580
      %v2695 = vpop.f32.mrf.mxu0
      %v2696 = vadd.f32 0.0, %v2695
      %2697 = vmatmul.f32.gmra.mxu0 %v2583
      %v2698 = vpop.f32.mrf.mxu0
      %v2699 = vadd.f32 0.0, %v2698
      %2700 = vmatmul.f32.gmra.mxu0 %v2586
      %v2701 = vpop.f32.mrf.mxu0
      %v2702 = vadd.f32 0.0, %v2701
      %2703 = vmatmul.f32.gmra.mxu0 %v2589
      %v2704 = vpop.f32.mrf.mxu0
      %v2705 = vadd.f32 0.0, %v2704
      %2706 = vmatmul.f32.gmra.mxu0 %v2592
      %v2707 = vpop.f32.mrf.mxu0
      %v2708 = vadd.f32 0.0, %v2707
      %2709 = vmatmul.f32.gmra.mxu0 %v2595
      %v2710 = vpop.f32.mrf.mxu0
      %v2711 = vadd.f32 0.0, %v2710
      %2712 = vmatmul.f32.gmra.mxu0 %v2598
      %v2713 = vpop.f32.mrf.mxu0
      %v2714 = vadd.f32 0.0, %v2713
      %2715 = vmatmul.f32.gmra.mxu0 %v2601
      %v2716 = vpop.f32.mrf.mxu0
      %v2717 = vadd.f32 0.0, %v2716
      %2718 = vmatmul.f32.gmra.mxu0 %v2604
      %v2719 = vpop.f32.mrf.mxu0
      %v2720 = vadd.f32 0.0, %v2719
      %2721 = vmatmul.f32.gmra.mxu0 %v2607
      %v2722 = vpop.f32.mrf.mxu0
      %v2723 = vadd.f32 0.0, %v2722
      %2724 = vmatmul.f32.gmra.mxu0 %v2610
      %v2725 = vpop.f32.mrf.mxu0
      %v2726 = vadd.f32 0.0, %v2725
      %2727 = vdwg.mxu0
      %v2728 = vadd.f32 %v2443, %v2633
      %v2729 = vadd.f32 %v2444, %v2636
      %v2730 = vadd.f32 %v2445, %v2639
      %v2731 = vadd.f32 %v2446, %v2642
      %v2732 = vadd.f32 %v2447, %v2645
      %v2733 = vadd.f32 %v2448, %v2648
      %v2734 = vadd.f32 %v2449, %v2651
      %v2735 = vadd.f32 %v2450, %v2654
      %v2736 = vadd.f32 %v2451, %v2657
      %v2737 = vadd.f32 %v2452, %v2660
      %v2738 = vadd.f32 %v2453, %v2663
      %v2739 = vadd.f32 %v2454, %v2666
      %v2740 = vadd.f32 %v2455, %v2669
      %v2741 = vadd.f32 %v2456, %v2672
      %v2742 = vadd.f32 %v2457, %v2675
      %v2743 = vadd.f32 %v2458, %v2678
      %v2744 = vadd.f32 %v2459, %v2681
      %v2745 = vadd.f32 %v2460, %v2684
      %v2746 = vadd.f32 %v2461, %v2687
      %v2747 = vadd.f32 %v2462, %v2690
      %v2748 = vadd.f32 %v2463, %v2693
      %v2749 = vadd.f32 %v2464, %v2696
      %v2750 = vadd.f32 %v2465, %v2699
      %v2751 = vadd.f32 %v2466, %v2702
      %v2752 = vadd.f32 %v2467, %v2705
      %v2753 = vadd.f32 %v2468, %v2708
      %v2754 = vadd.f32 %v2469, %v2711
      %v2755 = vadd.f32 %v2470, %v2714
      %v2756 = vadd.f32 %v2471, %v2717
      %v2757 = vadd.f32 %v2472, %v2720
      %v2758 = vadd.f32 %v2473, %v2723
      %v2759 = vadd.f32 %v2474, %v2726
      %s2760 = scalar_lea.vmem %s5, 16
      %v2761 = vld [vmem:[%s2760] sm:$0xf]
      %v2762 = vsel %vm630, %v938, 0
      %v2764 = vsel %vm630, %v939, 0
      %v2767 = vsel %vm727, %v2761, 0
      %2769 = vmatpush.msra.mxu0 0.0
      %2770 = vmatpush.msra.mxu0 0.0
      %2771 = vmatpush.msra.mxu0 0.0
      %2772 = vmatpush.msra.mxu0 0.0
      %2773 = vmatpush.msra.mxu0 0.0
      %2774 = vmatpush.msra.mxu0 0.0
      %2775 = vmatpush.msra.mxu0 0.0
      %2776 = vmatpush.msra.mxu0 0.0
      %2777 = vmatpush.msra.mxu0 0.0
      %2778 = vmatpush.msra.mxu0 0.0
      %2779 = vmatpush.msra.mxu0 0.0
      %2780 = vmatpush.msra.mxu0 0.0
      %2781 = vmatpush.msra.mxu0 0.0
      %2782 = vmatpush.msra.mxu0 0.0
      %2783 = vmatpush.msra.mxu0 0.0
      %2784 = vmatpush.msra.mxu0 %v2767
      %2785 = vmatmul.f32.gmra.mxu0 %v1647
      %v2786 = vpop.f32.mrf.mxu0
      %v2787 = vadd.f32 0.0, %v2786
      %2788 = vmatmul.f32.gmra.mxu0 %v1649
      %v2789 = vpop.f32.mrf.mxu0
      %v2790 = vadd.f32 0.0, %v2789
      %2791 = vmatmul.f32.gmra.mxu0 %v1651
      %v2792 = vpop.f32.mrf.mxu0
      %v2793 = vadd.f32 0.0, %v2792
      %2794 = vmatmul.f32.gmra.mxu0 %v1653
      %v2795 = vpop.f32.mrf.mxu0
      %v2796 = vadd.f32 0.0, %v2795
      %2797 = vmatmul.f32.gmra.mxu0 %v1655
      %v2798 = vpop.f32.mrf.mxu0
      %v2799 = vadd.f32 0.0, %v2798
      %2800 = vmatmul.f32.gmra.mxu0 %v1657
      %v2801 = vpop.f32.mrf.mxu0
      %v2802 = vadd.f32 0.0, %v2801
      %2803 = vmatmul.f32.gmra.mxu0 %v1659
      %v2804 = vpop.f32.mrf.mxu0
      %v2805 = vadd.f32 0.0, %v2804
      %2806 = vmatmul.f32.gmra.mxu0 %v1661
      %v2807 = vpop.f32.mrf.mxu0
      %v2808 = vadd.f32 0.0, %v2807
      %2809 = vmatmul.f32.gmra.mxu0 %v1663
      %v2810 = vpop.f32.mrf.mxu0
      %v2811 = vadd.f32 0.0, %v2810
      %2812 = vmatmul.f32.gmra.mxu0 %v1665
      %v2813 = vpop.f32.mrf.mxu0
      %v2814 = vadd.f32 0.0, %v2813
      %2815 = vmatmul.f32.gmra.mxu0 %v1667
      %v2816 = vpop.f32.mrf.mxu0
      %v2817 = vadd.f32 0.0, %v2816
      %2818 = vmatmul.f32.gmra.mxu0 %v1669
      %v2819 = vpop.f32.mrf.mxu0
      %v2820 = vadd.f32 0.0, %v2819
      %2821 = vmatmul.f32.gmra.mxu0 %v1671
      %v2822 = vpop.f32.mrf.mxu0
      %v2823 = vadd.f32 0.0, %v2822
      %2824 = vmatmul.f32.gmra.mxu0 %v1673
      %v2825 = vpop.f32.mrf.mxu0
      %v2826 = vadd.f32 0.0, %v2825
      %2827 = vmatmul.f32.gmra.mxu0 %v1675
      %v2828 = vpop.f32.mrf.mxu0
      %v2829 = vadd.f32 0.0, %v2828
      %2830 = vmatmul.f32.gmra.mxu0 %v1677
      %v2831 = vpop.f32.mrf.mxu0
      %v2832 = vadd.f32 0.0, %v2831
      %2833 = vmatmul.f32.gmra.mxu0 %v1679
      %v2834 = vpop.f32.mrf.mxu0
      %v2835 = vadd.f32 0.0, %v2834
      %2836 = vmatmul.f32.gmra.mxu0 %v1681
      %v2837 = vpop.f32.mrf.mxu0
      %v2838 = vadd.f32 0.0, %v2837
      %2839 = vmatmul.f32.gmra.mxu0 %v1683
      %v2840 = vpop.f32.mrf.mxu0
      %v2841 = vadd.f32 0.0, %v2840
      %2842 = vmatmul.f32.gmra.mxu0 %v1685
      %v2843 = vpop.f32.mrf.mxu0
      %v2844 = vadd.f32 0.0, %v2843
      %2845 = vmatmul.f32.gmra.mxu0 %v1687
      %v2846 = vpop.f32.mrf.mxu0
      %v2847 = vadd.f32 0.0, %v2846
      %2848 = vmatmul.f32.gmra.mxu0 %v1689
      %v2849 = vpop.f32.mrf.mxu0
      %v2850 = vadd.f32 0.0, %v2849
      %2851 = vmatmul.f32.gmra.mxu0 %v1691
      %v2852 = vpop.f32.mrf.mxu0
      %v2853 = vadd.f32 0.0, %v2852
      %2854 = vmatmul.f32.gmra.mxu0 %v1693
      %v2855 = vpop.f32.mrf.mxu0
      %v2856 = vadd.f32 0.0, %v2855
      %2857 = vmatmul.f32.gmra.mxu0 %v1695
      %v2858 = vpop.f32.mrf.mxu0
      %v2859 = vadd.f32 0.0, %v2858
      %2860 = vmatmul.f32.gmra.mxu0 %v1697
      %v2861 = vpop.f32.mrf.mxu0
      %v2862 = vadd.f32 0.0, %v2861
      %2863 = vmatmul.f32.gmra.mxu0 %v1699
      %v2864 = vpop.f32.mrf.mxu0
      %v2865 = vadd.f32 0.0, %v2864
      %2866 = vmatmul.f32.gmra.mxu0 %v1701
      %v2867 = vpop.f32.mrf.mxu0
      %v2868 = vadd.f32 0.0, %v2867
      %2869 = vmatmul.f32.gmra.mxu0 %v1703
      %v2870 = vpop.f32.mrf.mxu0
      %v2871 = vadd.f32 0.0, %v2870
      %2872 = vmatmul.f32.gmra.mxu0 %v1705
      %v2873 = vpop.f32.mrf.mxu0
      %v2874 = vadd.f32 0.0, %v2873
      %2875 = vmatmul.f32.gmra.mxu0 %v2762
      %v2876 = vpop.f32.mrf.mxu0
      %v2877 = vadd.f32 0.0, %v2876
      %2878 = vmatmul.f32.gmra.mxu0 %v2764
      %v2879 = vpop.f32.mrf.mxu0
      %v2880 = vadd.f32 0.0, %v2879
      %2881 = vdwg.mxu0
      %v2882 = vadd.f32 %v2728, %v2787
      %v2883 = vadd.f32 %v2729, %v2790
      %v2884 = vadd.f32 %v2730, %v2793
      %v2885 = vadd.f32 %v2731, %v2796
      %v2886 = vadd.f32 %v2732, %v2799
      %v2887 = vadd.f32 %v2733, %v2802
      %v2888 = vadd.f32 %v2734, %v2805
      %v2889 = vadd.f32 %v2735, %v2808
      %v2890 = vadd.f32 %v2736, %v2811
      %v2891 = vadd.f32 %v2737, %v2814
      %v2892 = vadd.f32 %v2738, %v2817
      %v2893 = vadd.f32 %v2739, %v2820
      %v2894 = vadd.f32 %v2740, %v2823
      %v2895 = vadd.f32 %v2741, %v2826
      %v2896 = vadd.f32 %v2742, %v2829
      %v2897 = vadd.f32 %v2743, %v2832
      %v2898 = vadd.f32 %v2744, %v2835
      %v2899 = vadd.f32 %v2745, %v2838
      %v2900 = vadd.f32 %v2746, %v2841
      %v2901 = vadd.f32 %v2747, %v2844
      %v2902 = vadd.f32 %v2748, %v2847
      %v2903 = vadd.f32 %v2749, %v2850
      %v2904 = vadd.f32 %v2750, %v2853
      %v2905 = vadd.f32 %v2751, %v2856
      %v2906 = vadd.f32 %v2752, %v2859
      %v2907 = vadd.f32 %v2753, %v2862
      %v2908 = vadd.f32 %v2754, %v2865
      %v2909 = vadd.f32 %v2755, %v2868
      %v2910 = vadd.f32 %v2756, %v2871
      %v2911 = vadd.f32 %v2757, %v2874
      %v2912 = vadd.f32 %v2758, %v2877
      %v2913 = vadd.f32 %v2759, %v2880
      %v2914 = vrot.slane %v939, 1
      %v2915 = vsel %vm2100, %v2163, %v2914
      %v2916 = vsel %vm2100, %v2914, %v2101
      %v2919 = vsel %vm2067, %v2106, 0.0
      %v2920 = vsel %vm2068, %v2108, 0.0
      %v2921 = vsel %vm2069, %v2110, 0.0
      %v2922 = vsel %vm2070, %v2112, 0.0
      %v2923 = vsel %vm2071, %v2114, 0.0
      %v2924 = vsel %vm2072, %v2116, 0.0
      %v2925 = vsel %vm2073, %v2118, 0.0
      %v2926 = vsel %vm2074, %v2120, 0.0
      %v2927 = vsel %vm2075, %v2122, 0.0
      %v2928 = vsel %vm2076, %v2124, 0.0
      %v2929 = vsel %vm2077, %v2126, 0.0
      %v2930 = vsel %vm2078, %v2128, 0.0
      %v2931 = vsel %vm2079, %v2130, 0.0
      %v2932 = vsel %vm2080, %v2132, 0.0
      %v2933 = vsel %vm2081, %v2134, 0.0
      %v2934 = vsel %vm2082, %v2136, 0.0
      %v2935 = vsel %vm2083, %v2138, 0.0
      %v2936 = vsel %vm2084, %v2140, 0.0
      %v2937 = vsel %vm2085, %v2142, 0.0
      %v2938 = vsel %vm2086, %v2144, 0.0
      %v2939 = vsel %vm2087, %v2146, 0.0
      %v2940 = vsel %vm2088, %v2148, 0.0
      %v2941 = vsel %vm2089, %v2150, 0.0
      %v2942 = vsel %vm2090, %v2152, 0.0
      %v2943 = vsel %vm2091, %v2154, 0.0
      %v2944 = vsel %vm2092, %v2156, 0.0
      %v2945 = vsel %vm2093, %v2158, 0.0
      %v2946 = vsel %vm2094, %v2160, 0.0
      %v2947 = vsel %vm2095, %v2162, 0.0
      %v2948 = vsel %vm2096, %v2164, 0.0
      %v2949 = vsel %vm2097, %v2915, 0.0
      %v2950 = vsel %vm2098, %v2916, 0.0
      %s2951 = scalar_lea.vmem %s5, 20
      %v2952 = vld [vmem:[%s2951] sm:$0xf]
      %v2954 = vsel %vm630, %v2919, 0
      %v2957 = vsel %vm630, %v2920, 0
      %v2960 = vsel %vm630, %v2921, 0
      %v2963 = vsel %vm630, %v2922, 0
      %v2966 = vsel %vm630, %v2923, 0
      %v2969 = vsel %vm630, %v2924, 0
      %v2972 = vsel %vm630, %v2925, 0
      %v2975 = vsel %vm630, %v2926, 0
      %v2978 = vsel %vm630, %v2927, 0
      %v2981 = vsel %vm630, %v2928, 0
      %v2984 = vsel %vm630, %v2929, 0
      %v2987 = vsel %vm630, %v2930, 0
      %v2990 = vsel %vm630, %v2931, 0
      %v2993 = vsel %vm630, %v2932, 0
      %v2996 = vsel %vm630, %v2933, 0
      %v2999 = vsel %vm630, %v2934, 0
      %v3002 = vsel %vm630, %v2935, 0
      %v3005 = vsel %vm630, %v2936, 0
      %v3008 = vsel %vm630, %v2937, 0
      %v3011 = vsel %vm630, %v2938, 0
      %v3014 = vsel %vm630, %v2939, 0
      %v3017 = vsel %vm630, %v2940, 0
      %v3020 = vsel %vm630, %v2941, 0
      %v3023 = vsel %vm630, %v2942, 0
      %v3026 = vsel %vm630, %v2943, 0
      %v3029 = vsel %vm630, %v2944, 0
      %v3032 = vsel %vm630, %v2945, 0
      %v3035 = vsel %vm630, %v2946, 0
      %v3038 = vsel %vm630, %v2947, 0
      %v3041 = vsel %vm630, %v2948, 0
      %v3044 = vsel %vm630, %v2949, 0
      %v3047 = vsel %vm630, %v2950, 0
      %v3050 = vsel %vm727, %v2952, 0
      %3052 = vmatpush.msra.mxu0 0.0
      %3053 = vmatpush.msra.mxu0 0.0
      %3054 = vmatpush.msra.mxu0 0.0
      %3055 = vmatpush.msra.mxu0 0.0
      %3056 = vmatpush.msra.mxu0 0.0
      %3057 = vmatpush.msra.mxu0 0.0
      %3058 = vmatpush.msra.mxu0 0.0
      %3059 = vmatpush.msra.mxu0 0.0
      %3060 = vmatpush.msra.mxu0 0.0
      %3061 = vmatpush.msra.mxu0 0.0
      %3062 = vmatpush.msra.mxu0 0.0
      %3063 = vmatpush.msra.mxu0 0.0
      %3064 = vmatpush.msra.mxu0 0.0
      %3065 = vmatpush.msra.mxu0 0.0
      %3066 = vmatpush.msra.mxu0 0.0
      %3067 = vmatpush.msra.mxu0 %v3050
      %3068 = vmatmul.f32.gmra.mxu0 %v2954
      %v3069 = vpop.f32.mrf.mxu0
      %v3070 = vadd.f32 0.0, %v3069
      %3071 = vmatmul.f32.gmra.mxu0 %v2957
      %v3072 = vpop.f32.mrf.mxu0
      %v3073 = vadd.f32 0.0, %v3072
      %3074 = vmatmul.f32.gmra.mxu0 %v2960
      %v3075 = vpop.f32.mrf.mxu0
      %v3076 = vadd.f32 0.0, %v3075
      %3077 = vmatmul.f32.gmra.mxu0 %v2963
      %v3078 = vpop.f32.mrf.mxu0
      %v3079 = vadd.f32 0.0, %v3078
      %3080 = vmatmul.f32.gmra.mxu0 %v2966
      %v3081 = vpop.f32.mrf.mxu0
      %v3082 = vadd.f32 0.0, %v3081
      %3083 = vmatmul.f32.gmra.mxu0 %v2969
      %v3084 = vpop.f32.mrf.mxu0
      %v3085 = vadd.f32 0.0, %v3084
      %3086 = vmatmul.f32.gmra.mxu0 %v2972
      %v3087 = vpop.f32.mrf.mxu0
      %v3088 = vadd.f32 0.0, %v3087
      %3089 = vmatmul.f32.gmra.mxu0 %v2975
      %v3090 = vpop.f32.mrf.mxu0
      %v3091 = vadd.f32 0.0, %v3090
      %3092 = vmatmul.f32.gmra.mxu0 %v2978
      %v3093 = vpop.f32.mrf.mxu0
      %v3094 = vadd.f32 0.0, %v3093
      %3095 = vmatmul.f32.gmra.mxu0 %v2981
      %v3096 = vpop.f32.mrf.mxu0
      %v3097 = vadd.f32 0.0, %v3096
      %3098 = vmatmul.f32.gmra.mxu0 %v2984
      %v3099 = vpop.f32.mrf.mxu0
      %v3100 = vadd.f32 0.0, %v3099
      %3101 = vmatmul.f32.gmra.mxu0 %v2987
      %v3102 = vpop.f32.mrf.mxu0
      %v3103 = vadd.f32 0.0, %v3102
      %3104 = vmatmul.f32.gmra.mxu0 %v2990
      %v3105 = vpop.f32.mrf.mxu0
      %v3106 = vadd.f32 0.0, %v3105
      %3107 = vmatmul.f32.gmra.mxu0 %v2993
      %v3108 = vpop.f32.mrf.mxu0
      %v3109 = vadd.f32 0.0, %v3108
      %3110 = vmatmul.f32.gmra.mxu0 %v2996
      %v3111 = vpop.f32.mrf.mxu0
      %v3112 = vadd.f32 0.0, %v3111
      %3113 = vmatmul.f32.gmra.mxu0 %v2999
      %v3114 = vpop.f32.mrf.mxu0
      %v3115 = vadd.f32 0.0, %v3114
      %3116 = vmatmul.f32.gmra.mxu0 %v3002
      %v3117 = vpop.f32.mrf.mxu0
      %v3118 = vadd.f32 0.0, %v3117
      %3119 = vmatmul.f32.gmra.mxu0 %v3005
      %v3120 = vpop.f32.mrf.mxu0
      %v3121 = vadd.f32 0.0, %v3120
      %3122 = vmatmul.f32.gmra.mxu0 %v3008
      %v3123 = vpop.f32.mrf.mxu0
      %v3124 = vadd.f32 0.0, %v3123
      %3125 = vmatmul.f32.gmra.mxu0 %v3011
      %v3126 = vpop.f32.mrf.mxu0
      %v3127 = vadd.f32 0.0, %v3126
      %3128 = vmatmul.f32.gmra.mxu0 %v3014
      %v3129 = vpop.f32.mrf.mxu0
      %v3130 = vadd.f32 0.0, %v3129
      %3131 = vmatmul.f32.gmra.mxu0 %v3017
      %v3132 = vpop.f32.mrf.mxu0
      %v3133 = vadd.f32 0.0, %v3132
      %3134 = vmatmul.f32.gmra.mxu0 %v3020
      %v3135 = vpop.f32.mrf.mxu0
      %v3136 = vadd.f32 0.0, %v3135
      %3137 = vmatmul.f32.gmra.mxu0 %v3023
      %v3138 = vpop.f32.mrf.mxu0
      %v3139 = vadd.f32 0.0, %v3138
      %3140 = vmatmul.f32.gmra.mxu0 %v3026
      %v3141 = vpop.f32.mrf.mxu0
      %v3142 = vadd.f32 0.0, %v3141
      %3143 = vmatmul.f32.gmra.mxu0 %v3029
      %v3144 = vpop.f32.mrf.mxu0
      %v3145 = vadd.f32 0.0, %v3144
      %3146 = vmatmul.f32.gmra.mxu0 %v3032
      %v3147 = vpop.f32.mrf.mxu0
      %v3148 = vadd.f32 0.0, %v3147
      %3149 = vmatmul.f32.gmra.mxu0 %v3035
      %v3150 = vpop.f32.mrf.mxu0
      %v3151 = vadd.f32 0.0, %v3150
      %3152 = vmatmul.f32.gmra.mxu0 %v3038
      %v3153 = vpop.f32.mrf.mxu0
      %v3154 = vadd.f32 0.0, %v3153
      %3155 = vmatmul.f32.gmra.mxu0 %v3041
      %v3156 = vpop.f32.mrf.mxu0
      %v3157 = vadd.f32 0.0, %v3156
      %3158 = vmatmul.f32.gmra.mxu0 %v3044
      %v3159 = vpop.f32.mrf.mxu0
      %v3160 = vadd.f32 0.0, %v3159
      %3161 = vmatmul.f32.gmra.mxu0 %v3047
      %v3162 = vpop.f32.mrf.mxu0
      %v3163 = vadd.f32 0.0, %v3162
      %3164 = vdwg.mxu0
      %v3165 = vadd.f32 %v2882, %v3070
      %v3166 = vadd.f32 %v2883, %v3073
      %v3167 = vadd.f32 %v2884, %v3076
      %v3168 = vadd.f32 %v2885, %v3079
      %v3169 = vadd.f32 %v2886, %v3082
      %v3170 = vadd.f32 %v2887, %v3085
      %v3171 = vadd.f32 %v2888, %v3088
      %v3172 = vadd.f32 %v2889, %v3091
      %v3173 = vadd.f32 %v2890, %v3094
      %v3174 = vadd.f32 %v2891, %v3097
      %v3175 = vadd.f32 %v2892, %v3100
      %v3176 = vadd.f32 %v2893, %v3103
      %v3177 = vadd.f32 %v2894, %v3106
      %v3178 = vadd.f32 %v2895, %v3109
      %v3179 = vadd.f32 %v2896, %v3112
      %v3180 = vadd.f32 %v2897, %v3115
      %v3181 = vadd.f32 %v2898, %v3118
      %v3182 = vadd.f32 %v2899, %v3121
      %v3183 = vadd.f32 %v2900, %v3124
      %v3184 = vadd.f32 %v2901, %v3127
      %v3185 = vadd.f32 %v2902, %v3130
      %v3186 = vadd.f32 %v2903, %v3133
      %v3187 = vadd.f32 %v2904, %v3136
      %v3188 = vadd.f32 %v2905, %v3139
      %v3189 = vadd.f32 %v2906, %v3142
      %v3190 = vadd.f32 %v2907, %v3145
      %v3191 = vadd.f32 %v2908, %v3148
      %v3192 = vadd.f32 %v2909, %v3151
      %v3193 = vadd.f32 %v2910, %v3154
      %v3194 = vadd.f32 %v2911, %v3157
      %v3195 = vadd.f32 %v2912, %v3160
      %v3196 = vadd.f32 %v2913, %v3163
      %v3197 = vsel %vm1516, %v2478, %v1517
      %v3199 = vsel %vm1453, %v1524, 0.0
      %v3200 = vsel %vm1454, %v1526, 0.0
      %v3201 = vsel %vm1455, %v1528, 0.0
      %v3202 = vsel %vm1456, %v1530, 0.0
      %v3203 = vsel %vm1457, %v1532, 0.0
      %v3204 = vsel %vm1458, %v1534, 0.0
      %v3205 = vsel %vm1459, %v1536, 0.0
      %v3206 = vsel %vm1460, %v1538, 0.0
      %v3207 = vsel %vm1461, %v1540, 0.0
      %v3208 = vsel %vm1462, %v1542, 0.0
      %v3209 = vsel %vm1463, %v1544, 0.0
      %v3210 = vsel %vm1464, %v1546, 0.0
      %v3211 = vsel %vm1465, %v1548, 0.0
      %v3212 = vsel %vm1466, %v1550, 0.0
      %v3213 = vsel %vm1467, %v1552, 0.0
      %v3214 = vsel %vm1468, %v1554, 0.0
      %v3215 = vsel %vm1469, %v1556, 0.0
      %v3216 = vsel %vm1470, %v1558, 0.0
      %v3217 = vsel %vm1471, %v1560, 0.0
      %v3218 = vsel %vm1472, %v1562, 0.0
      %v3219 = vsel %vm1473, %v1564, 0.0
      %v3220 = vsel %vm1474, %v1566, 0.0
      %v3221 = vsel %vm1475, %v1568, 0.0
      %v3222 = vsel %vm1476, %v1570, 0.0
      %v3223 = vsel %vm1477, %v1572, 0.0
      %v3224 = vsel %vm1478, %v1574, 0.0
      %v3225 = vsel %vm1479, %v1576, 0.0
      %v3226 = vsel %vm1480, %v1578, 0.0
      %v3227 = vsel %vm1481, %v2477, 0.0
      %v3228 = vsel %vm1482, %v2479, 0.0
      %v3229 = vsel %vm1483, %v3197, 0.0
      %v3230 = vsel %vm1484, %v1518, 0.0
      %s3231 = scalar_lea.vmem %s5, 24
      %v3232 = vld [vmem:[%s3231] sm:$0xf]
      %v3234 = vsel %vm630, %v3199, 0
      %v3237 = vsel %vm630, %v3200, 0
      %v3240 = vsel %vm630, %v3201, 0
      %v3243 = vsel %vm630, %v3202, 0
      %v3246 = vsel %vm630, %v3203, 0
      %v3249 = vsel %vm630, %v3204, 0
      %v3252 = vsel %vm630, %v3205, 0
      %v3255 = vsel %vm630, %v3206, 0
      %v3258 = vsel %vm630, %v3207, 0
      %v3261 = vsel %vm630, %v3208, 0
      %v3264 = vsel %vm630, %v3209, 0
      %v3267 = vsel %vm630, %v3210, 0
      %v3270 = vsel %vm630, %v3211, 0
      %v3273 = vsel %vm630, %v3212, 0
      %v3276 = vsel %vm630, %v3213, 0
      %v3279 = vsel %vm630, %v3214, 0
      %v3282 = vsel %vm630, %v3215, 0
      %v3285 = vsel %vm630, %v3216, 0
      %v3288 = vsel %vm630, %v3217, 0
      %v3291 = vsel %vm630, %v3218, 0
      %v3294 = vsel %vm630, %v3219, 0
      %v3297 = vsel %vm630, %v3220, 0
      %v3300 = vsel %vm630, %v3221, 0
      %v3303 = vsel %vm630, %v3222, 0
      %v3306 = vsel %vm630, %v3223, 0
      %v3309 = vsel %vm630, %v3224, 0
      %v3312 = vsel %vm630, %v3225, 0
      %v3315 = vsel %vm630, %v3226, 0
      %v3318 = vsel %vm630, %v3227, 0
      %v3321 = vsel %vm630, %v3228, 0
      %v3324 = vsel %vm630, %v3229, 0
      %v3327 = vsel %vm630, %v3230, 0
      %v3330 = vsel %vm727, %v3232, 0
      %3332 = vmatpush.msra.mxu0 0.0
      %3333 = vmatpush.msra.mxu0 0.0
      %3334 = vmatpush.msra.mxu0 0.0
      %3335 = vmatpush.msra.mxu0 0.0
      %3336 = vmatpush.msra.mxu0 0.0
      %3337 = vmatpush.msra.mxu0 0.0
      %3338 = vmatpush.msra.mxu0 0.0
      %3339 = vmatpush.msra.mxu0 0.0
      %3340 = vmatpush.msra.mxu0 0.0
      %3341 = vmatpush.msra.mxu0 0.0
      %3342 = vmatpush.msra.mxu0 0.0
      %3343 = vmatpush.msra.mxu0 0.0
      %3344 = vmatpush.msra.mxu0 0.0
      %3345 = vmatpush.msra.mxu0 0.0
      %3346 = vmatpush.msra.mxu0 0.0
      %3347 = vmatpush.msra.mxu0 %v3330
      %3348 = vmatmul.f32.gmra.mxu0 %v3234
      %v3349 = vpop.f32.mrf.mxu0
      %v3350 = vadd.f32 0.0, %v3349
      %3351 = vmatmul.f32.gmra.mxu0 %v3237
      %v3352 = vpop.f32.mrf.mxu0
      %v3353 = vadd.f32 0.0, %v3352
      %3354 = vmatmul.f32.gmra.mxu0 %v3240
      %v3355 = vpop.f32.mrf.mxu0
      %v3356 = vadd.f32 0.0, %v3355
      %3357 = vmatmul.f32.gmra.mxu0 %v3243
      %v3358 = vpop.f32.mrf.mxu0
      %v3359 = vadd.f32 0.0, %v3358
      %3360 = vmatmul.f32.gmra.mxu0 %v3246
      %v3361 = vpop.f32.mrf.mxu0
      %v3362 = vadd.f32 0.0, %v3361
      %3363 = vmatmul.f32.gmra.mxu0 %v3249
      %v3364 = vpop.f32.mrf.mxu0
      %v3365 = vadd.f32 0.0, %v3364
      %3366 = vmatmul.f32.gmra.mxu0 %v3252
      %v3367 = vpop.f32.mrf.mxu0
      %v3368 = vadd.f32 0.0, %v3367
      %3369 = vmatmul.f32.gmra.mxu0 %v3255
      %v3370 = vpop.f32.mrf.mxu0
      %v3371 = vadd.f32 0.0, %v3370
      %3372 = vmatmul.f32.gmra.mxu0 %v3258
      %v3373 = vpop.f32.mrf.mxu0
      %v3374 = vadd.f32 0.0, %v3373
      %3375 = vmatmul.f32.gmra.mxu0 %v3261
      %v3376 = vpop.f32.mrf.mxu0
      %v3377 = vadd.f32 0.0, %v3376
      %3378 = vmatmul.f32.gmra.mxu0 %v3264
      %v3379 = vpop.f32.mrf.mxu0
      %v3380 = vadd.f32 0.0, %v3379
      %3381 = vmatmul.f32.gmra.mxu0 %v3267
      %v3382 = vpop.f32.mrf.mxu0
      %v3383 = vadd.f32 0.0, %v3382
      %3384 = vmatmul.f32.gmra.mxu0 %v3270
      %v3385 = vpop.f32.mrf.mxu0
      %v3386 = vadd.f32 0.0, %v3385
      %3387 = vmatmul.f32.gmra.mxu0 %v3273
      %v3388 = vpop.f32.mrf.mxu0
      %v3389 = vadd.f32 0.0, %v3388
      %3390 = vmatmul.f32.gmra.mxu0 %v3276
      %v3391 = vpop.f32.mrf.mxu0
      %v3392 = vadd.f32 0.0, %v3391
      %3393 = vmatmul.f32.gmra.mxu0 %v3279
      %v3394 = vpop.f32.mrf.mxu0
      %v3395 = vadd.f32 0.0, %v3394
      %3396 = vmatmul.f32.gmra.mxu0 %v3282
      %v3397 = vpop.f32.mrf.mxu0
      %v3398 = vadd.f32 0.0, %v3397
      %3399 = vmatmul.f32.gmra.mxu0 %v3285
      %v3400 = vpop.f32.mrf.mxu0
      %v3401 = vadd.f32 0.0, %v3400
      %3402 = vmatmul.f32.gmra.mxu0 %v3288
      %v3403 = vpop.f32.mrf.mxu0
      %v3404 = vadd.f32 0.0, %v3403
      %3405 = vmatmul.f32.gmra.mxu0 %v3291
      %v3406 = vpop.f32.mrf.mxu0
      %v3407 = vadd.f32 0.0, %v3406
      %3408 = vmatmul.f32.gmra.mxu0 %v3294
      %v3409 = vpop.f32.mrf.mxu0
      %v3410 = vadd.f32 0.0, %v3409
      %3411 = vmatmul.f32.gmra.mxu0 %v3297
      %v3412 = vpop.f32.mrf.mxu0
      %v3413 = vadd.f32 0.0, %v3412
      %3414 = vmatmul.f32.gmra.mxu0 %v3300
      %v3415 = vpop.f32.mrf.mxu0
      %v3416 = vadd.f32 0.0, %v3415
      %3417 = vmatmul.f32.gmra.mxu0 %v3303
      %v3418 = vpop.f32.mrf.mxu0
      %v3419 = vadd.f32 0.0, %v3418
      %3420 = vmatmul.f32.gmra.mxu0 %v3306
      %v3421 = vpop.f32.mrf.mxu0
      %v3422 = vadd.f32 0.0, %v3421
      %3423 = vmatmul.f32.gmra.mxu0 %v3309
      %v3424 = vpop.f32.mrf.mxu0
      %v3425 = vadd.f32 0.0, %v3424
      %3426 = vmatmul.f32.gmra.mxu0 %v3312
      %v3427 = vpop.f32.mrf.mxu0
      %v3428 = vadd.f32 0.0, %v3427
      %3429 = vmatmul.f32.gmra.mxu0 %v3315
      %v3430 = vpop.f32.mrf.mxu0
      %v3431 = vadd.f32 0.0, %v3430
      %3432 = vmatmul.f32.gmra.mxu0 %v3318
      %v3433 = vpop.f32.mrf.mxu0
      %v3434 = vadd.f32 0.0, %v3433
      %3435 = vmatmul.f32.gmra.mxu0 %v3321
      %v3436 = vpop.f32.mrf.mxu0
      %v3437 = vadd.f32 0.0, %v3436
      %3438 = vmatmul.f32.gmra.mxu0 %v3324
      %v3439 = vpop.f32.mrf.mxu0
      %v3440 = vadd.f32 0.0, %v3439
      %3441 = vmatmul.f32.gmra.mxu0 %v3327
      %v3442 = vpop.f32.mrf.mxu0
      %v3443 = vadd.f32 0.0, %v3442
      %3444 = vdwg.mxu0
      %v3445 = vadd.f32 %v3165, %v3350
      %v3446 = vadd.f32 %v3166, %v3353
      %v3447 = vadd.f32 %v3167, %v3356
      %v3448 = vadd.f32 %v3168, %v3359
      %v3449 = vadd.f32 %v3169, %v3362
      %v3450 = vadd.f32 %v3170, %v3365
      %v3451 = vadd.f32 %v3171, %v3368
      %v3452 = vadd.f32 %v3172, %v3371
      %v3453 = vadd.f32 %v3173, %v3374
      %v3454 = vadd.f32 %v3174, %v3377
      %v3455 = vadd.f32 %v3175, %v3380
      %v3456 = vadd.f32 %v3176, %v3383
      %v3457 = vadd.f32 %v3177, %v3386
      %v3458 = vadd.f32 %v3178, %v3389
      %v3459 = vadd.f32 %v3179, %v3392
      %v3460 = vadd.f32 %v3180, %v3395
      %v3461 = vadd.f32 %v3181, %v3398
      %v3462 = vadd.f32 %v3182, %v3401
      %v3463 = vadd.f32 %v3183, %v3404
      %v3464 = vadd.f32 %v3184, %v3407
      %v3465 = vadd.f32 %v3185, %v3410
      %v3466 = vadd.f32 %v3186, %v3413
      %v3467 = vadd.f32 %v3187, %v3416
      %v3468 = vadd.f32 %v3188, %v3419
      %v3469 = vadd.f32 %v3189, %v3422
      %v3470 = vadd.f32 %v3190, %v3425
      %v3471 = vadd.f32 %v3191, %v3428
      %v3472 = vadd.f32 %v3192, %v3431
      %v3473 = vadd.f32 %v3193, %v3434
      %v3474 = vadd.f32 %v3194, %v3437
      %v3475 = vadd.f32 %v3195, %v3440
      %v3476 = vadd.f32 %v3196, %v3443
      %s3477 = scalar_lea.vmem %s5, 28
      %v3478 = vld [vmem:[%s3477] sm:$0xf]
      %v3480 = vsel %vm727, %v3478, 0
      %3482 = vmatpush.msra.mxu0 0.0
      %3483 = vmatpush.msra.mxu0 0.0
      %3484 = vmatpush.msra.mxu0 0.0
      %3485 = vmatpush.msra.mxu0 0.0
      %3486 = vmatpush.msra.mxu0 0.0
      %3487 = vmatpush.msra.mxu0 0.0
      %3488 = vmatpush.msra.mxu0 0.0
      %3489 = vmatpush.msra.mxu0 0.0
      %3490 = vmatpush.msra.mxu0 0.0
      %3491 = vmatpush.msra.mxu0 0.0
      %3492 = vmatpush.msra.mxu0 0.0
      %3493 = vmatpush.msra.mxu0 0.0
      %3494 = vmatpush.msra.mxu0 0.0
      %3495 = vmatpush.msra.mxu0 0.0
      %3496 = vmatpush.msra.mxu0 0.0
      %3497 = vmatpush.msra.mxu0 %v3480
      %3498 = vmatmul.f32.gmra.mxu0 %v1651
      %v3499 = vpop.f32.mrf.mxu0
      %v3500 = vadd.f32 0.0, %v3499
      %3501 = vmatmul.f32.gmra.mxu0 %v1653
      %v3502 = vpop.f32.mrf.mxu0
      %v3503 = vadd.f32 0.0, %v3502
      %3504 = vmatmul.f32.gmra.mxu0 %v1655
      %v3505 = vpop.f32.mrf.mxu0
      %v3506 = vadd.f32 0.0, %v3505
      %3507 = vmatmul.f32.gmra.mxu0 %v1657
      %v3508 = vpop.f32.mrf.mxu0
      %v3509 = vadd.f32 0.0, %v3508
      %3510 = vmatmul.f32.gmra.mxu0 %v1659
      %v3511 = vpop.f32.mrf.mxu0
      %v3512 = vadd.f32 0.0, %v3511
      %3513 = vmatmul.f32.gmra.mxu0 %v1661
      %v3514 = vpop.f32.mrf.mxu0
      %v3515 = vadd.f32 0.0, %v3514
      %3516 = vmatmul.f32.gmra.mxu0 %v1663
      %v3517 = vpop.f32.mrf.mxu0
      %v3518 = vadd.f32 0.0, %v3517
      %3519 = vmatmul.f32.gmra.mxu0 %v1665
      %v3520 = vpop.f32.mrf.mxu0
      %v3521 = vadd.f32 0.0, %v3520
      %3522 = vmatmul.f32.gmra.mxu0 %v1667
      %v3523 = vpop.f32.mrf.mxu0
      %v3524 = vadd.f32 0.0, %v3523
      %3525 = vmatmul.f32.gmra.mxu0 %v1669
      %v3526 = vpop.f32.mrf.mxu0
      %v3527 = vadd.f32 0.0, %v3526
      %3528 = vmatmul.f32.gmra.mxu0 %v1671
      %v3529 = vpop.f32.mrf.mxu0
      %v3530 = vadd.f32 0.0, %v3529
      %3531 = vmatmul.f32.gmra.mxu0 %v1673
      %v3532 = vpop.f32.mrf.mxu0
      %v3533 = vadd.f32 0.0, %v3532
      %3534 = vmatmul.f32.gmra.mxu0 %v1675
      %v3535 = vpop.f32.mrf.mxu0
      %v3536 = vadd.f32 0.0, %v3535
      %3537 = vmatmul.f32.gmra.mxu0 %v1677
      %v3538 = vpop.f32.mrf.mxu0
      %v3539 = vadd.f32 0.0, %v3538
      %3540 = vmatmul.f32.gmra.mxu0 %v1679
      %v3541 = vpop.f32.mrf.mxu0
      %v3542 = vadd.f32 0.0, %v3541
      %3543 = vmatmul.f32.gmra.mxu0 %v1681
      %v3544 = vpop.f32.mrf.mxu0
      %v3545 = vadd.f32 0.0, %v3544
      %3546 = vmatmul.f32.gmra.mxu0 %v1683
      %v3547 = vpop.f32.mrf.mxu0
      %v3548 = vadd.f32 0.0, %v3547
      %3549 = vmatmul.f32.gmra.mxu0 %v1685
      %v3550 = vpop.f32.mrf.mxu0
      %v3551 = vadd.f32 0.0, %v3550
      %3552 = vmatmul.f32.gmra.mxu0 %v1687
      %v3553 = vpop.f32.mrf.mxu0
      %v3554 = vadd.f32 0.0, %v3553
      %3555 = vmatmul.f32.gmra.mxu0 %v1689
      %v3556 = vpop.f32.mrf.mxu0
      %v3557 = vadd.f32 0.0, %v3556
      %3558 = vmatmul.f32.gmra.mxu0 %v1691
      %v3559 = vpop.f32.mrf.mxu0
      %v3560 = vadd.f32 0.0, %v3559
      %3561 = vmatmul.f32.gmra.mxu0 %v1693
      %v3562 = vpop.f32.mrf.mxu0
      %v3563 = vadd.f32 0.0, %v3562
      %3564 = vmatmul.f32.gmra.mxu0 %v1695
      %v3565 = vpop.f32.mrf.mxu0
      %v3566 = vadd.f32 0.0, %v3565
      %3567 = vmatmul.f32.gmra.mxu0 %v1697
      %v3568 = vpop.f32.mrf.mxu0
      %v3569 = vadd.f32 0.0, %v3568
      %3570 = vmatmul.f32.gmra.mxu0 %v1699
      %v3571 = vpop.f32.mrf.mxu0
      %v3572 = vadd.f32 0.0, %v3571
      %3573 = vmatmul.f32.gmra.mxu0 %v1701
      %v3574 = vpop.f32.mrf.mxu0
      %v3575 = vadd.f32 0.0, %v3574
      %3576 = vmatmul.f32.gmra.mxu0 %v1703
      %v3577 = vpop.f32.mrf.mxu0
      %v3578 = vadd.f32 0.0, %v3577
      %3579 = vmatmul.f32.gmra.mxu0 %v1705
      %v3580 = vpop.f32.mrf.mxu0
      %v3581 = vadd.f32 0.0, %v3580
      %3582 = vmatmul.f32.gmra.mxu0 %v2762
      %v3583 = vpop.f32.mrf.mxu0
      %v3584 = vadd.f32 0.0, %v3583
      %3585 = vmatmul.f32.gmra.mxu0 %v2764
      %v3586 = vpop.f32.mrf.mxu0
      %v3587 = vadd.f32 0.0, %v3586
      %3588 = vmatmul.f32.gmra.mxu0 %v1645
      %v3589 = vpop.f32.mrf.mxu0
      %v3590 = vadd.f32 0.0, %v3589
      %3591 = vmatmul.f32.gmra.mxu0 %v1645
      %v3592 = vpop.f32.mrf.mxu0
      %v3593 = vadd.f32 0.0, %v3592
      %3594 = vdwg.mxu0
      %v3595 = vadd.f32 %v3445, %v3500
      %v3596 = vadd.f32 %v3446, %v3503
      %v3597 = vadd.f32 %v3447, %v3506
      %v3598 = vadd.f32 %v3448, %v3509
      %v3599 = vadd.f32 %v3449, %v3512
      %v3600 = vadd.f32 %v3450, %v3515
      %v3601 = vadd.f32 %v3451, %v3518
      %v3602 = vadd.f32 %v3452, %v3521
      %v3603 = vadd.f32 %v3453, %v3524
      %v3604 = vadd.f32 %v3454, %v3527
      %v3605 = vadd.f32 %v3455, %v3530
      %v3606 = vadd.f32 %v3456, %v3533
      %v3607 = vadd.f32 %v3457, %v3536
      %v3608 = vadd.f32 %v3458, %v3539
      %v3609 = vadd.f32 %v3459, %v3542
      %v3610 = vadd.f32 %v3460, %v3545
      %v3611 = vadd.f32 %v3461, %v3548
      %v3612 = vadd.f32 %v3462, %v3551
      %v3613 = vadd.f32 %v3463, %v3554
      %v3614 = vadd.f32 %v3464, %v3557
      %v3615 = vadd.f32 %v3465, %v3560
      %v3616 = vadd.f32 %v3466, %v3563
      %v3617 = vadd.f32 %v3467, %v3566
      %v3618 = vadd.f32 %v3468, %v3569
      %v3619 = vadd.f32 %v3469, %v3572
      %v3620 = vadd.f32 %v3470, %v3575
      %v3621 = vadd.f32 %v3471, %v3578
      %v3622 = vadd.f32 %v3472, %v3581
      %v3623 = vadd.f32 %v3473, %v3584
      %v3624 = vadd.f32 %v3474, %v3587
      %v3625 = vadd.f32 %v3475, %v3590
      %v3626 = vadd.f32 %v3476, %v3593
      %v3627 = vsel %vm2067, %v2110, 0.0
      %v3628 = vsel %vm2068, %v2112, 0.0
      %v3629 = vsel %vm2069, %v2114, 0.0
      %v3630 = vsel %vm2070, %v2116, 0.0
      %v3631 = vsel %vm2071, %v2118, 0.0
      %v3632 = vsel %vm2072, %v2120, 0.0
      %v3633 = vsel %vm2073, %v2122, 0.0
      %v3634 = vsel %vm2074, %v2124, 0.0
      %v3635 = vsel %vm2075, %v2126, 0.0
      %v3636 = vsel %vm2076, %v2128, 0.0
      %v3637 = vsel %vm2077, %v2130, 0.0
      %v3638 = vsel %vm2078, %v2132, 0.0
      %v3639 = vsel %vm2079, %v2134, 0.0
      %v3640 = vsel %vm2080, %v2136, 0.0
      %v3641 = vsel %vm2081, %v2138, 0.0
      %v3642 = vsel %vm2082, %v2140, 0.0
      %v3643 = vsel %vm2083, %v2142, 0.0
      %v3644 = vsel %vm2084, %v2144, 0.0
      %v3645 = vsel %vm2085, %v2146, 0.0
      %v3646 = vsel %vm2086, %v2148, 0.0
      %v3647 = vsel %vm2087, %v2150, 0.0
      %v3648 = vsel %vm2088, %v2152, 0.0
      %v3649 = vsel %vm2089, %v2154, 0.0
      %v3650 = vsel %vm2090, %v2156, 0.0
      %v3651 = vsel %vm2091, %v2158, 0.0
      %v3652 = vsel %vm2092, %v2160, 0.0
      %v3653 = vsel %vm2093, %v2162, 0.0
      %v3654 = vsel %vm2094, %v2164, 0.0
      %v3655 = vsel %vm2095, %v2915, 0.0
      %v3656 = vsel %vm2096, %v2916, 0.0
      %v3657 = vsel %vm2097, %v2102, 0.0
      %v3658 = vsel %vm2098, %v2102, 0.0
      %s3659 = scalar_lea.vmem %s5, 32
      %v3660 = vld [vmem:[%s3659] sm:$0xf]
      %v3662 = vsel %vm630, %v3627, 0
      %v3665 = vsel %vm630, %v3628, 0
      %v3668 = vsel %vm630, %v3629, 0
      %v3671 = vsel %vm630, %v3630, 0
      %v3674 = vsel %vm630, %v3631, 0
      %v3677 = vsel %vm630, %v3632, 0
      %v3680 = vsel %vm630, %v3633, 0
      %v3683 = vsel %vm630, %v3634, 0
      %v3686 = vsel %vm630, %v3635, 0
      %v3689 = vsel %vm630, %v3636, 0
      %v3692 = vsel %vm630, %v3637, 0
      %v3695 = vsel %vm630, %v3638, 0
      %v3698 = vsel %vm630, %v3639, 0
      %v3701 = vsel %vm630, %v3640, 0
      %v3704 = vsel %vm630, %v3641, 0
      %v3707 = vsel %vm630, %v3642, 0
      %v3710 = vsel %vm630, %v3643, 0
      %v3713 = vsel %vm630, %v3644, 0
      %v3716 = vsel %vm630, %v3645, 0
      %v3719 = vsel %vm630, %v3646, 0
      %v3722 = vsel %vm630, %v3647, 0
      %v3725 = vsel %vm630, %v3648, 0
      %v3728 = vsel %vm630, %v3649, 0
      %v3731 = vsel %vm630, %v3650, 0
      %v3734 = vsel %vm630, %v3651, 0
      %v3737 = vsel %vm630, %v3652, 0
      %v3740 = vsel %vm630, %v3653, 0
      %v3743 = vsel %vm630, %v3654, 0
      %v3746 = vsel %vm630, %v3655, 0
      %v3749 = vsel %vm630, %v3656, 0
      %v3752 = vsel %vm630, %v3657, 0
      %v3755 = vsel %vm630, %v3658, 0
      %v3758 = vsel %vm727, %v3660, 0
      %3760 = vmatpush.msra.mxu0 0.0
      %3761 = vmatpush.msra.mxu0 0.0
      %3762 = vmatpush.msra.mxu0 0.0
      %3763 = vmatpush.msra.mxu0 0.0
      %3764 = vmatpush.msra.mxu0 0.0
      %3765 = vmatpush.msra.mxu0 0.0
      %3766 = vmatpush.msra.mxu0 0.0
      %3767 = vmatpush.msra.mxu0 0.0
      %3768 = vmatpush.msra.mxu0 0.0
      %3769 = vmatpush.msra.mxu0 0.0
      %3770 = vmatpush.msra.mxu0 0.0
      %3771 = vmatpush.msra.mxu0 0.0
      %3772 = vmatpush.msra.mxu0 0.0
      %3773 = vmatpush.msra.mxu0 0.0
      %3774 = vmatpush.msra.mxu0 0.0
      %3775 = vmatpush.msra.mxu0 %v3758
      %3776 = vmatmul.f32.gmra.mxu0 %v3662
      %v3777 = vpop.f32.mrf.mxu0
      %v3778 = vadd.f32 0.0, %v3777
      %3779 = vmatmul.f32.gmra.mxu0 %v3665
      %v3780 = vpop.f32.mrf.mxu0
      %v3781 = vadd.f32 0.0, %v3780
      %3782 = vmatmul.f32.gmra.mxu0 %v3668
      %v3783 = vpop.f32.mrf.mxu0
      %v3784 = vadd.f32 0.0, %v3783
      %3785 = vmatmul.f32.gmra.mxu0 %v3671
      %v3786 = vpop.f32.mrf.mxu0
      %v3787 = vadd.f32 0.0, %v3786
      %3788 = vmatmul.f32.gmra.mxu0 %v3674
      %v3789 = vpop.f32.mrf.mxu0
      %v3790 = vadd.f32 0.0, %v3789
      %3791 = vmatmul.f32.gmra.mxu0 %v3677
      %v3792 = vpop.f32.mrf.mxu0
      %v3793 = vadd.f32 0.0, %v3792
      %3794 = vmatmul.f32.gmra.mxu0 %v3680
      %v3795 = vpop.f32.mrf.mxu0
      %v3796 = vadd.f32 0.0, %v3795
      %3797 = vmatmul.f32.gmra.mxu0 %v3683
      %v3798 = vpop.f32.mrf.mxu0
      %v3799 = vadd.f32 0.0, %v3798
      %3800 = vmatmul.f32.gmra.mxu0 %v3686
      %v3801 = vpop.f32.mrf.mxu0
      %v3802 = vadd.f32 0.0, %v3801
      %3803 = vmatmul.f32.gmra.mxu0 %v3689
      %v3804 = vpop.f32.mrf.mxu0
      %v3805 = vadd.f32 0.0, %v3804
      %3806 = vmatmul.f32.gmra.mxu0 %v3692
      %v3807 = vpop.f32.mrf.mxu0
      %v3808 = vadd.f32 0.0, %v3807
      %3809 = vmatmul.f32.gmra.mxu0 %v3695
      %v3810 = vpop.f32.mrf.mxu0
      %v3811 = vadd.f32 0.0, %v3810
      %3812 = vmatmul.f32.gmra.mxu0 %v3698
      %v3813 = vpop.f32.mrf.mxu0
      %v3814 = vadd.f32 0.0, %v3813
      %3815 = vmatmul.f32.gmra.mxu0 %v3701
      %v3816 = vpop.f32.mrf.mxu0
      %v3817 = vadd.f32 0.0, %v3816
      %3818 = vmatmul.f32.gmra.mxu0 %v3704
      %v3819 = vpop.f32.mrf.mxu0
      %v3820 = vadd.f32 0.0, %v3819
      %3821 = vmatmul.f32.gmra.mxu0 %v3707
      %v3822 = vpop.f32.mrf.mxu0
      %v3823 = vadd.f32 0.0, %v3822
      %3824 = vmatmul.f32.gmra.mxu0 %v3710
      %v3825 = vpop.f32.mrf.mxu0
      %v3826 = vadd.f32 0.0, %v3825
      %3827 = vmatmul.f32.gmra.mxu0 %v3713
      %v3828 = vpop.f32.mrf.mxu0
      %v3829 = vadd.f32 0.0, %v3828
      %3830 = vmatmul.f32.gmra.mxu0 %v3716
      %v3831 = vpop.f32.mrf.mxu0
      %v3832 = vadd.f32 0.0, %v3831
      %3833 = vmatmul.f32.gmra.mxu0 %v3719
      %v3834 = vpop.f32.mrf.mxu0
      %v3835 = vadd.f32 0.0, %v3834
      %3836 = vmatmul.f32.gmra.mxu0 %v3722
      %v3837 = vpop.f32.mrf.mxu0
      %v3838 = vadd.f32 0.0, %v3837
      %3839 = vmatmul.f32.gmra.mxu0 %v3725
      %v3840 = vpop.f32.mrf.mxu0
      %v3841 = vadd.f32 0.0, %v3840
      %3842 = vmatmul.f32.gmra.mxu0 %v3728
      %v3843 = vpop.f32.mrf.mxu0
      %v3844 = vadd.f32 0.0, %v3843
      %3845 = vmatmul.f32.gmra.mxu0 %v3731
      %v3846 = vpop.f32.mrf.mxu0
      %v3847 = vadd.f32 0.0, %v3846
      %3848 = vmatmul.f32.gmra.mxu0 %v3734
      %v3849 = vpop.f32.mrf.mxu0
      %v3850 = vadd.f32 0.0, %v3849
      %3851 = vmatmul.f32.gmra.mxu0 %v3737
      %v3852 = vpop.f32.mrf.mxu0
      %v3853 = vadd.f32 0.0, %v3852
      %3854 = vmatmul.f32.gmra.mxu0 %v3740
      %v3855 = vpop.f32.mrf.mxu0
      %v3856 = vadd.f32 0.0, %v3855
      %3857 = vmatmul.f32.gmra.mxu0 %v3743
      %v3858 = vpop.f32.mrf.mxu0
      %v3859 = vadd.f32 0.0, %v3858
      %3860 = vmatmul.f32.gmra.mxu0 %v3746
      %v3861 = vpop.f32.mrf.mxu0
      %v3862 = vadd.f32 0.0, %v3861
      %3863 = vmatmul.f32.gmra.mxu0 %v3749
      %v3864 = vpop.f32.mrf.mxu0
      %v3865 = vadd.f32 0.0, %v3864
      %3866 = vmatmul.f32.gmra.mxu0 %v3752
      %v3867 = vpop.f32.mrf.mxu0
      %v3868 = vadd.f32 0.0, %v3867
      %3869 = vmatmul.f32.gmra.mxu0 %v3755
      %v3870 = vpop.f32.mrf.mxu0
      %v3871 = vadd.f32 0.0, %v3870
      %3872 = vdwg.mxu0
      %v3873 = vadd.f32 %v3595, %v3778
      %v3874 = vadd.f32 %v3596, %v3781
      %v3875 = vadd.f32 %v3597, %v3784
      %v3876 = vadd.f32 %v3598, %v3787
      %v3877 = vadd.f32 %v3599, %v3790
      %v3878 = vadd.f32 %v3600, %v3793
      %v3879 = vadd.f32 %v3601, %v3796
      %v3880 = vadd.f32 %v3602, %v3799
      %v3881 = vadd.f32 %v3603, %v3802
      %v3882 = vadd.f32 %v3604, %v3805
      %v3883 = vadd.f32 %v3605, %v3808
      %v3884 = vadd.f32 %v3606, %v3811
      %v3885 = vadd.f32 %v3607, %v3814
      %v3886 = vadd.f32 %v3608, %v3817
      %v3887 = vadd.f32 %v3609, %v3820
      %v3888 = vadd.f32 %v3610, %v3823
      %v3889 = vadd.f32 %v3611, %v3826
      %v3890 = vadd.f32 %v3612, %v3829
      %v3891 = vadd.f32 %v3613, %v3832
      %v3892 = vadd.f32 %v3614, %v3835
      %v3893 = vadd.f32 %v3615, %v3838
      %v3894 = vadd.f32 %v3616, %v3841
      %v3895 = vadd.f32 %v3617, %v3844
      %v3896 = vadd.f32 %v3618, %v3847
      %v3897 = vadd.f32 %v3619, %v3850
      %v3898 = vadd.f32 %v3620, %v3853
      %v3899 = vadd.f32 %v3621, %v3856
      %v3900 = vadd.f32 %v3622, %v3859
      %v3901 = vadd.f32 %v3623, %v3862
      %v3902 = vadd.f32 %v3624, %v3865
      %v3903 = vadd.f32 %v3625, %v3868
      %v3904 = vadd.f32 %v3626, %v3871
      %v3905 = vld [vmem:[%s6] sm:$0x1]
      %v3907 = vperm.slane %v3905, 0
      %v3909 = vadd.f32 %v3873, %v3907
      %v3910 = vadd.f32 %v3874, %v3907
      %v3911 = vadd.f32 %v3875, %v3907
      %v3912 = vadd.f32 %v3876, %v3907
      %v3913 = vadd.f32 %v3877, %v3907
      %v3914 = vadd.f32 %v3878, %v3907
      %v3915 = vadd.f32 %v3879, %v3907
      %v3916 = vadd.f32 %v3880, %v3907
      %v3917 = vadd.f32 %v3881, %v3907
      %v3918 = vadd.f32 %v3882, %v3907
      %v3919 = vadd.f32 %v3883, %v3907
      %v3920 = vadd.f32 %v3884, %v3907
      %v3921 = vadd.f32 %v3885, %v3907
      %v3922 = vadd.f32 %v3886, %v3907
      %v3923 = vadd.f32 %v3887, %v3907
      %v3924 = vadd.f32 %v3888, %v3907
      %v3925 = vadd.f32 %v3889, %v3907
      %v3926 = vadd.f32 %v3890, %v3907
      %v3927 = vadd.f32 %v3891, %v3907
      %v3928 = vadd.f32 %v3892, %v3907
      %v3929 = vadd.f32 %v3893, %v3907
      %v3930 = vadd.f32 %v3894, %v3907
      %v3931 = vadd.f32 %v3895, %v3907
      %v3932 = vadd.f32 %v3896, %v3907
      %v3933 = vadd.f32 %v3897, %v3907
      %v3934 = vadd.f32 %v3898, %v3907
      %v3935 = vadd.f32 %v3899, %v3907
      %v3936 = vadd.f32 %v3900, %v3907
      %v3937 = vadd.f32 %v3901, %v3907
      %v3938 = vadd.f32 %v3902, %v3907
      %v3939 = vadd.f32 %v3903, %v3907
      %v3940 = vadd.f32 %v3904, %v3907
      %vm3941 = vcmp.ge.f32.partialorder %v3909, 0.0
      %vm3942 = vcmp.ge.f32.partialorder %v3910, 0.0
      %vm3943 = vcmp.ge.f32.partialorder %v3911, 0.0
      %vm3944 = vcmp.ge.f32.partialorder %v3912, 0.0
      %vm3945 = vcmp.ge.f32.partialorder %v3913, 0.0
      %vm3946 = vcmp.ge.f32.partialorder %v3914, 0.0
      %vm3947 = vcmp.ge.f32.partialorder %v3915, 0.0
      %vm3948 = vcmp.ge.f32.partialorder %v3916, 0.0
      %vm3949 = vcmp.ge.f32.partialorder %v3917, 0.0
      %vm3950 = vcmp.ge.f32.partialorder %v3918, 0.0
      %vm3951 = vcmp.ge.f32.partialorder %v3919, 0.0
      %vm3952 = vcmp.ge.f32.partialorder %v3920, 0.0
      %vm3953 = vcmp.ge.f32.partialorder %v3921, 0.0
      %vm3954 = vcmp.ge.f32.partialorder %v3922, 0.0
      %vm3955 = vcmp.ge.f32.partialorder %v3923, 0.0
      %vm3956 = vcmp.ge.f32.partialorder %v3924, 0.0
      %vm3957 = vcmp.ge.f32.partialorder %v3925, 0.0
      %vm3958 = vcmp.ge.f32.partialorder %v3926, 0.0
      %vm3959 = vcmp.ge.f32.partialorder %v3927, 0.0
      %vm3960 = vcmp.ge.f32.partialorder %v3928, 0.0
      %vm3961 = vcmp.ge.f32.partialorder %v3929, 0.0
      %vm3962 = vcmp.ge.f32.partialorder %v3930, 0.0
      %vm3963 = vcmp.ge.f32.partialorder %v3931, 0.0
      %vm3964 = vcmp.ge.f32.partialorder %v3932, 0.0
      %vm3965 = vcmp.ge.f32.partialorder %v3933, 0.0
      %vm3966 = vcmp.ge.f32.partialorder %v3934, 0.0
      %vm3967 = vcmp.ge.f32.partialorder %v3935, 0.0
      %vm3968 = vcmp.ge.f32.partialorder %v3936, 0.0
      %vm3969 = vcmp.ge.f32.partialorder %v3937, 0.0
      %vm3970 = vcmp.ge.f32.partialorder %v3938, 0.0
      %vm3971 = vcmp.ge.f32.partialorder %v3939, 0.0
      %vm3972 = vcmp.ge.f32.partialorder %v3940, 0.0
      %v3973 = vmul.f32 %v3909, 0.1
      %v3974 = vmul.f32 %v3910, 0.1
      %v3975 = vmul.f32 %v3911, 0.1
      %v3976 = vmul.f32 %v3912, 0.1
      %v3977 = vmul.f32 %v3913, 0.1
      %v3978 = vmul.f32 %v3914, 0.1
      %v3979 = vmul.f32 %v3915, 0.1
      %v3980 = vmul.f32 %v3916, 0.1
      %v3981 = vmul.f32 %v3917, 0.1
      %v3982 = vmul.f32 %v3918, 0.1
      %v3983 = vmul.f32 %v3919, 0.1
      %v3984 = vmul.f32 %v3920, 0.1
      %v3985 = vmul.f32 %v3921, 0.1
      %v3986 = vmul.f32 %v3922, 0.1
      %v3987 = vmul.f32 %v3923, 0.1
      %v3988 = vmul.f32 %v3924, 0.1
      %v3989 = vmul.f32 %v3925, 0.1
      %v3990 = vmul.f32 %v3926, 0.1
      %v3991 = vmul.f32 %v3927, 0.1
      %v3992 = vmul.f32 %v3928, 0.1
      %v3993 = vmul.f32 %v3929, 0.1
      %v3994 = vmul.f32 %v3930, 0.1
      %v3995 = vmul.f32 %v3931, 0.1
      %v3996 = vmul.f32 %v3932, 0.1
      %v3997 = vmul.f32 %v3933, 0.1
      %v3998 = vmul.f32 %v3934, 0.1
      %v3999 = vmul.f32 %v3935, 0.1
      %v4000 = vmul.f32 %v3936, 0.1
      %v4001 = vmul.f32 %v3937, 0.1
      %v4002 = vmul.f32 %v3938, 0.1
      %v4003 = vmul.f32 %v3939, 0.1
      %v4004 = vmul.f32 %v3940, 0.1
      %v4005 = vsel %vm3941, %v3909, %v3973
      %v4006 = vsel %vm3942, %v3910, %v3974
      %v4007 = vsel %vm3943, %v3911, %v3975
      %v4008 = vsel %vm3944, %v3912, %v3976
      %v4009 = vsel %vm3945, %v3913, %v3977
      %v4010 = vsel %vm3946, %v3914, %v3978
      %v4011 = vsel %vm3947, %v3915, %v3979
      %v4012 = vsel %vm3948, %v3916, %v3980
      %v4013 = vsel %vm3949, %v3917, %v3981
      %v4014 = vsel %vm3950, %v3918, %v3982
      %v4015 = vsel %vm3951, %v3919, %v3983
      %v4016 = vsel %vm3952, %v3920, %v3984
      %v4017 = vsel %vm3953, %v3921, %v3985
      %v4018 = vsel %vm3954, %v3922, %v3986
      %v4019 = vsel %vm3955, %v3923, %v3987
      %v4020 = vsel %vm3956, %v3924, %v3988
      %v4021 = vsel %vm3957, %v3925, %v3989
      %v4022 = vsel %vm3958, %v3926, %v3990
      %v4023 = vsel %vm3959, %v3927, %v3991
      %v4024 = vsel %vm3960, %v3928, %v3992
      %v4025 = vsel %vm3961, %v3929, %v3993
      %v4026 = vsel %vm3962, %v3930, %v3994
      %v4027 = vsel %vm3963, %v3931, %v3995
      %v4028 = vsel %vm3964, %v3932, %v3996
      %v4029 = vsel %vm3965, %v3933, %v3997
      %v4030 = vsel %vm3966, %v3934, %v3998
      %v4031 = vsel %vm3967, %v3935, %v3999
      %v4032 = vsel %vm3968, %v3936, %v4000
      %v4033 = vsel %vm3969, %v3937, %v4001
      %v4034 = vsel %vm3970, %v3938, %v4002
      %v4035 = vsel %vm3971, %v3939, %v4003
      %v4036 = vsel %vm3972, %v3940, %v4004
      %v4037 = vadd.f32 %v4005, %v593
      %v4038 = vadd.f32 %v4006, %v594
      %v4039 = vadd.f32 %v4007, %v595
      %v4040 = vadd.f32 %v4008, %v596
      %v4041 = vadd.f32 %v4009, %v597
      %v4042 = vadd.f32 %v4010, %v598
      %v4043 = vadd.f32 %v4011, %v599
      %v4044 = vadd.f32 %v4012, %v600
      %v4045 = vadd.f32 %v4013, %v601
      %v4046 = vadd.f32 %v4014, %v602
      %v4047 = vadd.f32 %v4015, %v603
      %v4048 = vadd.f32 %v4016, %v604
      %v4049 = vadd.f32 %v4017, %v605
      %v4050 = vadd.f32 %v4018, %v606
      %v4051 = vadd.f32 %v4019, %v607
      %v4052 = vadd.f32 %v4020, %v608
      %v4053 = vadd.f32 %v4021, %v609
      %v4054 = vadd.f32 %v4022, %v610
      %v4055 = vadd.f32 %v4023, %v611
      %v4056 = vadd.f32 %v4024, %v612
      %v4057 = vadd.f32 %v4025, %v613
      %v4058 = vadd.f32 %v4026, %v614
      %v4059 = vadd.f32 %v4027, %v615
      %v4060 = vadd.f32 %v4028, %v616
      %v4061 = vadd.f32 %v4029, %v617
      %v4062 = vadd.f32 %v4030, %v618
      %v4063 = vadd.f32 %v4031, %v619
      %v4064 = vadd.f32 %v4032, %v620
      %v4065 = vadd.f32 %v4033, %v621
      %v4066 = vadd.f32 %v4034, %v622
      %v4067 = vadd.f32 %v4035, %v623
      %v4068 = vadd.f32 %v4036, %v624
      %4069 = vst.msk [vmem:[%s280] sm:$0xff] %vm630, %v4037
      %4070 = vst.msk [vmem:[%s280 + $0x8] sm:$0xff] %vm630, %v4038
      %4071 = vst.msk [vmem:[%s280 + $0x10] sm:$0xff] %vm630, %v4039
      %4072 = vst.msk [vmem:[%s280 + $0x18] sm:$0xff] %vm630, %v4040
      %4073 = vst.msk [vmem:[%s280 + $0x20] sm:$0xff] %vm630, %v4041
      %4074 = vst.msk [vmem:[%s280 + $0x28] sm:$0xff] %vm630, %v4042
      %4075 = vst.msk [vmem:[%s280 + $0x30] sm:$0xff] %vm630, %v4043
      %4076 = vst.msk [vmem:[%s280 + $0x38] sm:$0xff] %vm630, %v4044
      %4077 = vst.msk [vmem:[%s280 + $0x40] sm:$0xff] %vm630, %v4045
      %4078 = vst.msk [vmem:[%s280 + $0x48] sm:$0xff] %vm630, %v4046
      %4079 = vst.msk [vmem:[%s280 + $0x50] sm:$0xff] %vm630, %v4047
      %4080 = vst.msk [vmem:[%s280 + $0x58] sm:$0xff] %vm630, %v4048
      %4081 = vst.msk [vmem:[%s280 + $0x60] sm:$0xff] %vm630, %v4049
      %4082 = vst.msk [vmem:[%s280 + $0x68] sm:$0xff] %vm630, %v4050
      %4083 = vst.msk [vmem:[%s280 + $0x70] sm:$0xff] %vm630, %v4051
      %4084 = vst.msk [vmem:[%s280 + $0x78] sm:$0xff] %vm630, %v4052
      %4085 = vst.msk [vmem:[%s280 + $0x80] sm:$0xff] %vm630, %v4053
      %4086 = vst.msk [vmem:[%s280 + $0x88] sm:$0xff] %vm630, %v4054
      %4087 = vst.msk [vmem:[%s280 + $0x90] sm:$0xff] %vm630, %v4055
      %4088 = vst.msk [vmem:[%s280 + $0x98] sm:$0xff] %vm630, %v4056
      %4089 = vst.msk [vmem:[%s280 + $0xa0] sm:$0xff] %vm630, %v4057
      %4090 = vst.msk [vmem:[%s280 + $0xa8] sm:$0xff] %vm630, %v4058
      %4091 = vst.msk [vmem:[%s280 + $0xb0] sm:$0xff] %vm630, %v4059
      %4092 = vst.msk [vmem:[%s280 + $0xb8] sm:$0xff] %vm630, %v4060
      %4093 = vst.msk [vmem:[%s280 + $0xc0] sm:$0xff] %vm630, %v4061
      %4094 = vst.msk [vmem:[%s280 + $0xc8] sm:$0xff] %vm630, %v4062
      %4095 = vst.msk [vmem:[%s280 + $0xd0] sm:$0xff] %vm630, %v4063
      %4096 = vst.msk [vmem:[%s280 + $0xd8] sm:$0xff] %vm630, %v4064
      %4097 = vst.msk [vmem:[%s280 + $0xe0] sm:$0xff] %vm630, %v4065
      %4098 = vst.msk [vmem:[%s280 + $0xe8] sm:$0xff] %vm630, %v4066
      %4099 = vst.msk [vmem:[%s280 + $0xf0] sm:$0xff] %vm630, %v4067
      %4100 = vst.msk [vmem:[%s280 + $0xf8] sm:$0xff] %vm630, %v4068
      %s4101 = smul.u32 32, %s18
      %p4102 = scmp.lt.s32.totalorder %s4101, 63
      %s4103 = scalar_select %p4102, %s4101, 63
      %s4104 = smul.addr %s4103, 8
      %s4105 = scalar_lea.vmem %s7, %s4104
      // Predicated region
      $region49: #{tpu_custom_call.1} parent=47 // pred_check
        %p4106 = pneg %p188
      $region50: #{tpu_custom_call.1} parent=47 // pred_check_branch
        %4108 = sbr.rel (%p4106) target = $region52
      $region51: #{tpu_custom_call.1} parent=47 // pred_region
        %s4109 = smul.u32 32, %s18
      $region52: #{tpu_custom_call.1} parent=47 // pred_fallthru
        _
    $region48: #{tpu_custom_call.1} parent=5 // pred_fallthru
      _
    %p4110 = scmp.le.s32.totalorder 2, %s13
    // Predicated region
    $region53: #{tpu_custom_call.1} parent=5 // pred_check
      %p4111 = pneg %p4110
    $region54: #{tpu_custom_call.1} parent=5 // pred_check_branch
      %4113 = sbr.rel (%p4111) target = $region56
    $region55: #{tpu_custom_call.1} parent=5 // pred_region
      %s4114 = ssub.s32 %s13, 2
      // Predicated region
      $region57: #{tpu_custom_call.1} parent=55 // pred_check
        %p4115 = pneg %p194
      $region58: #{tpu_custom_call.1} parent=55 // pred_check_branch
        %4117 = sbr.rel (%p4115) target = $region60
      $region59: #{tpu_custom_call.1} parent=55 // pred_region
        %s4118 = smul.u32 32, %s19
        %p4119 = scmp.lt.s32.totalorder %s4118, 63
        %s4120 = scalar_select %p4119, %s4118, 63
        %s4121 = smul.addr %s4120, 8
        %s4122 = scalar_lea.vmem %s7, %s4121
      $region60: #{tpu_custom_call.1} parent=55 // pred_fallthru
        _
    $region56: #{tpu_custom_call.1} parent=5 // pred_fallthru
      _
  $region6: #{tpu_custom_call.1} parent=0 // loop_footer
    %s17 = sadd.s32 1, %s13
  $region7: #{tpu_custom_call.1} parent=0 // loop_footer_branch
    %12 = sbr.rel target = $region3
  $region8: #{tpu_custom_call.1} parent=0 // loop_exit
    _

</llo_original>
